<compile_context>
chip_gen: v7x
topology: tpu7x:2x2x1
jax: 0.10.0
libtpu: 0.0.40
codegen_flags: <defaults>
</compile_context>

<pallas_src>
import functools

import jax
import jax.numpy as jnp
from jax.experimental import pallas as pl
from jax.experimental.pallas import tpu as pltpu


def _round_up(n, m):
    return (n + m - 1) // m * m


@functools.lru_cache(maxsize=1)
def _vmem_limit_bytes():
    """Generation-aware scoped-VMEM budget (v7x has only 64 MiB physical)."""
    cap = 128 * 1024 * 1024
    try:
        cap = int(getattr(pltpu.get_tpu_info(), "vmem_capacity_bytes", cap))
    except Exception:
        pass
    return int(min(cap * 3 // 4, 96 * 1024 * 1024))


def _compiler_params():
    return pltpu.CompilerParams(
        dimension_semantics=("parallel",),      # grid over batch: independent
        vmem_limit_bytes=_vmem_limit_bytes(),
    )


# ----------------------------------------------------------------------------
# Kernel 1: in-kernel im2col + conv-as-matmul + per-step partial BN statistics
# ----------------------------------------------------------------------------
def _make_conv_stats_kernel(tap_offsets, out_hw, cin, with_shortcut):
    """One grid step = one image.

    Builds the (Ho*Wo, 9*cin) patch matrix in VMEM from 9 statically shifted
    slices of the prepared padded image (no HBM patch tensor), runs one MXU
    matmul with f32 accumulation, and writes per-step channel (sum, sum_sq)
    partial stats via f32 sublane reductions (XLU; MXU stays conv-only).
    Optionally also runs the fused 1x1 stride-2 shortcut conv on the same
    output pixels.
    """
    Ho, Wo = out_hw
    M = Ho * Wo

    def matmul_stats(p, w, y_out, st_out):
        y = jnp.dot(p, w, preferred_element_type=jnp.float32)
        # Channel stats: f32 axis-0 reductions (rows 2..7 of the 8-row stats
        # block are never read -> no zero padding, no concat).
        st_out[0:1, :] = jnp.sum(y, axis=0, keepdims=True)
        st_out[1:2, :] = jnp.sum(y * y, axis=0, keepdims=True)
        y_out[0] = y.astype(y_out.dtype)        # bf16 storage by default

    def kernel(*refs):
        if with_shortcut:
            x_ref, w_ref, xs_ref, ws_ref, y_ref, st_ref, ysc_ref, stsc_ref = refs
        else:
            x_ref, w_ref, y_ref, st_ref = refs

        ximg = x_ref[0]                          # (Hin, Win, Cblk)
        # In-kernel im2col: 9 (Ho, Wo, cin) views in (dy, dx, ci) order,
        # matching the (9*cin, Cp) weight layout.
        taps = [
            ximg[r0:r0 + Ho, c0:c0 + Wo, k0:k0 + cin]
            for (r0, c0, k0) in tap_offsets
        ]
        patches = jnp.concatenate(taps, axis=-1).reshape(M, 9 * cin)

        matmul_stats(patches, w_ref[...], y_ref, st_ref)
        if with_shortcut:
            matmul_stats(xs_ref[0], ws_ref[...], ysc_ref, stsc_ref)

    return kernel


def _conv_stats_call(xin, w, tap_offsets, out_hw, cin, xs=None, ws=None, *,
                     store_dtype):
    """Per-image conv (+ fused shortcut conv) with partial BN stats."""
    N = xin.shape[0]
    Cp = w.shape[1]
    Ho, Wo = out_hw
    M = Ho * Wo
    with_sc = xs is not None
    kernel = _make_conv_stats_kernel(tuple(tap_offsets), out_hw, cin, with_sc)

    args = [xin, w]
    in_specs = [
        pl.BlockSpec((1,) + tuple(xin.shape[1:]), lambda n: (n, 0, 0, 0)),
        pl.BlockSpec(tuple(w.shape), lambda n: (0, 0)),
    ]
    out_specs = [
        pl.BlockSpec((1, M, Cp), lambda n: (n, 0, 0)),
        pl.BlockSpec((8, Cp), lambda n: (n, 0)),
    ]
    out_shape = [
        jax.ShapeDtypeStruct((N, M, Cp), store_dtype),
        jax.ShapeDtypeStruct((N * 8, Cp), jnp.float32),
    ]
    if with_sc:
        cin_sc = xs.shape[-1]
        args += [xs, ws]
        in_specs += [
            pl.BlockSpec((1, M, cin_sc), lambda n: (n, 0, 0)),
            pl.BlockSpec(tuple(ws.shape), lambda n: (0, 0)),
        ]
        out_specs += [
            pl.BlockSpec((1, M, Cp), lambda n: (n, 0, 0)),
            pl.BlockSpec((8, Cp), lambda n: (n, 0)),
        ]
        out_shape += [
            jax.ShapeDtypeStruct((N, M, Cp), store_dtype),
            jax.ShapeDtypeStruct((N * 8, Cp), jnp.float32),
        ]

    return pl.pallas_call(
        kernel,
        grid=(N,),
        in_specs=in_specs,
        out_specs=tuple(out_specs),
        out_shape=tuple(out_shape),
        compiler_params=_compiler_params(),
    )(*args)


# ----------------------------------------------------------------------------
# Kernel 2: normalize + affine + ReLU (+ residual add + final ReLU)
# ----------------------------------------------------------------------------
def _make_bn_act_kernel(shortcut_mode, cout):
    """shortcut_mode: 'none' | 'raw' (identity x) | 'affine' (BN'd 1x1 conv)."""

    def kernel(*refs):
        if shortcut_mode == "affine":
            y_ref, s_ref, t_ref, ysc_ref, ssc_ref, tsc_ref, o_ref = refs
        elif shortcut_mode == "raw":
            y_ref, s_ref, t_ref, xsc_ref, o_ref = refs
        else:
            y_ref, s_ref, t_ref, o_ref = refs

        # All BN / ReLU math in f32; bf16 activations are upcast on load
        # (v5e has no bf16 VPU).
        y = y_ref[0].astype(jnp.float32)
        h = jnp.maximum(y * s_ref[...] + t_ref[...], 0.0)   # ReLU(BN(conv))

        if shortcut_mode == "affine":
            sc = ysc_ref[0].astype(jnp.float32) * ssc_ref[...] + tsc_ref[...]
            h = jnp.maximum(h + sc, 0.0)                     # (+sc) then ReLU
            o_ref[0] = h[:, :cout].astype(o_ref.dtype)
        elif shortcut_mode == "raw":
            sc = xsc_ref[0].astype(jnp.float32)              # identity shortcut
            o_ref[0] = jnp.maximum(h[:, :cout] + sc, 0.0).astype(o_ref.dtype)
        else:
            o_ref[0] = h[:, :cout].astype(o_ref.dtype)

    return kernel


def _bn_act_call(y, scale, shift, shortcut=None, ssc=None, tsc=None, *,
                 cout, out_dtype):
    N, M, Cp = y.shape
    if shortcut is None:
        mode = "none"
    elif ssc is None:
        mode = "raw"
    else:
        mode = "affine"
    kernel = _make_bn_act_kernel(mode, cout)

    args = [y, scale, shift]
    in_specs = [
        pl.BlockSpec((1, M, Cp), lambda n: (n, 0, 0)),
        pl.BlockSpec((1, Cp), lambda n: (0, 0)),
        pl.BlockSpec((1, Cp), lambda n: (0, 0)),
    ]
    if mode == "raw":
        args += [shortcut]
        in_specs += [pl.BlockSpec((1, M, shortcut.shape[-1]), lambda n: (n, 0, 0))]
    elif mode == "affine":
        args += [shortcut, ssc, tsc]
        in_specs += [
            pl.BlockSpec((1, M, Cp), lambda n: (n, 0, 0)),
            pl.BlockSpec((1, Cp), lambda n: (0, 0)),
            pl.BlockSpec((1, Cp), lambda n: (0, 0)),
        ]

    return pl.pallas_call(
        kernel,
        grid=(N,),
        in_specs=in_specs,
        out_specs=pl.BlockSpec((1, M, cout), lambda n: (n, 0, 0)),
        out_shape=jax.ShapeDtypeStruct((N, M, cout), out_dtype),
        compiler_params=_compiler_params(),
    )(*args)


# ----------------------------------------------------------------------------
# Tiny JAX glue: BN finalize, conv-input preparation, weight layout
# ----------------------------------------------------------------------------
def _finalize_bn(stats, m_true, gamma_p, beta_p, eps=1e-5):
    """Per-step partial (sum, sum_sq) -> per-channel (scale, shift)."""
    cp = stats.shape[-1]
    st = stats.reshape(-1, 8, cp)
    total = jnp.sum(st[:, 0, :], axis=0)
    total_sq = jnp.sum(st[:, 1, :], axis=0)
    mean = total / m_true
    var = jnp.maximum(total_sq / m_true - mean * mean, 0.0)   # biased var (f32)
    scale = gamma_p * jax.lax.rsqrt(var + eps)
    shift = beta_p - mean * scale
    return scale.reshape(1, cp), shift.reshape(1, cp)


def _prep_conv_input_s1(x_nhwc, dtype):
    """Stride-1 3x3, pad=1: zero-pad H/W by 1; taps are (dy, dx, 0) offsets."""
    xp = jnp.pad(x_nhwc, ((0, 0), (1, 1), (1, 1), (0, 0))).astype(dtype)
    taps = [(dy, dx, 0) for dy in range(3) for dx in range(3)]
    return xp, taps


def _prep_conv_input_s2(x_nhwc, dtype):
    """Stride-2 3x3, pad=1: space-to-depth of the padded input so every tap is
    an UNSTRIDED static (row, col, channel) offset inside the kernel."""
    N, H, W, C = x_nhwc.shape
    Ho = (H - 1) // 2 + 1
    Wo = (W - 1) // 2 + 1
    Hq, Wq = Ho + 1, Wo + 1
    xp = jnp.pad(x_nhwc, ((0, 0), (1, 2 * Hq - H - 1), (1, 2 * Wq - W - 1), (0, 0)))
    xq = xp.reshape(N, Hq, 2, Wq, 2, C)
    xq = jnp.transpose(xq, (0, 1, 3, 2, 4, 5)).reshape(N, Hq, Wq, 4 * C)
    xq = xq.astype(dtype)
    taps = [(dy // 2, dx // 2, ((dy % 2) * 2 + (dx % 2)) * C)
            for dy in range(3) for dx in range(3)]
    return xq, taps, (Ho, Wo)


def _reshape_conv3x3_weight(w_oihw):
    """(Cout, Cin, 3, 3) -> (9*Cin, Cout) in (dy, dx, ci) row order."""
    cout, cin = w_oihw.shape[0], w_oihw.shape[1]
    return jnp.transpose(w_oihw, (2, 3, 1, 0)).reshape(9 * cin, cout)


def resblock_forward_pallas(x_nchw, params, downsample, *,
                            matmul_dtype=jnp.bfloat16):
    """bf16 operands + bf16 inter-kernel activations by default (f32 = debug)."""
    eps = 1e-5
    # NCHW -> NHWC interface plumbing (see TODO at the top about dropping it).
    x = jnp.transpose(x_nchw, (0, 2, 3, 1)).astype(jnp.float32)
    N, H, W, Cin = x.shape
    Cout = params["w1"].shape[0]
    Cp = _round_up(Cout, 128)                     # lane-dense channel padding
    stride = 2 if downsample else 1
    Ho = (H - 1) // stride + 1
    Wo = (W - 1) // stride + 1
    M = Ho * Wo                                   # output pixels per image

    store_dtype = matmul_dtype                    # inter-kernel activation dtype

    def pad_cols(a):
        return jnp.pad(a, ((0, 0), (0, Cp - a.shape[1])))

    def pad_vec(v):
        return jnp.pad(v.astype(jnp.float32), (0, Cp - v.shape[0]))

    # Conv biases are dropped inside the kernels: a per-channel constant added
    # before BatchNorm cancels exactly in the mean subtraction.
    w1 = pad_cols(_reshape_conv3x3_weight(params["w1"])).astype(matmul_dtype)
    w2 = pad_cols(_reshape_conv3x3_weight(params["w2"])).astype(matmul_dtype)

    # ---- conv1 (in-kernel im2col) + BN1 partial stats ----
    if downsample:
        x1_in, taps1, _ = _prep_conv_input_s2(x, matmul_dtype)
    else:
        x1_in, taps1 = _prep_conv_input_s1(x, matmul_dtype)
    y1, st1 = _conv_stats_call(x1_in, w1, taps1, (Ho, Wo), Cin,
                               store_dtype=store_dtype)
    s1, t1 = _finalize_bn(st1, N * M, pad_vec(params["g1"]),
                          pad_vec(params["be1"]), eps)

    # ---- BN1 + ReLU (bf16 out feeds conv2 directly) ----
    h1 = _bn_act_call(y1, s1, t1, cout=Cout, out_dtype=store_dtype)
    h1_img = h1.reshape(N, Ho, Wo, Cout)

    # ---- conv2 (stride 1, in-kernel im2col) [+ fused 1x1/s2 shortcut conv] ----
    x2_in, taps2 = _prep_conv_input_s1(h1_img, matmul_dtype)
    if downsample:
        xs = x[:, ::2, ::2, :].reshape(N, M, Cin).astype(matmul_dtype)
        ws = pad_cols(params["ws"].reshape(Cout, Cin).T).astype(matmul_dtype)
        y2, st2, ysc, stsc = _conv_stats_call(
            x2_in, w2, taps2, (Ho, Wo), Cout, xs, ws, store_dtype=store_dtype)
        s2, t2 = _finalize_bn(st2, N * M, pad_vec(params["g2"]),
                              pad_vec(params["be2"]), eps)
        ssc, tsc = _finalize_bn(stsc, N * M, pad_vec(params["gs"]),
                                pad_vec(params["bes"]), eps)
        out = _bn_act_call(y2, s2, t2, ysc, ssc, tsc,
                           cout=Cout, out_dtype=jnp.float32)
    else:
        assert Cin == Cout, "identity shortcut requires in_channels == out_channels"
        y2, st2 = _conv_stats_call(x2_in, w2, taps2, (Ho, Wo), Cout,
                                   store_dtype=store_dtype)
        s2, t2 = _finalize_bn(st2, N * M, pad_vec(params["g2"]),
                              pad_vec(params["be2"]), eps)
        xsc = x.reshape(N, M, Cin).astype(store_dtype)    # raw x, no copy/affine
        out = _bn_act_call(y2, s2, t2, xsc, cout=Cout, out_dtype=jnp.float32)

    out = out.reshape(N, Ho, Wo, Cout)
    return jnp.transpose(out, (0, 3, 1, 2))               # back to NCHW


# ----------------------------------------------------------------------------
# Pure-JAX reference (mirrors the PyTorch module, BatchNorm in training mode)
# ----------------------------------------------------------------------------
def resblock_forward_ref(x, params, downsample):
    def conv(x, w, b, stride, pad):
        y = jax.lax.conv_general_dilated(
            x, w, (stride, stride), [(pad, pad), (pad, pad)],
            dimension_numbers=("NCHW", "OIHW", "NCHW"))
        return y + b[None, :, None, None]

    def bn(x, g, be, eps=1e-5):
        mean = jnp.mean(x, axis=(0, 2, 3), keepdims=True)
        var = jnp.mean((x - mean) ** 2, axis=(0, 2, 3), keepdims=True)
        return (x - mean) * jax.lax.rsqrt(var + eps) * g[None, :, None, None] \
               + be[None, :, None, None]

    stride = 2 if downsample else 1
    if downsample:
        sc = bn(conv(x, params["ws"], params["bs"], 2, 0), params["gs"], params["bes"])
    else:
        sc = x
    h = jax.nn.relu(bn(conv(x, params["w1"], params["b1"], stride, 1),
                       params["g1"], params["be1"]))
    h = jax.nn.relu(bn(conv(h, params["w2"], params["b2"], 1, 1),
                       params["g2"], params["be2"]))
    return jax.nn.relu(h + sc)


# ----------------------------------------------------------------------------
# Deterministic parameter init (shapes from ResBlock.__init__)
# ----------------------------------------------------------------------------
def init_params(key, cin, cout, downsample):
    ks = jax.random.split(key, 6)
    p = dict(
        w1=jax.random.normal(ks[0], (cout, cin, 3, 3), jnp.float32) * 0.2,
        b1=jax.random.normal(ks[1], (cout,), jnp.float32) * 0.1,
        w2=jax.random.normal(ks[2], (cout, cout, 3, 3), jnp.float32) * 0.2,
        b2=jax.random.normal(ks[3], (cout,), jnp.float32) * 0.1,
        g1=jnp.ones((cout,), jnp.float32), be1=jnp.zeros((cout,), jnp.float32),
        g2=jnp.ones((cout,), jnp.float32), be2=jnp.zeros((cout,), jnp.float32),
    )
    if downsample:
        p.update(
            ws=jax.random.normal(ks[4], (cout, cin, 1, 1), jnp.float32) * 0.2,
            bs=jax.random.normal(ks[5], (cout,), jnp.float32) * 0.1,
            gs=jnp.ones((cout,), jnp.float32), bes=jnp.zeros((cout,), jnp.float32),
        )
    return p


if __name__ == "__main__":
    key = jax.random.PRNGKey(0)
    kx, kp1, kp2 = jax.random.split(key, 3)
    x = jax.random.normal(kx, (2, 4, 16, 16), jnp.float32)   # NCHW, like PyTorch

    fwd = jax.jit(resblock_forward_pallas,
                  static_argnames=("downsample", "matmul_dtype"))

    # Config 1: downsample=False (identity shortcut), in=out=4.
    params_a = init_params(kp1, 4, 4, downsample=False)
    ref_a = resblock_forward_ref(x, params_a, downsample=False)

    out_a32 = jax.block_until_ready(
        fwd(x, params_a, downsample=False, matmul_dtype=jnp.float32))  # debug path
    assert out_a32.shape == (2, 4, 16, 16), out_a32.shape
    err = float(jnp.max(jnp.abs(out_a32 - ref_a)))
    assert err < 2e-3, f"downsample=False (f32) mismatch: {err}"

    out_a16 = jax.block_until_ready(fwd(x, params_a, downsample=False))  # bf16 default
    err = float(jnp.max(jnp.abs(out_a16 - ref_a)))
    assert err < 1e-1, f"downsample=False (bf16) mismatch: {err}"

    # Config 2: downsample=True (fused 1x1 stride-2 conv + BN shortcut), 4 -> 8.
    params_b = init_params(kp2, 4, 8, downsample=True)
    ref_b = resblock_forward_ref(x, params_b, downsample=True)

    out_b32 = jax.block_until_ready(
        fwd(x, params_b, downsample=True, matmul_dtype=jnp.float32))
    assert out_b32.shape == (2, 8, 8, 8), out_b32.shape
    err = float(jnp.max(jnp.abs(out_b32 - ref_b)))
    assert err < 2e-3, f"downsample=True (f32) mismatch: {err}"

    out_b16 = jax.block_until_ready(fwd(x, params_b, downsample=True))
    err = float(jnp.max(jnp.abs(out_b16 - ref_b)))
    assert err < 1e-1, f"downsample=True (bf16) mismatch: {err}"

    print("KERNEL_OK")
</pallas_src>

<mosaic_0001>
module attributes {stable_mosaic.version = 11 : i64} {
  func.func @kernel(%arg0: i32, %arg1: memref<1x18x18x4xf32, #tpu.memory_space<vmem>>, %arg2: memref<36x128xf32, #tpu.memory_space<vmem>>, %arg3: memref<1x256x128xf32, #tpu.memory_space<vmem>>, %arg4: memref<8x128xf32, #tpu.memory_space<vmem>>) attributes {dimension_semantics = [#tpu.dimension_semantics<parallel>], iteration_bounds = array<i64: 2>, scalar_prefetch = 0 : i64, scratch_operands = 0 : i64, tpu.core_type = #tpu.core_type<tc>, window_params = [{transform_indices = @transform_0, window_bounds = array<i64: 1, 18, 18, 4>}, {pipeline_mode = #tpu.pipeline_mode<synchronous>, transform_indices = @transform_1, window_bounds = array<i64: 36, 128>}, {transform_indices = @transform_2, window_bounds = array<i64: 1, 256, 128>}, {transform_indices = @transform_3, window_bounds = array<i64: 8, 128>}]} {
    %c0 = arith.constant 0 : index
    %c0_0 = arith.constant 0 : index
    %c0_1 = arith.constant 0 : index
    %c0_2 = arith.constant 0 : index
    %0 = vector.load %arg1[%c0, %c0_0, %c0_1, %c0_2] : memref<1x18x18x4xf32, #tpu.memory_space<vmem>>, vector<1x18x18x4xf32>
    %1 = vector.shape_cast %0 : vector<1x18x18x4xf32> to vector<18x18x4xf32>
    %2 = vector.extract_strided_slice %1 {offsets = [0, 0, 0], sizes = [16, 16, 4], strides = [1, 1, 1]} : vector<18x18x4xf32> to vector<16x16x4xf32>
    %3 = vector.extract_strided_slice %1 {offsets = [0, 1, 0], sizes = [16, 16, 4], strides = [1, 1, 1]} : vector<18x18x4xf32> to vector<16x16x4xf32>
    %4 = vector.extract_strided_slice %1 {offsets = [0, 2, 0], sizes = [16, 16, 4], strides = [1, 1, 1]} : vector<18x18x4xf32> to vector<16x16x4xf32>
    %5 = vector.extract_strided_slice %1 {offsets = [1, 0, 0], sizes = [16, 16, 4], strides = [1, 1, 1]} : vector<18x18x4xf32> to vector<16x16x4xf32>
    %6 = vector.extract_strided_slice %1 {offsets = [1, 1, 0], sizes = [16, 16, 4], strides = [1, 1, 1]} : vector<18x18x4xf32> to vector<16x16x4xf32>
    %7 = vector.extract_strided_slice %1 {offsets = [1, 2, 0], sizes = [16, 16, 4], strides = [1, 1, 1]} : vector<18x18x4xf32> to vector<16x16x4xf32>
    %8 = vector.extract_strided_slice %1 {offsets = [2, 0, 0], sizes = [16, 16, 4], strides = [1, 1, 1]} : vector<18x18x4xf32> to vector<16x16x4xf32>
    %9 = vector.extract_strided_slice %1 {offsets = [2, 1, 0], sizes = [16, 16, 4], strides = [1, 1, 1]} : vector<18x18x4xf32> to vector<16x16x4xf32>
    %10 = vector.extract_strided_slice %1 {offsets = [2, 2, 0], sizes = [16, 16, 4], strides = [1, 1, 1]} : vector<18x18x4xf32> to vector<16x16x4xf32>
    %11 = tpu.concatenate %2, %3, %4, %5, %6, %7, %8, %9, %10 in 2 : vector<16x16x4xf32>, vector<16x16x4xf32>, vector<16x16x4xf32>, vector<16x16x4xf32>, vector<16x16x4xf32>, vector<16x16x4xf32>, vector<16x16x4xf32>, vector<16x16x4xf32>, vector<16x16x4xf32> -> vector<16x16x36xf32>
    %12 = vector.shape_cast %11 : vector<16x16x36xf32> to vector<256x36xf32>
    %c0_3 = arith.constant 0 : index
    %c0_4 = arith.constant 0 : index
    %13 = vector.load %arg2[%c0_3, %c0_4] : memref<36x128xf32, #tpu.memory_space<vmem>>, vector<36x128xf32>
    %cst = arith.constant dense<0.000000e+00> : vector<256x128xf32>
    %14 = tpu.matmul %12, %13, %cst {dimension_numbers = #tpu.dot_dimension_numbers<[1], [0], [0], [1], [0, 0, 1, 1], [], []>} : vector<256x36xf32>, vector<36x128xf32>, vector<256x128xf32> -> vector<256x128xf32>
    %cst_5 = arith.constant dense<0.000000e+00> : vector<128xf32>
    %15 = vector.multi_reduction <add>, %14, %cst_5 [0] : vector<256x128xf32> to vector<128xf32>
    %16 = vector.shape_cast %15 : vector<128xf32> to vector<1x128xf32>
    %c0_6 = arith.constant 0 : index
    %c0_7 = arith.constant 0 : index
    %17 = vector.load %arg4[%c0_6, %c0_7] : memref<8x128xf32, #tpu.memory_space<vmem>>, vector<1x128xf32>
    tpu.vector_store %arg4[%c0_6, %c0_7], %16 {strides = array<i32>} : memref<8x128xf32, #tpu.memory_space<vmem>>, vector<1x128xf32>,
    %18 = arith.mulf %14, %14 : vector<256x128xf32>
    %cst_8 = arith.constant dense<0.000000e+00> : vector<128xf32>
    %19 = vector.multi_reduction <add>, %18, %cst_8 [0] : vector<256x128xf32> to vector<128xf32>
    %20 = vector.shape_cast %19 : vector<128xf32> to vector<1x128xf32>
    %c1 = arith.constant 1 : index
    %c0_9 = arith.constant 0 : index
    %21 = vector.load %arg4[%c1, %c0_9] : memref<8x128xf32, #tpu.memory_space<vmem>>, vector<1x128xf32>
    tpu.vector_store %arg4[%c1, %c0_9], %20 {strides = array<i32>} : memref<8x128xf32, #tpu.memory_space<vmem>>, vector<1x128xf32>,
    %c0_10 = arith.constant 0 : index
    %c0_11 = arith.constant 0 : index
    %c0_12 = arith.constant 0 : index
    %22 = vector.load %arg3[%c0_10, %c0_11, %c0_12] : memref<1x256x128xf32, #tpu.memory_space<vmem>>, vector<1x256x128xf32>
    %23 = vector.shape_cast %22 : vector<1x256x128xf32> to vector<256x128xf32>
    %24 = vector.shape_cast %14 : vector<256x128xf32> to vector<1x256x128xf32>
    tpu.vector_store %arg3[%c0_10, %c0_11, %c0_12], %24 {strides = array<i32>} : memref<1x256x128xf32, #tpu.memory_space<vmem>>, vector<1x256x128xf32>,
    return
  }
  func.func @transform_0(%arg0: i32) -> (i32, i32, i32, i32) {
    %c0_i32 = arith.constant 0 : i32
    %c0_i32_0 = arith.constant 0 : i32
    %c0_i32_1 = arith.constant 0 : i32
    %c0_i32_2 = arith.constant 0 : i32
    return %arg0, %c0_i32, %c0_i32_0, %c0_i32_1 : i32, i32, i32, i32
  }
  func.func @transform_1(%arg0: i32) -> (i32, i32) {
    %c0_i32 = arith.constant 0 : i32
    %c0_i32_0 = arith.constant 0 : i32
    %c0_i32_1 = arith.constant 0 : i32
    return %c0_i32, %c0_i32_0 : i32, i32
  }
  func.func @transform_2(%arg0: i32) -> (i32, i32, i32) {
    %c0_i32 = arith.constant 0 : i32
    %c0_i32_0 = arith.constant 0 : i32
    %c0_i32_1 = arith.constant 0 : i32
    return %arg0, %c0_i32, %c0_i32_0 : i32, i32, i32
  }
  func.func @transform_3(%arg0: i32) -> (i32, i32) {
    %c0_i32 = arith.constant 0 : i32
    %c0_i32_0 = arith.constant 0 : i32
    return %arg0, %c0_i32 : i32, i32
  }
}

module attributes {stable_mosaic.version = 11 : i64} {
  func.func @kernel(%arg0: i32, %arg1: memref<1x256x128xf32, #tpu.memory_space<vmem>>, %arg2: memref<1x128xf32, #tpu.memory_space<vmem>>, %arg3: memref<1x128xf32, #tpu.memory_space<vmem>>, %arg4: memref<1x256x4xf32, #tpu.memory_space<vmem>>) attributes {dimension_semantics = [#tpu.dimension_semantics<parallel>], iteration_bounds = array<i64: 2>, scalar_prefetch = 0 : i64, scratch_operands = 0 : i64, tpu.core_type = #tpu.core_type<tc>, window_params = [{transform_indices = @transform_0, window_bounds = array<i64: 1, 256, 128>}, {pipeline_mode = #tpu.pipeline_mode<synchronous>, transform_indices = @transform_1, window_bounds = array<i64: 1, 128>}, {pipeline_mode = #tpu.pipeline_mode<synchronous>, transform_indices = @transform_2, window_bounds = array<i64: 1, 128>}, {transform_indices = @transform_3, window_bounds = array<i64: 1, 256, 4>}]} {
    %c0 = arith.constant 0 : index
    %c0_0 = arith.constant 0 : index
    %c0_1 = arith.constant 0 : index
    %0 = vector.load %arg1[%c0, %c0_0, %c0_1] : memref<1x256x128xf32, #tpu.memory_space<vmem>>, vector<1x256x128xf32>
    %1 = vector.shape_cast %0 : vector<1x256x128xf32> to vector<256x128xf32>
    %c0_2 = arith.constant 0 : index
    %c0_3 = arith.constant 0 : index
    %2 = vector.load %arg2[%c0_2, %c0_3] : memref<1x128xf32, #tpu.memory_space<vmem>>, vector<1x128xf32>
    %3 = vector.broadcast %2 : vector<1x128xf32> to vector<256x128xf32>
    %4 = arith.mulf %1, %3 : vector<256x128xf32>
    %c0_4 = arith.constant 0 : index
    %c0_5 = arith.constant 0 : index
    %5 = vector.load %arg3[%c0_4, %c0_5] : memref<1x128xf32, #tpu.memory_space<vmem>>, vector<1x128xf32>
    %6 = vector.broadcast %5 : vector<1x128xf32> to vector<256x128xf32>
    %7 = arith.addf %4, %6 : vector<256x128xf32>
    %cst = arith.constant 0.000000e+00 : f32
    %8 = vector.broadcast %cst : f32 to vector<256x128xf32>
    %9 = arith.maximumf %7, %8 : vector<256x128xf32>
    %10 = vector.extract_strided_slice %9 {offsets = [0, 0], sizes = [256, 4], strides = [1, 1]} : vector<256x128xf32> to vector<256x4xf32>
    %c0_6 = arith.constant 0 : index
    %c0_7 = arith.constant 0 : index
    %c0_8 = arith.constant 0 : index
    %11 = vector.load %arg4[%c0_6, %c0_7, %c0_8] : memref<1x256x4xf32, #tpu.memory_space<vmem>>, vector<1x256x4xf32>
    %12 = vector.shape_cast %11 : vector<1x256x4xf32> to vector<256x4xf32>
    %13 = vector.shape_cast %10 : vector<256x4xf32> to vector<1x256x4xf32>
    tpu.vector_store %arg4[%c0_6, %c0_7, %c0_8], %13 {strides = array<i32>} : memref<1x256x4xf32, #tpu.memory_space<vmem>>, vector<1x256x4xf32>,
    return
  }
  func.func @transform_0(%arg0: i32) -> (i32, i32, i32) {
    %c0_i32 = arith.constant 0 : i32
    %c0_i32_0 = arith.constant 0 : i32
    %c0_i32_1 = arith.constant 0 : i32
    return %arg0, %c0_i32, %c0_i32_0 : i32, i32, i32
  }
  func.func @transform_1(%arg0: i32) -> (i32, i32) {
    %c0_i32 = arith.constant 0 : i32
    %c0_i32_0 = arith.constant 0 : i32
    %c0_i32_1 = arith.constant 0 : i32
    return %c0_i32, %c0_i32_0 : i32, i32
  }
  func.func @transform_2(%arg0: i32) -> (i32, i32) {
    %c0_i32 = arith.constant 0 : i32
    %c0_i32_0 = arith.constant 0 : i32
    %c0_i32_1 = arith.constant 0 : i32
    return %c0_i32, %c0_i32_0 : i32, i32
  }
  func.func @transform_3(%arg0: i32) -> (i32, i32, i32) {
    %c0_i32 = arith.constant 0 : i32
    %c0_i32_0 = arith.constant 0 : i32
    %c0_i32_1 = arith.constant 0 : i32
    return %arg0, %c0_i32, %c0_i32_0 : i32, i32, i32
  }
}

module attributes {stable_mosaic.version = 11 : i64} {
  func.func @kernel(%arg0: i32, %arg1: memref<1x256x128xf32, #tpu.memory_space<vmem>>, %arg2: memref<1x128xf32, #tpu.memory_space<vmem>>, %arg3: memref<1x128xf32, #tpu.memory_space<vmem>>, %arg4: memref<1x256x4xf32, #tpu.memory_space<vmem>>, %arg5: memref<1x256x4xf32, #tpu.memory_space<vmem>>) attributes {dimension_semantics = [#tpu.dimension_semantics<parallel>], iteration_bounds = array<i64: 2>, scalar_prefetch = 0 : i64, scratch_operands = 0 : i64, tpu.core_type = #tpu.core_type<tc>, window_params = [{transform_indices = @transform_0, window_bounds = array<i64: 1, 256, 128>}, {pipeline_mode = #tpu.pipeline_mode<synchronous>, transform_indices = @transform_1, window_bounds = array<i64: 1, 128>}, {pipeline_mode = #tpu.pipeline_mode<synchronous>, transform_indices = @transform_2, window_bounds = array<i64: 1, 128>}, {transform_indices = @transform_3, window_bounds = array<i64: 1, 256, 4>}, {transform_indices = @transform_4, window_bounds = array<i64: 1, 256, 4>}]} {
    %c0 = arith.constant 0 : index
    %c0_0 = arith.constant 0 : index
    %c0_1 = arith.constant 0 : index
    %0 = vector.load %arg1[%c0, %c0_0, %c0_1] : memref<1x256x128xf32, #tpu.memory_space<vmem>>, vector<1x256x128xf32>
    %1 = vector.shape_cast %0 : vector<1x256x128xf32> to vector<256x128xf32>
    %c0_2 = arith.constant 0 : index
    %c0_3 = arith.constant 0 : index
    %2 = vector.load %arg2[%c0_2, %c0_3] : memref<1x128xf32, #tpu.memory_space<vmem>>, vector<1x128xf32>
    %3 = vector.broadcast %2 : vector<1x128xf32> to vector<256x128xf32>
    %4 = arith.mulf %1, %3 : vector<256x128xf32>
    %c0_4 = arith.constant 0 : index
    %c0_5 = arith.constant 0 : index
    %5 = vector.load %arg3[%c0_4, %c0_5] : memref<1x128xf32, #tpu.memory_space<vmem>>, vector<1x128xf32>
    %6 = vector.broadcast %5 : vector<1x128xf32> to vector<256x128xf32>
    %7 = arith.addf %4, %6 : vector<256x128xf32>
    %cst = arith.constant 0.000000e+00 : f32
    %8 = vector.broadcast %cst : f32 to vector<256x128xf32>
    %9 = arith.maximumf %7, %8 : vector<256x128xf32>
    %c0_6 = arith.constant 0 : index
    %c0_7 = arith.constant 0 : index
    %c0_8 = arith.constant 0 : index
    %10 = vector.load %arg4[%c0_6, %c0_7, %c0_8] : memref<1x256x4xf32, #tpu.memory_space<vmem>>, vector<1x256x4xf32>
    %11 = vector.shape_cast %10 : vector<1x256x4xf32> to vector<256x4xf32>
    %12 = vector.extract_strided_slice %9 {offsets = [0, 0], sizes = [256, 4], strides = [1, 1]} : vector<256x128xf32> to vector<256x4xf32>
    %13 = arith.addf %12, %11 : vector<256x4xf32>
    %cst_9 = arith.constant 0.000000e+00 : f32
    %14 = vector.broadcast %cst_9 : f32 to vector<256x4xf32>
    %15 = arith.maximumf %13, %14 : vector<256x4xf32>
    %c0_10 = arith.constant 0 : index
    %c0_11 = arith.constant 0 : index
    %c0_12 = arith.constant 0 : index
    %16 = vector.load %arg5[%c0_10, %c0_11, %c0_12] : memref<1x256x4xf32, #tpu.memory_space<vmem>>, vector<1x256x4xf32>
    %17 = vector.shape_cast %16 : vector<1x256x4xf32> to vector<256x4xf32>
    %18 = vector.shape_cast %15 : vector<256x4xf32> to vector<1x256x4xf32>
    tpu.vector_store %arg5[%c0_10, %c0_11, %c0_12], %18 {strides = array<i32>} : memref<1x256x4xf32, #tpu.memory_space<vmem>>, vector<1x256x4xf32>,
    return
  }
  func.func @transform_0(%arg0: i32) -> (i32, i32, i32) {
    %c0_i32 = arith.constant 0 : i32
    %c0_i32_0 = arith.constant 0 : i32
    %c0_i32_1 = arith.constant 0 : i32
    return %arg0, %c0_i32, %c0_i32_0 : i32, i32, i32
  }
  func.func @transform_1(%arg0: i32) -> (i32, i32) {
    %c0_i32 = arith.constant 0 : i32
    %c0_i32_0 = arith.constant 0 : i32
    %c0_i32_1 = arith.constant 0 : i32
    return %c0_i32, %c0_i32_0 : i32, i32
  }
  func.func @transform_2(%arg0: i32) -> (i32, i32) {
    %c0_i32 = arith.constant 0 : i32
    %c0_i32_0 = arith.constant 0 : i32
    %c0_i32_1 = arith.constant 0 : i32
    return %c0_i32, %c0_i32_0 : i32, i32
  }
  func.func @transform_3(%arg0: i32) -> (i32, i32, i32) {
    %c0_i32 = arith.constant 0 : i32
    %c0_i32_0 = arith.constant 0 : i32
    %c0_i32_1 = arith.constant 0 : i32
    return %arg0, %c0_i32, %c0_i32_0 : i32, i32, i32
  }
  func.func @transform_4(%arg0: i32) -> (i32, i32, i32) {
    %c0_i32 = arith.constant 0 : i32
    %c0_i32_0 = arith.constant 0 : i32
    %c0_i32_1 = arith.constant 0 : i32
    return %arg0, %c0_i32, %c0_i32_0 : i32, i32, i32
  }
}

</mosaic_0001>

<llo_original>
// kernel: resblock_forward_pallas.5
$region0: #{resblock_forward_pallas.5}
  #allocation0 [shape = 'u32[]', space=smem, size = 0x4, offset = 0x4, fixed_abs, tag = 'smem constant byte address 0x4 - core index']
  #allocation1 [shape = 'u32[144,128]{1,0:T(1,128)}', space=vmem, size = 0x12000, scoped, tag = 'internal scratch']
  %s0 = inlined_call_operand.hbm [shape: f32[2,256,128], index: 0, kind: input, shape index: {}]
  %s1 = inlined_call_operand.hbm [shape: f32[1,128], index: 1, kind: input, shape index: {}]
  %s2 = inlined_call_operand.hbm [shape: f32[1,128], index: 2, kind: input, shape index: {}]
  %s3 = inlined_call_operand.hbm [shape: f32[2,256,4], index: 3, kind: output, shape index: {}]
  %s4 = sld [smem:[#allocation0]]
  $region57: #{resblock_forward_pallas.5} parent=0
    _
  %s6 = ssub.s32 1, %s4
  %s7 = scalar_select 0, %s6, %s4
  $region1: #{resblock_forward_pallas.5} parent=0
    #allocation2 [shape = 'u8[262144]{0}', space=vmem, size = 0x40000, scoped, tag = 'input window, operand 0']
    #allocation3 [shape = 's32[2]{0}', space=sflag, size = 0x8, scoped, tag = 'scoped memory for resblock_forward_pallas.5']
    #allocation4 [shape = 's32[2]{0}', space=sflag, size = 0x8, scoped, tag = 'scoped memory for resblock_forward_pallas.5']
    #allocation5 [shape = 'u8[512]{0}', space=vmem, size = 0x400, scoped, tag = 'input window, operand 1, single buffered']
    #allocation6 [shape = 's32[1]{0}', space=sflag, size = 0x4, scoped, tag = 'scoped memory for resblock_forward_pallas.5']
    #allocation7 [shape = 'u8[512]{0}', space=vmem, size = 0x400, scoped, tag = 'input window, operand 2, single buffered']
    #allocation8 [shape = 'u8[262144]{0}', space=vmem, size = 0x40000, scoped, tag = 'output window, operand 0']
    %8 = vsyncpa [#allocation3], 0
    %s9 = scalar_lea.sflag [#allocation3], 1
    %10 = vsyncpa %s9, 0
    %11 = vsyncpa [#allocation6], 0
    %12 = vsyncpa [#allocation4], 0
    %s13 = scalar_lea.sflag [#allocation4], 1
    %14 = vsyncpa %s13, 0
    loop: start=0, step=1, limit=4
    $region2: #{resblock_forward_pallas.5} parent=1 // loop_pre_header
      _
    $region3: #{resblock_forward_pallas.5} parent=1 // loop_header
      %s16 = sphi 0, %s20
      %p17 = scmp.ge.s32.totalorder %s16, 4
      %s26 = sphi 0, %s28
      %s29 = sphi 0, %s26
      %s30 = sphi 0, %s29
      %s46 = sphi 0, %s30
      %s50 = sphi 0, %s50
      %s52 = sphi 0, %s50
      %s53 = sphi 0, %s52
      %s67 = sphi 0, %s53
      %s71 = sphi 0, %s71
      %s73 = sphi 0, %s71
      %s74 = sphi 0, %s73
      %s88 = sphi 0, %s74
      %s94 = sphi 0, %s96
      %s97 = sphi 0, %s94
      %s98 = sphi 0, %s97
      %s114 = sphi 0, %s98
    $region4: #{resblock_forward_pallas.5} parent=1 // loop_header_branch
      %19 = sbr.rel (%p17) target = $region8
    $region5: #{resblock_forward_pallas.5} parent=1 // loop_body
      %s21 = ssub.s32 %s16, 1
      %s22 = ssub.s32 %s16, 2
      %s23 = sadd.s32 %s16, 1
      %s24 = ssub.s32 %s16, %s23
      %p25 = scmp.eq.s32.totalorder %s24, 0
      %s27 = sadd.s32 %s26, 1
      %s28 = scalar_select %p25, %s26, %s27
      %p31 = pneg %p25
      %p32 = scmp.eq.s32.totalorder %s16, 1
      %p33 = por %p31, %p32
      %p34 = scmp.ne.s32.totalorder %s26, %s29
      %p35 = scmp.eq.s32.totalorder %s16, 0
      %p36 = por %p34, %p35
      %p37 = scmp.ne.s32.totalorder %s26, %s29
      %p38 = scmp.eq.s32.totalorder %s21, 1
      %p39 = por %p37, %p38
      %p40 = scmp.ne.s32.totalorder %s29, %s30
      %p41 = scmp.eq.s32.totalorder %s21, 0
      %p42 = por %p40, %p41
      %p43 = scmp.ne.s32.totalorder %s29, %s30
      %p44 = scmp.eq.s32.totalorder %s22, 1
      %p45 = por %p43, %p44
      %p47 = scmp.ne.s32.totalorder %s30, %s46
      %p48 = scmp.eq.s32.totalorder %s22, 0
      %p49 = por %p47, %p48
      %s51 = sadd.s32 %s50, 1
      %p54 = scmp.eq.s32.totalorder %s16, 1
      %p55 = scmp.ne.s32.totalorder %s50, %s52
      %p56 = scmp.eq.s32.totalorder %s16, 0
      %p57 = por %p55, %p56
      %p58 = scmp.ne.s32.totalorder %s50, %s52
      %p59 = scmp.eq.s32.totalorder %s21, 1
      %p60 = por %p58, %p59
      %p61 = scmp.ne.s32.totalorder %s52, %s53
      %p62 = scmp.eq.s32.totalorder %s21, 0
      %p63 = por %p61, %p62
      %p64 = scmp.ne.s32.totalorder %s52, %s53
      %p65 = scmp.eq.s32.totalorder %s22, 1
      %p66 = por %p64, %p65
      %p68 = scmp.ne.s32.totalorder %s53, %s67
      %p69 = scmp.eq.s32.totalorder %s22, 0
      %p70 = por %p68, %p69
      %s72 = sadd.s32 %s71, 1
      %p75 = scmp.eq.s32.totalorder %s16, 1
      %p76 = scmp.ne.s32.totalorder %s71, %s73
      %p77 = scmp.eq.s32.totalorder %s16, 0
      %p78 = por %p76, %p77
      %p79 = scmp.ne.s32.totalorder %s71, %s73
      %p80 = scmp.eq.s32.totalorder %s21, 1
      %p81 = por %p79, %p80
      %p82 = scmp.ne.s32.totalorder %s73, %s74
      %p83 = scmp.eq.s32.totalorder %s21, 0
      %p84 = por %p82, %p83
      %p85 = scmp.ne.s32.totalorder %s73, %s74
      %p86 = scmp.eq.s32.totalorder %s22, 1
      %p87 = por %p85, %p86
      %p89 = scmp.ne.s32.totalorder %s74, %s88
      %p90 = scmp.eq.s32.totalorder %s22, 0
      %p91 = por %p89, %p90
      %s92 = ssub.s32 %s16, %s23
      %p93 = scmp.eq.s32.totalorder %s92, 0
      %s95 = sadd.s32 %s94, 1
      %s96 = scalar_select %p93, %s94, %s95
      %p99 = pneg %p93
      %p100 = scmp.eq.s32.totalorder %s16, 1
      %p101 = por %p99, %p100
      %p102 = scmp.ne.s32.totalorder %s94, %s97
      %p103 = scmp.eq.s32.totalorder %s16, 0
      %p104 = por %p102, %p103
      %p105 = scmp.ne.s32.totalorder %s94, %s97
      %p106 = scmp.eq.s32.totalorder %s21, 1
      %p107 = por %p105, %p106
      %p108 = scmp.ne.s32.totalorder %s97, %s98
      %p109 = scmp.eq.s32.totalorder %s21, 0
      %p110 = por %p108, %p109
      %p111 = scmp.ne.s32.totalorder %s97, %s98
      %p112 = scmp.eq.s32.totalorder %s22, 1
      %p113 = por %p111, %p112
      %p115 = scmp.ne.s32.totalorder %s98, %s114
      %p116 = scmp.eq.s32.totalorder %s22, 0
      %p117 = por %p115, %p116
      %p118 = scmp.le.s32.totalorder 1, %s16
      %p119 = scmp.lt.s32.totalorder %s16, 3
      %p120 = pnand %p118, %p119
      %p121 = pneg %p120
      // Predicated region
      $region9: #{resblock_forward_pallas.5} parent=5 // pred_check
        _
      $region10: #{resblock_forward_pallas.5} parent=5 // pred_check_branch
        %123 = sbr.rel (%p120) target = $region12
      $region11: #{resblock_forward_pallas.5} parent=5 // pred_region
        %s124 = ssub.s32 %s16, 1
        // Predicated region
        $region13: #{resblock_forward_pallas.5} parent=11 // pred_check
          %p125 = pneg %p63
        $region14: #{resblock_forward_pallas.5} parent=11 // pred_check_branch
          %127 = sbr.rel (%p125) target = $region16
        $region15: #{resblock_forward_pallas.5} parent=11 // pred_region
          %s129 = ssub.s32 16, 16
          %130 = vsyncadd [#allocation6], %s129
          %s132 = sshll.u32 [#allocation5], 4
          %s133 = int_to_ptr.vmem [resolvable:$true] %s132
          %135 = dma.hbm_to_vmem [thread:$0]  %s1, 16, %s133, [#allocation6]
        $region16: #{resblock_forward_pallas.5} parent=11 // pred_fallthru
          _
        // Predicated region
        $region17: #{resblock_forward_pallas.5} parent=11 // pred_check
          %p136 = pneg %p84
        $region18: #{resblock_forward_pallas.5} parent=11 // pred_check_branch
          %138 = sbr.rel (%p136) target = $region20
        $region19: #{resblock_forward_pallas.5} parent=11 // pred_region
          %s140 = ssub.s32 16, 16
          %141 = vsyncadd [#allocation6], %s140
          %s143 = sshll.u32 [#allocation7], 4
          %s144 = int_to_ptr.vmem [resolvable:$true] %s143
          %146 = dma.hbm_to_vmem [thread:$0]  %s2, 16, %s144, [#allocation6]
        $region20: #{resblock_forward_pallas.5} parent=11 // pred_fallthru
          _
      $region12: #{resblock_forward_pallas.5} parent=5 // pred_fallthru
        _
      %p147 = scmp.lt.s32.totalorder %s16, 2
      // Predicated region
      $region21: #{resblock_forward_pallas.5} parent=5 // pred_check
        %p148 = pneg %p147
      $region22: #{resblock_forward_pallas.5} parent=5 // pred_check_branch
        %150 = sbr.rel (%p148) target = $region24
      $region23: #{resblock_forward_pallas.5} parent=5 // pred_region
        // Predicated region
        $region25: #{resblock_forward_pallas.5} parent=23 // pred_check
          %p151 = pneg %p36
        $region26: #{resblock_forward_pallas.5} parent=23 // pred_check_branch
          %153 = sbr.rel (%p151) target = $region28
        $region27: #{resblock_forward_pallas.5} parent=23 // pred_region
          %s154 = sand.u32 %s26, 1
          %s155 = scalar_lea.sflag [#allocation3], %s154
          %s156 = sand.u32 %s26, 1
          %s157 = smul.addr %s156, 256
          %s158 = scalar_lea.vmem [#allocation2], %s157
          %s160 = ssub.s32 4096, 4096
          %161 = vsyncadd %s155, %s160
          %s162 = smul.addr %s16, 32
          %s163 = smul.addr %s162, 128
          %s164 = scalar_lea.hbm %s0, %s163
          %s165 = sshll.u32 %s158, 4
          %s166 = int_to_ptr.vmem [resolvable:$true] %s165
          %171 = dma.hbm_to_vmem [thread:$0]  %s164, 4096, %s166, %s155, 128, 128, 8
        $region28: #{resblock_forward_pallas.5} parent=23 // pred_fallthru
          _
      $region24: #{resblock_forward_pallas.5} parent=5 // pred_fallthru
        _
      %p172 = scmp.le.s32.totalorder 1, %s16
      %p173 = scmp.lt.s32.totalorder %s16, 3
      %p174 = pnand %p172, %p173
      %p175 = pneg %p174
      // Predicated region
      $region29: #{resblock_forward_pallas.5} parent=5 // pred_check
        _
      $region30: #{resblock_forward_pallas.5} parent=5 // pred_check_branch
        %177 = sbr.rel (%p174) target = $region32
      $region31: #{resblock_forward_pallas.5} parent=5 // pred_region
        %s178 = ssub.s32 %s16, 1
        %s179 = sand.u32 %s29, 1
        %s180 = scalar_lea.sflag [#allocation3], %s179
        %s181 = sand.u32 %s29, 1
        %s182 = smul.addr %s181, 256
        %s183 = scalar_lea.vmem [#allocation2], %s182
        // Predicated region
        $region33: #{resblock_forward_pallas.5} parent=31 // pred_check
          %p184 = pneg %p42
        $region34: #{resblock_forward_pallas.5} parent=31 // pred_check_branch
          %186 = sbr.rel (%p184) target = $region36
        $region35: #{resblock_forward_pallas.5} parent=31 // pred_region
          %187 = dma.done %s180, 4096
        $region36: #{resblock_forward_pallas.5} parent=31 // pred_fallthru
          _
        // Predicated region
        $region37: #{resblock_forward_pallas.5} parent=31 // pred_check
          %p188 = pneg %p63
        $region38: #{resblock_forward_pallas.5} parent=31 // pred_check_branch
          %190 = sbr.rel (%p188) target = $region40
        $region39: #{resblock_forward_pallas.5} parent=31 // pred_region
          %191 = dma.done [#allocation6], 16
        $region40: #{resblock_forward_pallas.5} parent=31 // pred_fallthru
          _
        // Predicated region
        $region41: #{resblock_forward_pallas.5} parent=31 // pred_check
          %p192 = pneg %p84
        $region42: #{resblock_forward_pallas.5} parent=31 // pred_check_branch
          %194 = sbr.rel (%p192) target = $region44
        $region43: #{resblock_forward_pallas.5} parent=31 // pred_region
          %195 = dma.done [#allocation6], 16
        $region44: #{resblock_forward_pallas.5} parent=31 // pred_fallthru
          _
        %s196 = sand.u32 %s29, 1
        %s197 = scalar_lea.sflag [#allocation3], %s196
        %s198 = sand.u32 %s29, 1
        %s199 = smul.addr %s198, 256
        %s200 = scalar_lea.vmem [#allocation2], %s199
        %p201 = pneg %p42
        %p202 = pneg %p39
        %p203 = pneg %p63
        %p204 = pneg %p60
        %p205 = pneg %p84
        %p206 = pneg %p81
        %p207 = pneg %p110
        %p208 = pneg %p107
        %s209 = sand.u32 %s97, 1
        %s210 = scalar_lea.sflag [#allocation4], %s209
        %s211 = sand.u32 %s97, 1
        %s212 = smul.addr %s211, 256
        %s213 = scalar_lea.vmem [#allocation8], %s212
        %v214 = vld [vmem:[%s183] sm:$0xff]
        %v215 = vld [vmem:[%s183 + $0x8] sm:$0xff]
        %v216 = vld [vmem:[%s183 + $0x10] sm:$0xff]
        %v217 = vld [vmem:[%s183 + $0x18] sm:$0xff]
        %v218 = vld [vmem:[%s183 + $0x20] sm:$0xff]
        %v219 = vld [vmem:[%s183 + $0x28] sm:$0xff]
        %v220 = vld [vmem:[%s183 + $0x30] sm:$0xff]
        %v221 = vld [vmem:[%s183 + $0x38] sm:$0xff]
        %v222 = vld [vmem:[%s183 + $0x40] sm:$0xff]
        %v223 = vld [vmem:[%s183 + $0x48] sm:$0xff]
        %v224 = vld [vmem:[%s183 + $0x50] sm:$0xff]
        %v225 = vld [vmem:[%s183 + $0x58] sm:$0xff]
        %v226 = vld [vmem:[%s183 + $0x60] sm:$0xff]
        %v227 = vld [vmem:[%s183 + $0x68] sm:$0xff]
        %v228 = vld [vmem:[%s183 + $0x70] sm:$0xff]
        %v229 = vld [vmem:[%s183 + $0x78] sm:$0xff]
        %v230 = vld [vmem:[%s183 + $0x80] sm:$0xff]
        %v231 = vld [vmem:[%s183 + $0x88] sm:$0xff]
        %v232 = vld [vmem:[%s183 + $0x90] sm:$0xff]
        %v233 = vld [vmem:[%s183 + $0x98] sm:$0xff]
        %v234 = vld [vmem:[%s183 + $0xa0] sm:$0xff]
        %v235 = vld [vmem:[%s183 + $0xa8] sm:$0xff]
        %v236 = vld [vmem:[%s183 + $0xb0] sm:$0xff]
        %v237 = vld [vmem:[%s183 + $0xb8] sm:$0xff]
        %v238 = vld [vmem:[%s183 + $0xc0] sm:$0xff]
        %v239 = vld [vmem:[%s183 + $0xc8] sm:$0xff]
        %v240 = vld [vmem:[%s183 + $0xd0] sm:$0xff]
        %v241 = vld [vmem:[%s183 + $0xd8] sm:$0xff]
        %v242 = vld [vmem:[%s183 + $0xe0] sm:$0xff]
        %v243 = vld [vmem:[%s183 + $0xe8] sm:$0xff]
        %v244 = vld [vmem:[%s183 + $0xf0] sm:$0xff]
        %v245 = vld [vmem:[%s183 + $0xf8] sm:$0xff]
        %v246 = vld [vmem:[#allocation5] sm:$0x1]
        %v248 = vlaneseq
        %v249 = vshrl.u32 %v248, 7
        %v250 = vsub.s32 0, %v249
        %v251 = vrot.slane %v246, %v250
        %v253 = vmul.f32 %v214, %v251
        %v254 = vmul.f32 %v215, %v251
        %v255 = vmul.f32 %v216, %v251
        %v256 = vmul.f32 %v217, %v251
        %v257 = vmul.f32 %v218, %v251
        %v258 = vmul.f32 %v219, %v251
        %v259 = vmul.f32 %v220, %v251
        %v260 = vmul.f32 %v221, %v251
        %v261 = vmul.f32 %v222, %v251
        %v262 = vmul.f32 %v223, %v251
        %v263 = vmul.f32 %v224, %v251
        %v264 = vmul.f32 %v225, %v251
        %v265 = vmul.f32 %v226, %v251
        %v266 = vmul.f32 %v227, %v251
        %v267 = vmul.f32 %v228, %v251
        %v268 = vmul.f32 %v229, %v251
        %v269 = vmul.f32 %v230, %v251
        %v270 = vmul.f32 %v231, %v251
        %v271 = vmul.f32 %v232, %v251
        %v272 = vmul.f32 %v233, %v251
        %v273 = vmul.f32 %v234, %v251
        %v274 = vmul.f32 %v235, %v251
        %v275 = vmul.f32 %v236, %v251
        %v276 = vmul.f32 %v237, %v251
        %v277 = vmul.f32 %v238, %v251
        %v278 = vmul.f32 %v239, %v251
        %v279 = vmul.f32 %v240, %v251
        %v280 = vmul.f32 %v241, %v251
        %v281 = vmul.f32 %v242, %v251
        %v282 = vmul.f32 %v243, %v251
        %v283 = vmul.f32 %v244, %v251
        %v284 = vmul.f32 %v245, %v251
        %v285 = vld [vmem:[#allocation7] sm:$0x1]
        %v287 = vlaneseq
        %v288 = vshrl.u32 %v287, 7
        %v289 = vsub.s32 0, %v288
        %v290 = vrot.slane %v285, %v289
        %v292 = vadd.f32 %v253, %v290
        %v293 = vadd.f32 %v254, %v290
        %v294 = vadd.f32 %v255, %v290
        %v295 = vadd.f32 %v256, %v290
        %v296 = vadd.f32 %v257, %v290
        %v297 = vadd.f32 %v258, %v290
        %v298 = vadd.f32 %v259, %v290
        %v299 = vadd.f32 %v260, %v290
        %v300 = vadd.f32 %v261, %v290
        %v301 = vadd.f32 %v262, %v290
        %v302 = vadd.f32 %v263, %v290
        %v303 = vadd.f32 %v264, %v290
        %v304 = vadd.f32 %v265, %v290
        %v305 = vadd.f32 %v266, %v290
        %v306 = vadd.f32 %v267, %v290
        %v307 = vadd.f32 %v268, %v290
        %v308 = vadd.f32 %v269, %v290
        %v309 = vadd.f32 %v270, %v290
        %v310 = vadd.f32 %v271, %v290
        %v311 = vadd.f32 %v272, %v290
        %v312 = vadd.f32 %v273, %v290
        %v313 = vadd.f32 %v274, %v290
        %v314 = vadd.f32 %v275, %v290
        %v315 = vadd.f32 %v276, %v290
        %v316 = vadd.f32 %v277, %v290
        %v317 = vadd.f32 %v278, %v290
        %v318 = vadd.f32 %v279, %v290
        %v319 = vadd.f32 %v280, %v290
        %v320 = vadd.f32 %v281, %v290
        %v321 = vadd.f32 %v282, %v290
        %v322 = vadd.f32 %v283, %v290
        %v323 = vadd.f32 %v284, %v290
        %v324 = vmax.f32 %v292, 0.0
        %v325 = vmax.f32 %v293, 0.0
        %v326 = vmax.f32 %v294, 0.0
        %v327 = vmax.f32 %v295, 0.0
        %v328 = vmax.f32 %v296, 0.0
        %v329 = vmax.f32 %v297, 0.0
        %v330 = vmax.f32 %v298, 0.0
        %v331 = vmax.f32 %v299, 0.0
        %v332 = vmax.f32 %v300, 0.0
        %v333 = vmax.f32 %v301, 0.0
        %v334 = vmax.f32 %v302, 0.0
        %v335 = vmax.f32 %v303, 0.0
        %v336 = vmax.f32 %v304, 0.0
        %v337 = vmax.f32 %v305, 0.0
        %v338 = vmax.f32 %v306, 0.0
        %v339 = vmax.f32 %v307, 0.0
        %v340 = vmax.f32 %v308, 0.0
        %v341 = vmax.f32 %v309, 0.0
        %v342 = vmax.f32 %v310, 0.0
        %v343 = vmax.f32 %v311, 0.0
        %v344 = vmax.f32 %v312, 0.0
        %v345 = vmax.f32 %v313, 0.0
        %v346 = vmax.f32 %v314, 0.0
        %v347 = vmax.f32 %v315, 0.0
        %v348 = vmax.f32 %v316, 0.0
        %v349 = vmax.f32 %v317, 0.0
        %v350 = vmax.f32 %v318, 0.0
        %v351 = vmax.f32 %v319, 0.0
        %v352 = vmax.f32 %v320, 0.0
        %v353 = vmax.f32 %v321, 0.0
        %v354 = vmax.f32 %v322, 0.0
        %v355 = vmax.f32 %v323, 0.0
        %vm356 = vcmask 31744
        %357 = vst.msk [vmem:[%s213] sm:$0xff] %vm356, %v324
        %358 = vst.msk [vmem:[%s213 + $0x8] sm:$0xff] %vm356, %v325
        %359 = vst.msk [vmem:[%s213 + $0x10] sm:$0xff] %vm356, %v326
        %360 = vst.msk [vmem:[%s213 + $0x18] sm:$0xff] %vm356, %v327
        %361 = vst.msk [vmem:[%s213 + $0x20] sm:$0xff] %vm356, %v328
        %362 = vst.msk [vmem:[%s213 + $0x28] sm:$0xff] %vm356, %v329
        %363 = vst.msk [vmem:[%s213 + $0x30] sm:$0xff] %vm356, %v330
        %364 = vst.msk [vmem:[%s213 + $0x38] sm:$0xff] %vm356, %v331
        %365 = vst.msk [vmem:[%s213 + $0x40] sm:$0xff] %vm356, %v332
        %366 = vst.msk [vmem:[%s213 + $0x48] sm:$0xff] %vm356, %v333
        %367 = vst.msk [vmem:[%s213 + $0x50] sm:$0xff] %vm356, %v334
        %368 = vst.msk [vmem:[%s213 + $0x58] sm:$0xff] %vm356, %v335
        %369 = vst.msk [vmem:[%s213 + $0x60] sm:$0xff] %vm356, %v336
        %370 = vst.msk [vmem:[%s213 + $0x68] sm:$0xff] %vm356, %v337
        %371 = vst.msk [vmem:[%s213 + $0x70] sm:$0xff] %vm356, %v338
        %372 = vst.msk [vmem:[%s213 + $0x78] sm:$0xff] %vm356, %v339
        %373 = vst.msk [vmem:[%s213 + $0x80] sm:$0xff] %vm356, %v340
        %374 = vst.msk [vmem:[%s213 + $0x88] sm:$0xff] %vm356, %v341
        %375 = vst.msk [vmem:[%s213 + $0x90] sm:$0xff] %vm356, %v342
        %376 = vst.msk [vmem:[%s213 + $0x98] sm:$0xff] %vm356, %v343
        %377 = vst.msk [vmem:[%s213 + $0xa0] sm:$0xff] %vm356, %v344
        %378 = vst.msk [vmem:[%s213 + $0xa8] sm:$0xff] %vm356, %v345
        %379 = vst.msk [vmem:[%s213 + $0xb0] sm:$0xff] %vm356, %v346
        %380 = vst.msk [vmem:[%s213 + $0xb8] sm:$0xff] %vm356, %v347
        %381 = vst.msk [vmem:[%s213 + $0xc0] sm:$0xff] %vm356, %v348
        %382 = vst.msk [vmem:[%s213 + $0xc8] sm:$0xff] %vm356, %v349
        %383 = vst.msk [vmem:[%s213 + $0xd0] sm:$0xff] %vm356, %v350
        %384 = vst.msk [vmem:[%s213 + $0xd8] sm:$0xff] %vm356, %v351
        %385 = vst.msk [vmem:[%s213 + $0xe0] sm:$0xff] %vm356, %v352
        %386 = vst.msk [vmem:[%s213 + $0xe8] sm:$0xff] %vm356, %v353
        %387 = vst.msk [vmem:[%s213 + $0xf0] sm:$0xff] %vm356, %v354
        %388 = vst.msk [vmem:[%s213 + $0xf8] sm:$0xff] %vm356, %v355
        %s389 = sand.u32 %s97, 1
        %s390 = scalar_lea.sflag [#allocation4], %s389
        %s391 = sand.u32 %s97, 1
        %s392 = smul.addr %s391, 256
        %s393 = scalar_lea.vmem [#allocation8], %s392
        // Predicated region
        $region45: #{resblock_forward_pallas.5} parent=31 // pred_check
          %p394 = pneg %p107
        $region46: #{resblock_forward_pallas.5} parent=31 // pred_check_branch
          %396 = sbr.rel (%p394) target = $region48
        $region47: #{resblock_forward_pallas.5} parent=31 // pred_region
          %s398 = ssub.s32 4096, 4096
          %399 = vsyncadd %s390, %s398
          %s400 = smul.addr %s21, 32
          %s401 = smul.addr %s400, 128
          %s402 = scalar_lea.hbm %s3, %s401
          %s403 = sshll.u32 %s393, 4
          %s404 = int_to_ptr.vmem [resolvable:$true] %s403
          %409 = dma.vmem_to_hbm [thread:$0]  %s404, 4096, %s402, %s390, 128, 128, 8
        $region48: #{resblock_forward_pallas.5} parent=31 // pred_fallthru
          _
      $region32: #{resblock_forward_pallas.5} parent=5 // pred_fallthru
        _
      %p410 = scmp.le.s32.totalorder 2, %s16
      // Predicated region
      $region49: #{resblock_forward_pallas.5} parent=5 // pred_check
        %p411 = pneg %p410
      $region50: #{resblock_forward_pallas.5} parent=5 // pred_check_branch
        %413 = sbr.rel (%p411) target = $region52
      $region51: #{resblock_forward_pallas.5} parent=5 // pred_region
        %s414 = ssub.s32 %s16, 2
        // Predicated region
        $region53: #{resblock_forward_pallas.5} parent=51 // pred_check
          %p415 = pneg %p113
        $region54: #{resblock_forward_pallas.5} parent=51 // pred_check_branch
          %417 = sbr.rel (%p415) target = $region56
        $region55: #{resblock_forward_pallas.5} parent=51 // pred_region
          %s418 = sand.u32 %s98, 1
          %s419 = scalar_lea.sflag [#allocation4], %s418
          %s420 = sand.u32 %s98, 1
          %s421 = smul.addr %s420, 256
          %s422 = scalar_lea.vmem [#allocation8], %s421
          %423 = dma.done %s419, 4096
        $region56: #{resblock_forward_pallas.5} parent=51 // pred_fallthru
          _
      $region52: #{resblock_forward_pallas.5} parent=5 // pred_fallthru
        _
    $region6: #{resblock_forward_pallas.5} parent=1 // loop_footer
      %s20 = sadd.s32 1, %s16
    $region7: #{resblock_forward_pallas.5} parent=1 // loop_footer_branch
      %15 = sbr.rel target = $region3
    $region8: #{resblock_forward_pallas.5} parent=1 // loop_exit
      _
    %424 = vsyncpa [#allocation3], 1
    %s425 = scalar_lea.sflag [#allocation3], 1
    %426 = vsyncpa %s425, 1
    %427 = vsyncpa [#allocation6], 1
    %428 = vsyncpa [#allocation4], 1
    %s429 = scalar_lea.sflag [#allocation4], 1
    %430 = vsyncpa %s429, 1

// kernel: resblock_forward_pallas.7
$region0: #{resblock_forward_pallas.7}
  #allocation0 [shape = 'u32[]', space=smem, size = 0x4, offset = 0x4, fixed_abs, tag = 'smem constant byte address 0x4 - core index']
  #allocation1 [shape = 'u32[144,128]{1,0:T(1,128)}', space=vmem, size = 0x12000, scoped, tag = 'internal scratch']
  %s0 = inlined_call_operand.hbm [shape: f32[2,256,128], index: 0, kind: input, shape index: {}]
  %s1 = inlined_call_operand.hbm [shape: f32[1,128], index: 1, kind: input, shape index: {}]
  %s2 = inlined_call_operand.hbm [shape: f32[1,128], index: 2, kind: input, shape index: {}]
  %s3 = inlined_call_operand.hbm [shape: f32[2,256,4], index: 3, kind: input, shape index: {}]
  %s4 = inlined_call_operand.hbm [shape: f32[2,256,4], index: 4, kind: output, shape index: {}]
  %s5 = sld [smem:[#allocation0]]
  $region65: #{resblock_forward_pallas.7} parent=0
    _
  %s7 = ssub.s32 1, %s5
  %s8 = scalar_select 0, %s7, %s5
  $region1: #{resblock_forward_pallas.7} parent=0
    #allocation2 [shape = 'u8[262144]{0}', space=vmem, size = 0x40000, scoped, tag = 'input window, operand 0']
    #allocation3 [shape = 's32[2]{0}', space=sflag, size = 0x8, scoped, tag = 'scoped memory for resblock_forward_pallas.7']
    #allocation4 [shape = 's32[2]{0}', space=sflag, size = 0x8, scoped, tag = 'scoped memory for resblock_forward_pallas.7']
    #allocation5 [shape = 'u8[512]{0}', space=vmem, size = 0x400, scoped, tag = 'input window, operand 1, single buffered']
    #allocation6 [shape = 's32[1]{0}', space=sflag, size = 0x4, scoped, tag = 'scoped memory for resblock_forward_pallas.7']
    #allocation7 [shape = 'u8[512]{0}', space=vmem, size = 0x400, scoped, tag = 'input window, operand 2, single buffered']
    #allocation8 [shape = 'u8[262144]{0}', space=vmem, size = 0x40000, scoped, tag = 'input window, operand 3']
    #allocation9 [shape = 's32[2]{0}', space=sflag, size = 0x8, scoped, tag = 'scoped memory for resblock_forward_pallas.7']
    #allocation10 [shape = 'u8[262144]{0}', space=vmem, size = 0x40000, scoped, tag = 'output window, operand 0']
    %9 = vsyncpa [#allocation3], 0
    %s10 = scalar_lea.sflag [#allocation3], 1
    %11 = vsyncpa %s10, 0
    %12 = vsyncpa [#allocation6], 0
    %13 = vsyncpa [#allocation9], 0
    %s14 = scalar_lea.sflag [#allocation9], 1
    %15 = vsyncpa %s14, 0
    %16 = vsyncpa [#allocation4], 0
    %s17 = scalar_lea.sflag [#allocation4], 1
    %18 = vsyncpa %s17, 0
    loop: start=0, step=1, limit=4
    $region2: #{resblock_forward_pallas.7} parent=1 // loop_pre_header
      _
    $region3: #{resblock_forward_pallas.7} parent=1 // loop_header
      %s20 = sphi 0, %s24
      %p21 = scmp.ge.s32.totalorder %s20, 4
      %s30 = sphi 0, %s32
      %s33 = sphi 0, %s30
      %s34 = sphi 0, %s33
      %s50 = sphi 0, %s34
      %s54 = sphi 0, %s54
      %s56 = sphi 0, %s54
      %s57 = sphi 0, %s56
      %s71 = sphi 0, %s57
      %s75 = sphi 0, %s75
      %s77 = sphi 0, %s75
      %s78 = sphi 0, %s77
      %s92 = sphi 0, %s78
      %s98 = sphi 0, %s100
      %s101 = sphi 0, %s98
      %s102 = sphi 0, %s101
      %s118 = sphi 0, %s102
      %s124 = sphi 0, %s126
      %s127 = sphi 0, %s124
      %s128 = sphi 0, %s127
      %s144 = sphi 0, %s128
    $region4: #{resblock_forward_pallas.7} parent=1 // loop_header_branch
      %23 = sbr.rel (%p21) target = $region8
    $region5: #{resblock_forward_pallas.7} parent=1 // loop_body
      %s25 = ssub.s32 %s20, 1
      %s26 = ssub.s32 %s20, 2
      %s27 = sadd.s32 %s20, 1
      %s28 = ssub.s32 %s20, %s27
      %p29 = scmp.eq.s32.totalorder %s28, 0
      %s31 = sadd.s32 %s30, 1
      %s32 = scalar_select %p29, %s30, %s31
      %p35 = pneg %p29
      %p36 = scmp.eq.s32.totalorder %s20, 1
      %p37 = por %p35, %p36
      %p38 = scmp.ne.s32.totalorder %s30, %s33
      %p39 = scmp.eq.s32.totalorder %s20, 0
      %p40 = por %p38, %p39
      %p41 = scmp.ne.s32.totalorder %s30, %s33
      %p42 = scmp.eq.s32.totalorder %s25, 1
      %p43 = por %p41, %p42
      %p44 = scmp.ne.s32.totalorder %s33, %s34
      %p45 = scmp.eq.s32.totalorder %s25, 0
      %p46 = por %p44, %p45
      %p47 = scmp.ne.s32.totalorder %s33, %s34
      %p48 = scmp.eq.s32.totalorder %s26, 1
      %p49 = por %p47, %p48
      %p51 = scmp.ne.s32.totalorder %s34, %s50
      %p52 = scmp.eq.s32.totalorder %s26, 0
      %p53 = por %p51, %p52
      %s55 = sadd.s32 %s54, 1
      %p58 = scmp.eq.s32.totalorder %s20, 1
      %p59 = scmp.ne.s32.totalorder %s54, %s56
      %p60 = scmp.eq.s32.totalorder %s20, 0
      %p61 = por %p59, %p60
      %p62 = scmp.ne.s32.totalorder %s54, %s56
      %p63 = scmp.eq.s32.totalorder %s25, 1
      %p64 = por %p62, %p63
      %p65 = scmp.ne.s32.totalorder %s56, %s57
      %p66 = scmp.eq.s32.totalorder %s25, 0
      %p67 = por %p65, %p66
      %p68 = scmp.ne.s32.totalorder %s56, %s57
      %p69 = scmp.eq.s32.totalorder %s26, 1
      %p70 = por %p68, %p69
      %p72 = scmp.ne.s32.totalorder %s57, %s71
      %p73 = scmp.eq.s32.totalorder %s26, 0
      %p74 = por %p72, %p73
      %s76 = sadd.s32 %s75, 1
      %p79 = scmp.eq.s32.totalorder %s20, 1
      %p80 = scmp.ne.s32.totalorder %s75, %s77
      %p81 = scmp.eq.s32.totalorder %s20, 0
      %p82 = por %p80, %p81
      %p83 = scmp.ne.s32.totalorder %s75, %s77
      %p84 = scmp.eq.s32.totalorder %s25, 1
      %p85 = por %p83, %p84
      %p86 = scmp.ne.s32.totalorder %s77, %s78
      %p87 = scmp.eq.s32.totalorder %s25, 0
      %p88 = por %p86, %p87
      %p89 = scmp.ne.s32.totalorder %s77, %s78
      %p90 = scmp.eq.s32.totalorder %s26, 1
      %p91 = por %p89, %p90
      %p93 = scmp.ne.s32.totalorder %s78, %s92
      %p94 = scmp.eq.s32.totalorder %s26, 0
      %p95 = por %p93, %p94
      %s96 = ssub.s32 %s20, %s27
      %p97 = scmp.eq.s32.totalorder %s96, 0
      %s99 = sadd.s32 %s98, 1
      %s100 = scalar_select %p97, %s98, %s99
      %p103 = pneg %p97
      %p104 = scmp.eq.s32.totalorder %s20, 1
      %p105 = por %p103, %p104
      %p106 = scmp.ne.s32.totalorder %s98, %s101
      %p107 = scmp.eq.s32.totalorder %s20, 0
      %p108 = por %p106, %p107
      %p109 = scmp.ne.s32.totalorder %s98, %s101
      %p110 = scmp.eq.s32.totalorder %s25, 1
      %p111 = por %p109, %p110
      %p112 = scmp.ne.s32.totalorder %s101, %s102
      %p113 = scmp.eq.s32.totalorder %s25, 0
      %p114 = por %p112, %p113
      %p115 = scmp.ne.s32.totalorder %s101, %s102
      %p116 = scmp.eq.s32.totalorder %s26, 1
      %p117 = por %p115, %p116
      %p119 = scmp.ne.s32.totalorder %s102, %s118
      %p120 = scmp.eq.s32.totalorder %s26, 0
      %p121 = por %p119, %p120
      %s122 = ssub.s32 %s20, %s27
      %p123 = scmp.eq.s32.totalorder %s122, 0
      %s125 = sadd.s32 %s124, 1
      %s126 = scalar_select %p123, %s124, %s125
      %p129 = pneg %p123
      %p130 = scmp.eq.s32.totalorder %s20, 1
      %p131 = por %p129, %p130
      %p132 = scmp.ne.s32.totalorder %s124, %s127
      %p133 = scmp.eq.s32.totalorder %s20, 0
      %p134 = por %p132, %p133
      %p135 = scmp.ne.s32.totalorder %s124, %s127
      %p136 = scmp.eq.s32.totalorder %s25, 1
      %p137 = por %p135, %p136
      %p138 = scmp.ne.s32.totalorder %s127, %s128
      %p139 = scmp.eq.s32.totalorder %s25, 0
      %p140 = por %p138, %p139
      %p141 = scmp.ne.s32.totalorder %s127, %s128
      %p142 = scmp.eq.s32.totalorder %s26, 1
      %p143 = por %p141, %p142
      %p145 = scmp.ne.s32.totalorder %s128, %s144
      %p146 = scmp.eq.s32.totalorder %s26, 0
      %p147 = por %p145, %p146
      %p148 = scmp.le.s32.totalorder 1, %s20
      %p149 = scmp.lt.s32.totalorder %s20, 3
      %p150 = pnand %p148, %p149
      %p151 = pneg %p150
      // Predicated region
      $region9: #{resblock_forward_pallas.7} parent=5 // pred_check
        _
      $region10: #{resblock_forward_pallas.7} parent=5 // pred_check_branch
        %153 = sbr.rel (%p150) target = $region12
      $region11: #{resblock_forward_pallas.7} parent=5 // pred_region
        %s154 = ssub.s32 %s20, 1
        // Predicated region
        $region13: #{resblock_forward_pallas.7} parent=11 // pred_check
          %p155 = pneg %p67
        $region14: #{resblock_forward_pallas.7} parent=11 // pred_check_branch
          %157 = sbr.rel (%p155) target = $region16
        $region15: #{resblock_forward_pallas.7} parent=11 // pred_region
          %s159 = ssub.s32 16, 16
          %160 = vsyncadd [#allocation6], %s159
          %s162 = sshll.u32 [#allocation5], 4
          %s163 = int_to_ptr.vmem [resolvable:$true] %s162
          %165 = dma.hbm_to_vmem [thread:$0]  %s1, 16, %s163, [#allocation6]
        $region16: #{resblock_forward_pallas.7} parent=11 // pred_fallthru
          _
        // Predicated region
        $region17: #{resblock_forward_pallas.7} parent=11 // pred_check
          %p166 = pneg %p88
        $region18: #{resblock_forward_pallas.7} parent=11 // pred_check_branch
          %168 = sbr.rel (%p166) target = $region20
        $region19: #{resblock_forward_pallas.7} parent=11 // pred_region
          %s170 = ssub.s32 16, 16
          %171 = vsyncadd [#allocation6], %s170
          %s173 = sshll.u32 [#allocation7], 4
          %s174 = int_to_ptr.vmem [resolvable:$true] %s173
          %176 = dma.hbm_to_vmem [thread:$0]  %s2, 16, %s174, [#allocation6]
        $region20: #{resblock_forward_pallas.7} parent=11 // pred_fallthru
          _
      $region12: #{resblock_forward_pallas.7} parent=5 // pred_fallthru
        _
      %p177 = scmp.lt.s32.totalorder %s20, 2
      // Predicated region
      $region21: #{resblock_forward_pallas.7} parent=5 // pred_check
        %p178 = pneg %p177
      $region22: #{resblock_forward_pallas.7} parent=5 // pred_check_branch
        %180 = sbr.rel (%p178) target = $region24
      $region23: #{resblock_forward_pallas.7} parent=5 // pred_region
        // Predicated region
        $region25: #{resblock_forward_pallas.7} parent=23 // pred_check
          %p181 = pneg %p40
        $region26: #{resblock_forward_pallas.7} parent=23 // pred_check_branch
          %183 = sbr.rel (%p181) target = $region28
        $region27: #{resblock_forward_pallas.7} parent=23 // pred_region
          %s184 = sand.u32 %s30, 1
          %s185 = scalar_lea.sflag [#allocation3], %s184
          %s186 = sand.u32 %s30, 1
          %s187 = smul.addr %s186, 256
          %s188 = scalar_lea.vmem [#allocation2], %s187
          %s190 = ssub.s32 4096, 4096
          %191 = vsyncadd %s185, %s190
          %s192 = smul.addr %s20, 32
          %s193 = smul.addr %s192, 128
          %s194 = scalar_lea.hbm %s0, %s193
          %s195 = sshll.u32 %s188, 4
          %s196 = int_to_ptr.vmem [resolvable:$true] %s195
          %201 = dma.hbm_to_vmem [thread:$0]  %s194, 4096, %s196, %s185, 128, 128, 8
        $region28: #{resblock_forward_pallas.7} parent=23 // pred_fallthru
          _
        // Predicated region
        $region29: #{resblock_forward_pallas.7} parent=23 // pred_check
          %p202 = pneg %p108
        $region30: #{resblock_forward_pallas.7} parent=23 // pred_check_branch
          %204 = sbr.rel (%p202) target = $region32
        $region31: #{resblock_forward_pallas.7} parent=23 // pred_region
          %s205 = sand.u32 %s98, 1
          %s206 = scalar_lea.sflag [#allocation9], %s205
          %s207 = sand.u32 %s98, 1
          %s208 = smul.addr %s207, 256
          %s209 = scalar_lea.vmem [#allocation8], %s208
          %s211 = ssub.s32 4096, 4096
          %212 = vsyncadd %s206, %s211
          %s213 = smul.addr %s20, 32
          %s214 = smul.addr %s213, 128
          %s215 = scalar_lea.hbm %s3, %s214
          %s216 = sshll.u32 %s209, 4
          %s217 = int_to_ptr.vmem [resolvable:$true] %s216
          %222 = dma.hbm_to_vmem [thread:$0]  %s215, 4096, %s217, %s206, 128, 128, 8
        $region32: #{resblock_forward_pallas.7} parent=23 // pred_fallthru
          _
      $region24: #{resblock_forward_pallas.7} parent=5 // pred_fallthru
        _
      %p223 = scmp.le.s32.totalorder 1, %s20
      %p224 = scmp.lt.s32.totalorder %s20, 3
      %p225 = pnand %p223, %p224
      %p226 = pneg %p225
      // Predicated region
      $region33: #{resblock_forward_pallas.7} parent=5 // pred_check
        _
      $region34: #{resblock_forward_pallas.7} parent=5 // pred_check_branch
        %228 = sbr.rel (%p225) target = $region36
      $region35: #{resblock_forward_pallas.7} parent=5 // pred_region
        %s229 = ssub.s32 %s20, 1
        %s230 = sand.u32 %s33, 1
        %s231 = scalar_lea.sflag [#allocation3], %s230
        %s232 = sand.u32 %s33, 1
        %s233 = smul.addr %s232, 256
        %s234 = scalar_lea.vmem [#allocation2], %s233
        // Predicated region
        $region37: #{resblock_forward_pallas.7} parent=35 // pred_check
          %p235 = pneg %p46
        $region38: #{resblock_forward_pallas.7} parent=35 // pred_check_branch
          %237 = sbr.rel (%p235) target = $region40
        $region39: #{resblock_forward_pallas.7} parent=35 // pred_region
          %238 = dma.done %s231, 4096
        $region40: #{resblock_forward_pallas.7} parent=35 // pred_fallthru
          _
        // Predicated region
        $region41: #{resblock_forward_pallas.7} parent=35 // pred_check
          %p239 = pneg %p67
        $region42: #{resblock_forward_pallas.7} parent=35 // pred_check_branch
          %241 = sbr.rel (%p239) target = $region44
        $region43: #{resblock_forward_pallas.7} parent=35 // pred_region
          %242 = dma.done [#allocation6], 16
        $region44: #{resblock_forward_pallas.7} parent=35 // pred_fallthru
          _
        // Predicated region
        $region45: #{resblock_forward_pallas.7} parent=35 // pred_check
          %p243 = pneg %p88
        $region46: #{resblock_forward_pallas.7} parent=35 // pred_check_branch
          %245 = sbr.rel (%p243) target = $region48
        $region47: #{resblock_forward_pallas.7} parent=35 // pred_region
          %246 = dma.done [#allocation6], 16
        $region48: #{resblock_forward_pallas.7} parent=35 // pred_fallthru
          _
        %s247 = sand.u32 %s101, 1
        %s248 = scalar_lea.sflag [#allocation9], %s247
        %s249 = sand.u32 %s101, 1
        %s250 = smul.addr %s249, 256
        %s251 = scalar_lea.vmem [#allocation8], %s250
        // Predicated region
        $region49: #{resblock_forward_pallas.7} parent=35 // pred_check
          %p252 = pneg %p114
        $region50: #{resblock_forward_pallas.7} parent=35 // pred_check_branch
          %254 = sbr.rel (%p252) target = $region52
        $region51: #{resblock_forward_pallas.7} parent=35 // pred_region
          %255 = dma.done %s248, 4096
        $region52: #{resblock_forward_pallas.7} parent=35 // pred_fallthru
          _
        %s256 = sand.u32 %s33, 1
        %s257 = scalar_lea.sflag [#allocation3], %s256
        %s258 = sand.u32 %s33, 1
        %s259 = smul.addr %s258, 256
        %s260 = scalar_lea.vmem [#allocation2], %s259
        %p261 = pneg %p46
        %p262 = pneg %p43
        %p263 = pneg %p67
        %p264 = pneg %p64
        %p265 = pneg %p88
        %p266 = pneg %p85
        %s267 = sand.u32 %s101, 1
        %s268 = scalar_lea.sflag [#allocation9], %s267
        %s269 = sand.u32 %s101, 1
        %s270 = smul.addr %s269, 256
        %s271 = scalar_lea.vmem [#allocation8], %s270
        %p272 = pneg %p114
        %p273 = pneg %p111
        %p274 = pneg %p140
        %p275 = pneg %p137
        %s276 = sand.u32 %s127, 1
        %s277 = scalar_lea.sflag [#allocation4], %s276
        %s278 = sand.u32 %s127, 1
        %s279 = smul.addr %s278, 256
        %s280 = scalar_lea.vmem [#allocation10], %s279
        %v281 = vld [vmem:[%s234] sm:$0xff]
        %v282 = vld [vmem:[%s234 + $0x8] sm:$0xff]
        %v283 = vld [vmem:[%s234 + $0x10] sm:$0xff]
        %v284 = vld [vmem:[%s234 + $0x18] sm:$0xff]
        %v285 = vld [vmem:[%s234 + $0x20] sm:$0xff]
        %v286 = vld [vmem:[%s234 + $0x28] sm:$0xff]
        %v287 = vld [vmem:[%s234 + $0x30] sm:$0xff]
        %v288 = vld [vmem:[%s234 + $0x38] sm:$0xff]
        %v289 = vld [vmem:[%s234 + $0x40] sm:$0xff]
        %v290 = vld [vmem:[%s234 + $0x48] sm:$0xff]
        %v291 = vld [vmem:[%s234 + $0x50] sm:$0xff]
        %v292 = vld [vmem:[%s234 + $0x58] sm:$0xff]
        %v293 = vld [vmem:[%s234 + $0x60] sm:$0xff]
        %v294 = vld [vmem:[%s234 + $0x68] sm:$0xff]
        %v295 = vld [vmem:[%s234 + $0x70] sm:$0xff]
        %v296 = vld [vmem:[%s234 + $0x78] sm:$0xff]
        %v297 = vld [vmem:[%s234 + $0x80] sm:$0xff]
        %v298 = vld [vmem:[%s234 + $0x88] sm:$0xff]
        %v299 = vld [vmem:[%s234 + $0x90] sm:$0xff]
        %v300 = vld [vmem:[%s234 + $0x98] sm:$0xff]
        %v301 = vld [vmem:[%s234 + $0xa0] sm:$0xff]
        %v302 = vld [vmem:[%s234 + $0xa8] sm:$0xff]
        %v303 = vld [vmem:[%s234 + $0xb0] sm:$0xff]
        %v304 = vld [vmem:[%s234 + $0xb8] sm:$0xff]
        %v305 = vld [vmem:[%s234 + $0xc0] sm:$0xff]
        %v306 = vld [vmem:[%s234 + $0xc8] sm:$0xff]
        %v307 = vld [vmem:[%s234 + $0xd0] sm:$0xff]
        %v308 = vld [vmem:[%s234 + $0xd8] sm:$0xff]
        %v309 = vld [vmem:[%s234 + $0xe0] sm:$0xff]
        %v310 = vld [vmem:[%s234 + $0xe8] sm:$0xff]
        %v311 = vld [vmem:[%s234 + $0xf0] sm:$0xff]
        %v312 = vld [vmem:[%s234 + $0xf8] sm:$0xff]
        %v313 = vld [vmem:[#allocation5] sm:$0x1]
        %v315 = vlaneseq
        %v316 = vshrl.u32 %v315, 7
        %v317 = vsub.s32 0, %v316
        %v318 = vrot.slane %v313, %v317
        %v320 = vmul.f32 %v281, %v318
        %v321 = vmul.f32 %v282, %v318
        %v322 = vmul.f32 %v283, %v318
        %v323 = vmul.f32 %v284, %v318
        %v324 = vmul.f32 %v285, %v318
        %v325 = vmul.f32 %v286, %v318
        %v326 = vmul.f32 %v287, %v318
        %v327 = vmul.f32 %v288, %v318
        %v328 = vmul.f32 %v289, %v318
        %v329 = vmul.f32 %v290, %v318
        %v330 = vmul.f32 %v291, %v318
        %v331 = vmul.f32 %v292, %v318
        %v332 = vmul.f32 %v293, %v318
        %v333 = vmul.f32 %v294, %v318
        %v334 = vmul.f32 %v295, %v318
        %v335 = vmul.f32 %v296, %v318
        %v336 = vmul.f32 %v297, %v318
        %v337 = vmul.f32 %v298, %v318
        %v338 = vmul.f32 %v299, %v318
        %v339 = vmul.f32 %v300, %v318
        %v340 = vmul.f32 %v301, %v318
        %v341 = vmul.f32 %v302, %v318
        %v342 = vmul.f32 %v303, %v318
        %v343 = vmul.f32 %v304, %v318
        %v344 = vmul.f32 %v305, %v318
        %v345 = vmul.f32 %v306, %v318
        %v346 = vmul.f32 %v307, %v318
        %v347 = vmul.f32 %v308, %v318
        %v348 = vmul.f32 %v309, %v318
        %v349 = vmul.f32 %v310, %v318
        %v350 = vmul.f32 %v311, %v318
        %v351 = vmul.f32 %v312, %v318
        %v352 = vld [vmem:[#allocation7] sm:$0x1]
        %v354 = vlaneseq
        %v355 = vshrl.u32 %v354, 7
        %v356 = vsub.s32 0, %v355
        %v357 = vrot.slane %v352, %v356
        %v359 = vadd.f32 %v320, %v357
        %v360 = vadd.f32 %v321, %v357
        %v361 = vadd.f32 %v322, %v357
        %v362 = vadd.f32 %v323, %v357
        %v363 = vadd.f32 %v324, %v357
        %v364 = vadd.f32 %v325, %v357
        %v365 = vadd.f32 %v326, %v357
        %v366 = vadd.f32 %v327, %v357
        %v367 = vadd.f32 %v328, %v357
        %v368 = vadd.f32 %v329, %v357
        %v369 = vadd.f32 %v330, %v357
        %v370 = vadd.f32 %v331, %v357
        %v371 = vadd.f32 %v332, %v357
        %v372 = vadd.f32 %v333, %v357
        %v373 = vadd.f32 %v334, %v357
        %v374 = vadd.f32 %v335, %v357
        %v375 = vadd.f32 %v336, %v357
        %v376 = vadd.f32 %v337, %v357
        %v377 = vadd.f32 %v338, %v357
        %v378 = vadd.f32 %v339, %v357
        %v379 = vadd.f32 %v340, %v357
        %v380 = vadd.f32 %v341, %v357
        %v381 = vadd.f32 %v342, %v357
        %v382 = vadd.f32 %v343, %v357
        %v383 = vadd.f32 %v344, %v357
        %v384 = vadd.f32 %v345, %v357
        %v385 = vadd.f32 %v346, %v357
        %v386 = vadd.f32 %v347, %v357
        %v387 = vadd.f32 %v348, %v357
        %v388 = vadd.f32 %v349, %v357
        %v389 = vadd.f32 %v350, %v357
        %v390 = vadd.f32 %v351, %v357
        %v391 = vmax.f32 %v359, 0.0
        %v392 = vmax.f32 %v360, 0.0
        %v393 = vmax.f32 %v361, 0.0
        %v394 = vmax.f32 %v362, 0.0
        %v395 = vmax.f32 %v363, 0.0
        %v396 = vmax.f32 %v364, 0.0
        %v397 = vmax.f32 %v365, 0.0
        %v398 = vmax.f32 %v366, 0.0
        %v399 = vmax.f32 %v367, 0.0
        %v400 = vmax.f32 %v368, 0.0
        %v401 = vmax.f32 %v369, 0.0
        %v402 = vmax.f32 %v370, 0.0
        %v403 = vmax.f32 %v371, 0.0
        %v404 = vmax.f32 %v372, 0.0
        %v405 = vmax.f32 %v373, 0.0
        %v406 = vmax.f32 %v374, 0.0
        %v407 = vmax.f32 %v375, 0.0
        %v408 = vmax.f32 %v376, 0.0
        %v409 = vmax.f32 %v377, 0.0
        %v410 = vmax.f32 %v378, 0.0
        %v411 = vmax.f32 %v379, 0.0
        %v412 = vmax.f32 %v380, 0.0
        %v413 = vmax.f32 %v381, 0.0
        %v414 = vmax.f32 %v382, 0.0
        %v415 = vmax.f32 %v383, 0.0
        %v416 = vmax.f32 %v384, 0.0
        %v417 = vmax.f32 %v385, 0.0
        %v418 = vmax.f32 %v386, 0.0
        %v419 = vmax.f32 %v387, 0.0
        %v420 = vmax.f32 %v388, 0.0
        %v421 = vmax.f32 %v389, 0.0
        %v422 = vmax.f32 %v390, 0.0
        %v423 = vld [vmem:[%s251] sm:$0xff]
        %v424 = vld [vmem:[%s251 + $0x8] sm:$0xff]
        %v425 = vld [vmem:[%s251 + $0x10] sm:$0xff]
        %v426 = vld [vmem:[%s251 + $0x18] sm:$0xff]
        %v427 = vld [vmem:[%s251 + $0x20] sm:$0xff]
        %v428 = vld [vmem:[%s251 + $0x28] sm:$0xff]
        %v429 = vld [vmem:[%s251 + $0x30] sm:$0xff]
        %v430 = vld [vmem:[%s251 + $0x38] sm:$0xff]
        %v431 = vld [vmem:[%s251 + $0x40] sm:$0xff]
        %v432 = vld [vmem:[%s251 + $0x48] sm:$0xff]
        %v433 = vld [vmem:[%s251 + $0x50] sm:$0xff]
        %v434 = vld [vmem:[%s251 + $0x58] sm:$0xff]
        %v435 = vld [vmem:[%s251 + $0x60] sm:$0xff]
        %v436 = vld [vmem:[%s251 + $0x68] sm:$0xff]
        %v437 = vld [vmem:[%s251 + $0x70] sm:$0xff]
        %v438 = vld [vmem:[%s251 + $0x78] sm:$0xff]
        %v439 = vld [vmem:[%s251 + $0x80] sm:$0xff]
        %v440 = vld [vmem:[%s251 + $0x88] sm:$0xff]
        %v441 = vld [vmem:[%s251 + $0x90] sm:$0xff]
        %v442 = vld [vmem:[%s251 + $0x98] sm:$0xff]
        %v443 = vld [vmem:[%s251 + $0xa0] sm:$0xff]
        %v444 = vld [vmem:[%s251 + $0xa8] sm:$0xff]
        %v445 = vld [vmem:[%s251 + $0xb0] sm:$0xff]
        %v446 = vld [vmem:[%s251 + $0xb8] sm:$0xff]
        %v447 = vld [vmem:[%s251 + $0xc0] sm:$0xff]
        %v448 = vld [vmem:[%s251 + $0xc8] sm:$0xff]
        %v449 = vld [vmem:[%s251 + $0xd0] sm:$0xff]
        %v450 = vld [vmem:[%s251 + $0xd8] sm:$0xff]
        %v451 = vld [vmem:[%s251 + $0xe0] sm:$0xff]
        %v452 = vld [vmem:[%s251 + $0xe8] sm:$0xff]
        %v453 = vld [vmem:[%s251 + $0xf0] sm:$0xff]
        %v454 = vld [vmem:[%s251 + $0xf8] sm:$0xff]
        %v455 = vadd.f32 %v391, %v423
        %v456 = vadd.f32 %v392, %v424
        %v457 = vadd.f32 %v393, %v425
        %v458 = vadd.f32 %v394, %v426
        %v459 = vadd.f32 %v395, %v427
        %v460 = vadd.f32 %v396, %v428
        %v461 = vadd.f32 %v397, %v429
        %v462 = vadd.f32 %v398, %v430
        %v463 = vadd.f32 %v399, %v431
        %v464 = vadd.f32 %v400, %v432
        %v465 = vadd.f32 %v401, %v433
        %v466 = vadd.f32 %v402, %v434
        %v467 = vadd.f32 %v403, %v435
        %v468 = vadd.f32 %v404, %v436
        %v469 = vadd.f32 %v405, %v437
        %v470 = vadd.f32 %v406, %v438
        %v471 = vadd.f32 %v407, %v439
        %v472 = vadd.f32 %v408, %v440
        %v473 = vadd.f32 %v409, %v441
        %v474 = vadd.f32 %v410, %v442
        %v475 = vadd.f32 %v411, %v443
        %v476 = vadd.f32 %v412, %v444
        %v477 = vadd.f32 %v413, %v445
        %v478 = vadd.f32 %v414, %v446
        %v479 = vadd.f32 %v415, %v447
        %v480 = vadd.f32 %v416, %v448
        %v481 = vadd.f32 %v417, %v449
        %v482 = vadd.f32 %v418, %v450
        %v483 = vadd.f32 %v419, %v451
        %v484 = vadd.f32 %v420, %v452
        %v485 = vadd.f32 %v421, %v453
        %v486 = vadd.f32 %v422, %v454
        %v487 = vmax.f32 %v455, 0.0
        %v488 = vmax.f32 %v456, 0.0
        %v489 = vmax.f32 %v457, 0.0
        %v490 = vmax.f32 %v458, 0.0
        %v491 = vmax.f32 %v459, 0.0
        %v492 = vmax.f32 %v460, 0.0
        %v493 = vmax.f32 %v461, 0.0
        %v494 = vmax.f32 %v462, 0.0
        %v495 = vmax.f32 %v463, 0.0
        %v496 = vmax.f32 %v464, 0.0
        %v497 = vmax.f32 %v465, 0.0
        %v498 = vmax.f32 %v466, 0.0
        %v499 = vmax.f32 %v467, 0.0
        %v500 = vmax.f32 %v468, 0.0
        %v501 = vmax.f32 %v469, 0.0
        %v502 = vmax.f32 %v470, 0.0
        %v503 = vmax.f32 %v471, 0.0
        %v504 = vmax.f32 %v472, 0.0
        %v505 = vmax.f32 %v473, 0.0
        %v506 = vmax.f32 %v474, 0.0
        %v507 = vmax.f32 %v475, 0.0
        %v508 = vmax.f32 %v476, 0.0
        %v509 = vmax.f32 %v477, 0.0
        %v510 = vmax.f32 %v478, 0.0
        %v511 = vmax.f32 %v479, 0.0
        %v512 = vmax.f32 %v480, 0.0
        %v513 = vmax.f32 %v481, 0.0
        %v514 = vmax.f32 %v482, 0.0
        %v515 = vmax.f32 %v483, 0.0
        %v516 = vmax.f32 %v484, 0.0
        %v517 = vmax.f32 %v485, 0.0
        %v518 = vmax.f32 %v486, 0.0
        %vm519 = vcmask 31744
        %520 = vst.msk [vmem:[%s280] sm:$0xff] %vm519, %v487
        %521 = vst.msk [vmem:[%s280 + $0x8] sm:$0xff] %vm519, %v488
        %522 = vst.msk [vmem:[%s280 + $0x10] sm:$0xff] %vm519, %v489
        %523 = vst.msk [vmem:[%s280 + $0x18] sm:$0xff] %vm519, %v490
        %524 = vst.msk [vmem:[%s280 + $0x20] sm:$0xff] %vm519, %v491
        %525 = vst.msk [vmem:[%s280 + $0x28] sm:$0xff] %vm519, %v492
        %526 = vst.msk [vmem:[%s280 + $0x30] sm:$0xff] %vm519, %v493
        %527 = vst.msk [vmem:[%s280 + $0x38] sm:$0xff] %vm519, %v494
        %528 = vst.msk [vmem:[%s280 + $0x40] sm:$0xff] %vm519, %v495
        %529 = vst.msk [vmem:[%s280 + $0x48] sm:$0xff] %vm519, %v496
        %530 = vst.msk [vmem:[%s280 + $0x50] sm:$0xff] %vm519, %v497
        %531 = vst.msk [vmem:[%s280 + $0x58] sm:$0xff] %vm519, %v498
        %532 = vst.msk [vmem:[%s280 + $0x60] sm:$0xff] %vm519, %v499
        %533 = vst.msk [vmem:[%s280 + $0x68] sm:$0xff] %vm519, %v500
        %534 = vst.msk [vmem:[%s280 + $0x70] sm:$0xff] %vm519, %v501
        %535 = vst.msk [vmem:[%s280 + $0x78] sm:$0xff] %vm519, %v502
        %536 = vst.msk [vmem:[%s280 + $0x80] sm:$0xff] %vm519, %v503
        %537 = vst.msk [vmem:[%s280 + $0x88] sm:$0xff] %vm519, %v504
        %538 = vst.msk [vmem:[%s280 + $0x90] sm:$0xff] %vm519, %v505
        %539 = vst.msk [vmem:[%s280 + $0x98] sm:$0xff] %vm519, %v506
        %540 = vst.msk [vmem:[%s280 + $0xa0] sm:$0xff] %vm519, %v507
        %541 = vst.msk [vmem:[%s280 + $0xa8] sm:$0xff] %vm519, %v508
        %542 = vst.msk [vmem:[%s280 + $0xb0] sm:$0xff] %vm519, %v509
        %543 = vst.msk [vmem:[%s280 + $0xb8] sm:$0xff] %vm519, %v510
        %544 = vst.msk [vmem:[%s280 + $0xc0] sm:$0xff] %vm519, %v511
        %545 = vst.msk [vmem:[%s280 + $0xc8] sm:$0xff] %vm519, %v512
        %546 = vst.msk [vmem:[%s280 + $0xd0] sm:$0xff] %vm519, %v513
        %547 = vst.msk [vmem:[%s280 + $0xd8] sm:$0xff] %vm519, %v514
        %548 = vst.msk [vmem:[%s280 + $0xe0] sm:$0xff] %vm519, %v515
        %549 = vst.msk [vmem:[%s280 + $0xe8] sm:$0xff] %vm519, %v516
        %550 = vst.msk [vmem:[%s280 + $0xf0] sm:$0xff] %vm519, %v517
        %551 = vst.msk [vmem:[%s280 + $0xf8] sm:$0xff] %vm519, %v518
        %s552 = sand.u32 %s127, 1
        %s553 = scalar_lea.sflag [#allocation4], %s552
        %s554 = sand.u32 %s127, 1
        %s555 = smul.addr %s554, 256
        %s556 = scalar_lea.vmem [#allocation10], %s555
        // Predicated region
        $region53: #{resblock_forward_pallas.7} parent=35 // pred_check
          %p557 = pneg %p137
        $region54: #{resblock_forward_pallas.7} parent=35 // pred_check_branch
          %559 = sbr.rel (%p557) target = $region56
        $region55: #{resblock_forward_pallas.7} parent=35 // pred_region
          %s561 = ssub.s32 4096, 4096
          %562 = vsyncadd %s553, %s561
          %s563 = smul.addr %s25, 32
          %s564 = smul.addr %s563, 128
          %s565 = scalar_lea.hbm %s4, %s564
          %s566 = sshll.u32 %s556, 4
          %s567 = int_to_ptr.vmem [resolvable:$true] %s566
          %572 = dma.vmem_to_hbm [thread:$0]  %s567, 4096, %s565, %s553, 128, 128, 8
        $region56: #{resblock_forward_pallas.7} parent=35 // pred_fallthru
          _
      $region36: #{resblock_forward_pallas.7} parent=5 // pred_fallthru
        _
      %p573 = scmp.le.s32.totalorder 2, %s20
      // Predicated region
      $region57: #{resblock_forward_pallas.7} parent=5 // pred_check
        %p574 = pneg %p573
      $region58: #{resblock_forward_pallas.7} parent=5 // pred_check_branch
        %576 = sbr.rel (%p574) target = $region60
      $region59: #{resblock_forward_pallas.7} parent=5 // pred_region
        %s577 = ssub.s32 %s20, 2
        // Predicated region
        $region61: #{resblock_forward_pallas.7} parent=59 // pred_check
          %p578 = pneg %p143
        $region62: #{resblock_forward_pallas.7} parent=59 // pred_check_branch
          %580 = sbr.rel (%p578) target = $region64
        $region63: #{resblock_forward_pallas.7} parent=59 // pred_region
          %s581 = sand.u32 %s128, 1
          %s582 = scalar_lea.sflag [#allocation4], %s581
          %s583 = sand.u32 %s128, 1
          %s584 = smul.addr %s583, 256
          %s585 = scalar_lea.vmem [#allocation10], %s584
          %586 = dma.done %s582, 4096
        $region64: #{resblock_forward_pallas.7} parent=59 // pred_fallthru
          _
      $region60: #{resblock_forward_pallas.7} parent=5 // pred_fallthru
        _
    $region6: #{resblock_forward_pallas.7} parent=1 // loop_footer
      %s24 = sadd.s32 1, %s20
    $region7: #{resblock_forward_pallas.7} parent=1 // loop_footer_branch
      %19 = sbr.rel target = $region3
    $region8: #{resblock_forward_pallas.7} parent=1 // loop_exit
      _
    %587 = vsyncpa [#allocation3], 1
    %s588 = scalar_lea.sflag [#allocation3], 1
    %589 = vsyncpa %s588, 1
    %590 = vsyncpa [#allocation6], 1
    %591 = vsyncpa [#allocation9], 1
    %s592 = scalar_lea.sflag [#allocation9], 1
    %593 = vsyncpa %s592, 1
    %594 = vsyncpa [#allocation4], 1
    %s595 = scalar_lea.sflag [#allocation4], 1
    %596 = vsyncpa %s595, 1

// kernel: resblock_forward_pallas.4
$region0: #{resblock_forward_pallas.4}
  #allocation0 [shape = 'u32[]', space=smem, size = 0x4, offset = 0x4, fixed_abs, tag = 'smem constant byte address 0x4 - core index']
  #allocation1 [shape = 'u32[144,128]{1,0:T(1,128)}', space=vmem, size = 0x12000, scoped, tag = 'internal scratch']
  %s0 = inlined_call_operand.hbm [shape: f32[2,18,18,4], index: 0, kind: input, shape index: {}]
  %s1 = inlined_call_operand.hbm [shape: f32[36,128], index: 1, kind: input, shape index: {}]
  %s2 = inlined_call_operand.hbm [shape: f32[2,256,128], index: 2, kind: output, shape index: {0}]
  %s3 = inlined_call_operand.hbm [shape: f32[16,128], index: 3, kind: output, shape index: {1}]
  %4 = xla_tuple %s2, %s3
  %s5 = sld [smem:[#allocation0]]
  $region57: #{resblock_forward_pallas.4} parent=0
    _
  %s7 = ssub.s32 1, %s5
  %s8 = scalar_select 0, %s7, %s5
  $region1: #{resblock_forward_pallas.4} parent=0
    #allocation2 [shape = 'u8[442368]{0}', space=vmem, size = 0x6c000, scoped, tag = 'input window, operand 0']
    #allocation3 [shape = 's32[2]{0}', space=sflag, size = 0x8, scoped, tag = 'scoped memory for resblock_forward_pallas.4']
    #allocation4 [shape = 's32[2]{0}', space=sflag, size = 0x8, scoped, tag = 'scoped memory for resblock_forward_pallas.4']
    #allocation5 [shape = 'u8[20480]{0}', space=vmem, size = 0x5000, scoped, tag = 'input window, operand 1, single buffered']
    #allocation6 [shape = 's32[1]{0}', space=sflag, size = 0x4, scoped, tag = 'scoped memory for resblock_forward_pallas.4']
    #allocation7 [shape = 'u8[262144]{0}', space=vmem, size = 0x40000, scoped, tag = 'output window, operand 0']
    #allocation8 [shape = 'u8[8192]{0}', space=vmem, size = 0x2000, scoped, tag = 'output window, operand 1']
    #allocation9 [shape = 's32[2]{0}', space=sflag, size = 0x8, scoped, tag = 'scoped memory for resblock_forward_pallas.4']
    %9 = vsyncpa [#allocation3], 0
    %s10 = scalar_lea.sflag [#allocation3], 1
    %11 = vsyncpa %s10, 0
    %12 = vsyncpa [#allocation6], 0
    %13 = vsyncpa [#allocation4], 0
    %s14 = scalar_lea.sflag [#allocation4], 1
    %15 = vsyncpa %s14, 0
    %16 = vsyncpa [#allocation9], 0
    %s17 = scalar_lea.sflag [#allocation9], 1
    %18 = vsyncpa %s17, 0
    loop: start=0, step=1, limit=4
    $region2: #{resblock_forward_pallas.4} parent=1 // loop_pre_header
      _
    $region3: #{resblock_forward_pallas.4} parent=1 // loop_header
      %s20 = sphi 0, %s24
      %p21 = scmp.ge.s32.totalorder %s20, 4
      %s30 = sphi 0, %s32
      %s33 = sphi 0, %s30
      %s34 = sphi 0, %s33
      %s50 = sphi 0, %s34
      %s54 = sphi 0, %s54
      %s56 = sphi 0, %s54
      %s57 = sphi 0, %s56
      %s71 = sphi 0, %s57
      %s77 = sphi 0, %s79
      %s80 = sphi 0, %s77
      %s81 = sphi 0, %s80
      %s97 = sphi 0, %s81
      %s103 = sphi 0, %s105
      %s106 = sphi 0, %s103
      %s107 = sphi 0, %s106
      %s123 = sphi 0, %s107
    $region4: #{resblock_forward_pallas.4} parent=1 // loop_header_branch
      %23 = sbr.rel (%p21) target = $region8
    $region5: #{resblock_forward_pallas.4} parent=1 // loop_body
      %s25 = ssub.s32 %s20, 1
      %s26 = ssub.s32 %s20, 2
      %s27 = sadd.s32 %s20, 1
      %s28 = ssub.s32 %s20, %s27
      %p29 = scmp.eq.s32.totalorder %s28, 0
      %s31 = sadd.s32 %s30, 1
      %s32 = scalar_select %p29, %s30, %s31
      %p35 = pneg %p29
      %p36 = scmp.eq.s32.totalorder %s20, 1
      %p37 = por %p35, %p36
      %p38 = scmp.ne.s32.totalorder %s30, %s33
      %p39 = scmp.eq.s32.totalorder %s20, 0
      %p40 = por %p38, %p39
      %p41 = scmp.ne.s32.totalorder %s30, %s33
      %p42 = scmp.eq.s32.totalorder %s25, 1
      %p43 = por %p41, %p42
      %p44 = scmp.ne.s32.totalorder %s33, %s34
      %p45 = scmp.eq.s32.totalorder %s25, 0
      %p46 = por %p44, %p45
      %p47 = scmp.ne.s32.totalorder %s33, %s34
      %p48 = scmp.eq.s32.totalorder %s26, 1
      %p49 = por %p47, %p48
      %p51 = scmp.ne.s32.totalorder %s34, %s50
      %p52 = scmp.eq.s32.totalorder %s26, 0
      %p53 = por %p51, %p52
      %s55 = sadd.s32 %s54, 1
      %p58 = scmp.eq.s32.totalorder %s20, 1
      %p59 = scmp.ne.s32.totalorder %s54, %s56
      %p60 = scmp.eq.s32.totalorder %s20, 0
      %p61 = por %p59, %p60
      %p62 = scmp.ne.s32.totalorder %s54, %s56
      %p63 = scmp.eq.s32.totalorder %s25, 1
      %p64 = por %p62, %p63
      %p65 = scmp.ne.s32.totalorder %s56, %s57
      %p66 = scmp.eq.s32.totalorder %s25, 0
      %p67 = por %p65, %p66
      %p68 = scmp.ne.s32.totalorder %s56, %s57
      %p69 = scmp.eq.s32.totalorder %s26, 1
      %p70 = por %p68, %p69
      %p72 = scmp.ne.s32.totalorder %s57, %s71
      %p73 = scmp.eq.s32.totalorder %s26, 0
      %p74 = por %p72, %p73
      %s75 = ssub.s32 %s20, %s27
      %p76 = scmp.eq.s32.totalorder %s75, 0
      %s78 = sadd.s32 %s77, 1
      %s79 = scalar_select %p76, %s77, %s78
      %p82 = pneg %p76
      %p83 = scmp.eq.s32.totalorder %s20, 1
      %p84 = por %p82, %p83
      %p85 = scmp.ne.s32.totalorder %s77, %s80
      %p86 = scmp.eq.s32.totalorder %s20, 0
      %p87 = por %p85, %p86
      %p88 = scmp.ne.s32.totalorder %s77, %s80
      %p89 = scmp.eq.s32.totalorder %s25, 1
      %p90 = por %p88, %p89
      %p91 = scmp.ne.s32.totalorder %s80, %s81
      %p92 = scmp.eq.s32.totalorder %s25, 0
      %p93 = por %p91, %p92
      %p94 = scmp.ne.s32.totalorder %s80, %s81
      %p95 = scmp.eq.s32.totalorder %s26, 1
      %p96 = por %p94, %p95
      %p98 = scmp.ne.s32.totalorder %s81, %s97
      %p99 = scmp.eq.s32.totalorder %s26, 0
      %p100 = por %p98, %p99
      %s101 = ssub.s32 %s20, %s27
      %p102 = scmp.eq.s32.totalorder %s101, 0
      %s104 = sadd.s32 %s103, 1
      %s105 = scalar_select %p102, %s103, %s104
      %p108 = pneg %p102
      %p109 = scmp.eq.s32.totalorder %s20, 1
      %p110 = por %p108, %p109
      %p111 = scmp.ne.s32.totalorder %s103, %s106
      %p112 = scmp.eq.s32.totalorder %s20, 0
      %p113 = por %p111, %p112
      %p114 = scmp.ne.s32.totalorder %s103, %s106
      %p115 = scmp.eq.s32.totalorder %s25, 1
      %p116 = por %p114, %p115
      %p117 = scmp.ne.s32.totalorder %s106, %s107
      %p118 = scmp.eq.s32.totalorder %s25, 0
      %p119 = por %p117, %p118
      %p120 = scmp.ne.s32.totalorder %s106, %s107
      %p121 = scmp.eq.s32.totalorder %s26, 1
      %p122 = por %p120, %p121
      %p124 = scmp.ne.s32.totalorder %s107, %s123
      %p125 = scmp.eq.s32.totalorder %s26, 0
      %p126 = por %p124, %p125
      %p127 = scmp.le.s32.totalorder 1, %s20
      %p128 = scmp.lt.s32.totalorder %s20, 3
      %p129 = pnand %p127, %p128
      %p130 = pneg %p129
      // Predicated region
      $region9: #{resblock_forward_pallas.4} parent=5 // pred_check
        _
      $region10: #{resblock_forward_pallas.4} parent=5 // pred_check_branch
        %132 = sbr.rel (%p129) target = $region12
      $region11: #{resblock_forward_pallas.4} parent=5 // pred_region
        %s133 = ssub.s32 %s20, 1
        // Predicated region
        $region13: #{resblock_forward_pallas.4} parent=11 // pred_check
          %p134 = pneg %p67
        $region14: #{resblock_forward_pallas.4} parent=11 // pred_check_branch
          %136 = sbr.rel (%p134) target = $region16
        $region15: #{resblock_forward_pallas.4} parent=11 // pred_region
          %s138 = ssub.s32 640, 640
          %139 = vsyncadd [#allocation6], %s138
          %s140 = sshll.u32 [#allocation5], 4
          %s141 = int_to_ptr.vmem [resolvable:$true] %s140
          %146 = dma.hbm_to_vmem [thread:$0]  %s1, 640, %s141, [#allocation6], 128, 128, 8
        $region16: #{resblock_forward_pallas.4} parent=11 // pred_fallthru
          _
      $region12: #{resblock_forward_pallas.4} parent=5 // pred_fallthru
        _
      %p147 = scmp.lt.s32.totalorder %s20, 2
      // Predicated region
      $region17: #{resblock_forward_pallas.4} parent=5 // pred_check
        %p148 = pneg %p147
      $region18: #{resblock_forward_pallas.4} parent=5 // pred_check_branch
        %150 = sbr.rel (%p148) target = $region20
      $region19: #{resblock_forward_pallas.4} parent=5 // pred_region
        // Predicated region
        $region21: #{resblock_forward_pallas.4} parent=19 // pred_check
          %p151 = pneg %p40
        $region22: #{resblock_forward_pallas.4} parent=19 // pred_check_branch
          %153 = sbr.rel (%p151) target = $region24
        $region23: #{resblock_forward_pallas.4} parent=19 // pred_region
          %s154 = sand.u32 %s30, 1
          %s155 = scalar_lea.sflag [#allocation3], %s154
          %s156 = sand.u32 %s30, 1
          %s157 = smul.addr %s156, 432
          %s158 = scalar_lea.vmem [#allocation2], %s157
          %s160 = ssub.s32 6912, 6912
          %161 = vsyncadd %s155, %s160
          %s162 = smul.addr %s20, 54
          %s163 = smul.addr %s162, 128
          %s164 = scalar_lea.hbm %s0, %s163
          %s165 = sshll.u32 %s158, 4
          %s166 = int_to_ptr.vmem [resolvable:$true] %s165
          %171 = dma.hbm_to_vmem [thread:$0]  %s164, 6912, %s166, %s155, 128, 128, 8
        $region24: #{resblock_forward_pallas.4} parent=19 // pred_fallthru
          _
      $region20: #{resblock_forward_pallas.4} parent=5 // pred_fallthru
        _
      %p172 = scmp.le.s32.totalorder 1, %s20
      %p173 = scmp.lt.s32.totalorder %s20, 3
      %p174 = pnand %p172, %p173
      %p175 = pneg %p174
      // Predicated region
      $region25: #{resblock_forward_pallas.4} parent=5 // pred_check
        _
      $region26: #{resblock_forward_pallas.4} parent=5 // pred_check_branch
        %177 = sbr.rel (%p174) target = $region28
      $region27: #{resblock_forward_pallas.4} parent=5 // pred_region
        %s178 = ssub.s32 %s20, 1
        %s179 = sand.u32 %s33, 1
        %s180 = scalar_lea.sflag [#allocation3], %s179
        %s181 = sand.u32 %s33, 1
        %s182 = smul.addr %s181, 432
        %s183 = scalar_lea.vmem [#allocation2], %s182
        // Predicated region
        $region29: #{resblock_forward_pallas.4} parent=27 // pred_check
          %p184 = pneg %p46
        $region30: #{resblock_forward_pallas.4} parent=27 // pred_check_branch
          %186 = sbr.rel (%p184) target = $region32
        $region31: #{resblock_forward_pallas.4} parent=27 // pred_region
          %187 = dma.done %s180, 6912
        $region32: #{resblock_forward_pallas.4} parent=27 // pred_fallthru
          _
        // Predicated region
        $region33: #{resblock_forward_pallas.4} parent=27 // pred_check
          %p188 = pneg %p67
        $region34: #{resblock_forward_pallas.4} parent=27 // pred_check_branch
          %190 = sbr.rel (%p188) target = $region36
        $region35: #{resblock_forward_pallas.4} parent=27 // pred_region
          %191 = dma.done [#allocation6], 640
        $region36: #{resblock_forward_pallas.4} parent=27 // pred_fallthru
          _
        %s192 = sand.u32 %s33, 1
        %s193 = scalar_lea.sflag [#allocation3], %s192
        %s194 = sand.u32 %s33, 1
        %s195 = smul.addr %s194, 432
        %s196 = scalar_lea.vmem [#allocation2], %s195
        %p197 = pneg %p46
        %p198 = pneg %p43
        %p199 = pneg %p67
        %p200 = pneg %p64
        %p201 = pneg %p93
        %p202 = pneg %p90
        %s203 = sand.u32 %s80, 1
        %s204 = scalar_lea.sflag [#allocation4], %s203
        %s205 = sand.u32 %s80, 1
        %s206 = smul.addr %s205, 256
        %s207 = scalar_lea.vmem [#allocation7], %s206
        %p208 = pneg %p119
        %p209 = pneg %p116
        %s210 = sand.u32 %s106, 1
        %s211 = scalar_lea.sflag [#allocation9], %s210
        %s212 = sand.u32 %s106, 1
        %s213 = smul.addr %s212, 8
        %s214 = scalar_lea.vmem [#allocation8], %s213
        %v215 = vld [vmem:[%s183] sm:$0xff]
        %v216 = vld [vmem:[%s183 + $0x8] sm:$0xff]
        %v217 = vld [vmem:[%s183 + $0x10] sm:$0x3]
        %v218 = vld [vmem:[%s183 + $0x18] sm:$0xff]
        %v219 = vld [vmem:[%s183 + $0x20] sm:$0xff]
        %v220 = vld [vmem:[%s183 + $0x28] sm:$0x3]
        %v221 = vld [vmem:[%s183 + $0x30] sm:$0xff]
        %v222 = vld [vmem:[%s183 + $0x38] sm:$0xff]
        %v223 = vld [vmem:[%s183 + $0x40] sm:$0x3]
        %v224 = vld [vmem:[%s183 + $0x48] sm:$0xff]
        %v225 = vld [vmem:[%s183 + $0x50] sm:$0xff]
        %v226 = vld [vmem:[%s183 + $0x58] sm:$0x3]
        %v227 = vld [vmem:[%s183 + $0x60] sm:$0xff]
        %v228 = vld [vmem:[%s183 + $0x68] sm:$0xff]
        %v229 = vld [vmem:[%s183 + $0x70] sm:$0x3]
        %v230 = vld [vmem:[%s183 + $0x78] sm:$0xff]
        %v231 = vld [vmem:[%s183 + $0x80] sm:$0xff]
        %v232 = vld [vmem:[%s183 + $0x88] sm:$0x3]
        %v233 = vld [vmem:[%s183 + $0x90] sm:$0xff]
        %v234 = vld [vmem:[%s183 + $0x98] sm:$0xff]
        %v235 = vld [vmem:[%s183 + $0xa0] sm:$0x3]
        %v236 = vld [vmem:[%s183 + $0xa8] sm:$0xff]
        %v237 = vld [vmem:[%s183 + $0xb0] sm:$0xff]
        %v238 = vld [vmem:[%s183 + $0xb8] sm:$0x3]
        %v239 = vld [vmem:[%s183 + $0xc0] sm:$0xff]
        %v240 = vld [vmem:[%s183 + $0xc8] sm:$0xff]
        %v241 = vld [vmem:[%s183 + $0xd0] sm:$0x3]
        %v242 = vld [vmem:[%s183 + $0xd8] sm:$0xff]
        %v243 = vld [vmem:[%s183 + $0xe0] sm:$0xff]
        %v244 = vld [vmem:[%s183 + $0xe8] sm:$0x3]
        %v245 = vld [vmem:[%s183 + $0xf0] sm:$0xff]
        %v246 = vld [vmem:[%s183 + $0xf8] sm:$0xff]
        %v247 = vld [vmem:[%s183 + $0x100] sm:$0x3]
        %v248 = vld [vmem:[%s183 + $0x108] sm:$0xff]
        %v249 = vld [vmem:[%s183 + $0x110] sm:$0xff]
        %v250 = vld [vmem:[%s183 + $0x118] sm:$0x3]
        %v251 = vld [vmem:[%s183 + $0x120] sm:$0xff]
        %v252 = vld [vmem:[%s183 + $0x128] sm:$0xff]
        %v253 = vld [vmem:[%s183 + $0x130] sm:$0x3]
        %v254 = vld [vmem:[%s183 + $0x138] sm:$0xff]
        %v255 = vld [vmem:[%s183 + $0x140] sm:$0xff]
        %v256 = vld [vmem:[%s183 + $0x148] sm:$0x3]
        %v257 = vld [vmem:[%s183 + $0x150] sm:$0xff]
        %v258 = vld [vmem:[%s183 + $0x158] sm:$0xff]
        %v259 = vld [vmem:[%s183 + $0x160] sm:$0x3]
        %v260 = vld [vmem:[%s183 + $0x168] sm:$0xff]
        %v261 = vld [vmem:[%s183 + $0x170] sm:$0xff]
        %v262 = vld [vmem:[%s183 + $0x178] sm:$0x3]
        %v263 = vld [vmem:[%s183 + $0x180] sm:$0xff]
        %v264 = vld [vmem:[%s183 + $0x188] sm:$0xff]
        %v265 = vld [vmem:[%s183 + $0x190] sm:$0x3]
        %v266 = vld [vmem:[%s183 + $0x198] sm:$0xff]
        %v267 = vld [vmem:[%s183 + $0x1a0] sm:$0xff]
        %v268 = vld [vmem:[%s183 + $0x1a8] sm:$0x3]
        %vm317 = vcmask 1046528
        %v318 = vrot.slane %v215, 1
        %v319 = vrot.slane %v216, 1
        %v320 = vsel %vm317, %v318, %v319
        %v321 = vrot.slane %v217, 1
        %v322 = vsel %vm317, %v319, %v321
        %v323 = vrot.slane %v218, 1
        %v324 = vrot.slane %v219, 1
        %v325 = vsel %vm317, %v323, %v324
        %v326 = vrot.slane %v220, 1
        %v327 = vsel %vm317, %v324, %v326
        %v328 = vrot.slane %v221, 1
        %v329 = vrot.slane %v222, 1
        %v330 = vsel %vm317, %v328, %v329
        %v331 = vrot.slane %v223, 1
        %v332 = vsel %vm317, %v329, %v331
        %v333 = vrot.slane %v224, 1
        %v334 = vrot.slane %v225, 1
        %v335 = vsel %vm317, %v333, %v334
        %v336 = vrot.slane %v226, 1
        %v337 = vsel %vm317, %v334, %v336
        %v338 = vrot.slane %v227, 1
        %v339 = vrot.slane %v228, 1
        %v340 = vsel %vm317, %v338, %v339
        %v341 = vrot.slane %v229, 1
        %v342 = vsel %vm317, %v339, %v341
        %v343 = vrot.slane %v230, 1
        %v344 = vrot.slane %v231, 1
        %v345 = vsel %vm317, %v343, %v344
        %v346 = vrot.slane %v232, 1
        %v347 = vsel %vm317, %v344, %v346
        %v348 = vrot.slane %v233, 1
        %v349 = vrot.slane %v234, 1
        %v350 = vsel %vm317, %v348, %v349
        %v351 = vrot.slane %v235, 1
        %v352 = vsel %vm317, %v349, %v351
        %v353 = vrot.slane %v236, 1
        %v354 = vrot.slane %v237, 1
        %v355 = vsel %vm317, %v353, %v354
        %v356 = vrot.slane %v238, 1
        %v357 = vsel %vm317, %v354, %v356
        %v358 = vrot.slane %v239, 1
        %v359 = vrot.slane %v240, 1
        %v360 = vsel %vm317, %v358, %v359
        %v361 = vrot.slane %v241, 1
        %v362 = vsel %vm317, %v359, %v361
        %v363 = vrot.slane %v242, 1
        %v364 = vrot.slane %v243, 1
        %v365 = vsel %vm317, %v363, %v364
        %v366 = vrot.slane %v244, 1
        %v367 = vsel %vm317, %v364, %v366
        %v368 = vrot.slane %v245, 1
        %v369 = vrot.slane %v246, 1
        %v370 = vsel %vm317, %v368, %v369
        %v371 = vrot.slane %v247, 1
        %v372 = vsel %vm317, %v369, %v371
        %v373 = vrot.slane %v248, 1
        %v374 = vrot.slane %v249, 1
        %v375 = vsel %vm317, %v373, %v374
        %v376 = vrot.slane %v250, 1
        %v377 = vsel %vm317, %v374, %v376
        %v378 = vrot.slane %v251, 1
        %v379 = vrot.slane %v252, 1
        %v380 = vsel %vm317, %v378, %v379
        %v381 = vrot.slane %v253, 1
        %v382 = vsel %vm317, %v379, %v381
        %v383 = vrot.slane %v254, 1
        %v384 = vrot.slane %v255, 1
        %v385 = vsel %vm317, %v383, %v384
        %v386 = vrot.slane %v256, 1
        %v387 = vsel %vm317, %v384, %v386
        %v388 = vrot.slane %v257, 1
        %v389 = vrot.slane %v258, 1
        %v390 = vsel %vm317, %v388, %v389
        %v391 = vrot.slane %v259, 1
        %v392 = vsel %vm317, %v389, %v391
        %v393 = vrot.slane %v260, 1
        %v394 = vrot.slane %v261, 1
        %v395 = vsel %vm317, %v393, %v394
        %v396 = vrot.slane %v262, 1
        %v397 = vsel %vm317, %v394, %v396
        %398 = vrot.lane.b32.xlu0 %v320, 4
        %v399 = vpop.permute.xlu0 %398
        %400 = vrot.lane.b32.xlu0 %v322, 4
        %v401 = vpop.permute.xlu0 %400
        %402 = vrot.lane.b32.xlu0 %v325, 4
        %v403 = vpop.permute.xlu0 %402
        %404 = vrot.lane.b32.xlu0 %v327, 4
        %v405 = vpop.permute.xlu0 %404
        %406 = vrot.lane.b32.xlu0 %v330, 4
        %v407 = vpop.permute.xlu0 %406
        %408 = vrot.lane.b32.xlu0 %v332, 4
        %v409 = vpop.permute.xlu0 %408
        %410 = vrot.lane.b32.xlu0 %v335, 4
        %v411 = vpop.permute.xlu0 %410
        %412 = vrot.lane.b32.xlu0 %v337, 4
        %v413 = vpop.permute.xlu0 %412
        %414 = vrot.lane.b32.xlu0 %v340, 4
        %v415 = vpop.permute.xlu0 %414
        %416 = vrot.lane.b32.xlu0 %v342, 4
        %v417 = vpop.permute.xlu0 %416
        %418 = vrot.lane.b32.xlu0 %v345, 4
        %v419 = vpop.permute.xlu0 %418
        %420 = vrot.lane.b32.xlu0 %v347, 4
        %v421 = vpop.permute.xlu0 %420
        %422 = vrot.lane.b32.xlu0 %v350, 4
        %v423 = vpop.permute.xlu0 %422
        %424 = vrot.lane.b32.xlu0 %v352, 4
        %v425 = vpop.permute.xlu0 %424
        %426 = vrot.lane.b32.xlu0 %v355, 4
        %v427 = vpop.permute.xlu0 %426
        %428 = vrot.lane.b32.xlu0 %v357, 4
        %v429 = vpop.permute.xlu0 %428
        %430 = vrot.lane.b32.xlu0 %v360, 4
        %v431 = vpop.permute.xlu0 %430
        %432 = vrot.lane.b32.xlu0 %v362, 4
        %v433 = vpop.permute.xlu0 %432
        %434 = vrot.lane.b32.xlu0 %v365, 4
        %v435 = vpop.permute.xlu0 %434
        %436 = vrot.lane.b32.xlu0 %v367, 4
        %v437 = vpop.permute.xlu0 %436
        %438 = vrot.lane.b32.xlu0 %v370, 4
        %v439 = vpop.permute.xlu0 %438
        %440 = vrot.lane.b32.xlu0 %v372, 4
        %v441 = vpop.permute.xlu0 %440
        %442 = vrot.lane.b32.xlu0 %v375, 4
        %v443 = vpop.permute.xlu0 %442
        %444 = vrot.lane.b32.xlu0 %v377, 4
        %v445 = vpop.permute.xlu0 %444
        %446 = vrot.lane.b32.xlu0 %v380, 4
        %v447 = vpop.permute.xlu0 %446
        %448 = vrot.lane.b32.xlu0 %v382, 4
        %v449 = vpop.permute.xlu0 %448
        %450 = vrot.lane.b32.xlu0 %v385, 4
        %v451 = vpop.permute.xlu0 %450
        %452 = vrot.lane.b32.xlu0 %v387, 4
        %v453 = vpop.permute.xlu0 %452
        %454 = vrot.lane.b32.xlu0 %v390, 4
        %v455 = vpop.permute.xlu0 %454
        %456 = vrot.lane.b32.xlu0 %v392, 4
        %v457 = vpop.permute.xlu0 %456
        %458 = vrot.lane.b32.xlu0 %v395, 4
        %v459 = vpop.permute.xlu0 %458
        %460 = vrot.lane.b32.xlu0 %v397, 4
        %v461 = vpop.permute.xlu0 %460
        %vm494 = vcmask 1045504
        %v495 = vrot.slane %v215, 2
        %v496 = vrot.slane %v216, 2
        %v497 = vsel %vm494, %v495, %v496
        %v498 = vrot.slane %v217, 2
        %v499 = vsel %vm494, %v496, %v498
        %v500 = vrot.slane %v218, 2
        %v501 = vrot.slane %v219, 2
        %v502 = vsel %vm494, %v500, %v501
        %v503 = vrot.slane %v220, 2
        %v504 = vsel %vm494, %v501, %v503
        %v505 = vrot.slane %v221, 2
        %v506 = vrot.slane %v222, 2
        %v507 = vsel %vm494, %v505, %v506
        %v508 = vrot.slane %v223, 2
        %v509 = vsel %vm494, %v506, %v508
        %v510 = vrot.slane %v224, 2
        %v511 = vrot.slane %v225, 2
        %v512 = vsel %vm494, %v510, %v511
        %v513 = vrot.slane %v226, 2
        %v514 = vsel %vm494, %v511, %v513
        %v515 = vrot.slane %v227, 2
        %v516 = vrot.slane %v228, 2
        %v517 = vsel %vm494, %v515, %v516
        %v518 = vrot.slane %v229, 2
        %v519 = vsel %vm494, %v516, %v518
        %v520 = vrot.slane %v230, 2
        %v521 = vrot.slane %v231, 2
        %v522 = vsel %vm494, %v520, %v521
        %v523 = vrot.slane %v232, 2
        %v524 = vsel %vm494, %v521, %v523
        %v525 = vrot.slane %v233, 2
        %v526 = vrot.slane %v234, 2
        %v527 = vsel %vm494, %v525, %v526
        %v528 = vrot.slane %v235, 2
        %v529 = vsel %vm494, %v526, %v528
        %v530 = vrot.slane %v236, 2
        %v531 = vrot.slane %v237, 2
        %v532 = vsel %vm494, %v530, %v531
        %v533 = vrot.slane %v238, 2
        %v534 = vsel %vm494, %v531, %v533
        %v535 = vrot.slane %v239, 2
        %v536 = vrot.slane %v240, 2
        %v537 = vsel %vm494, %v535, %v536
        %v538 = vrot.slane %v241, 2
        %v539 = vsel %vm494, %v536, %v538
        %v540 = vrot.slane %v242, 2
        %v541 = vrot.slane %v243, 2
        %v542 = vsel %vm494, %v540, %v541
        %v543 = vrot.slane %v244, 2
        %v544 = vsel %vm494, %v541, %v543
        %v545 = vrot.slane %v245, 2
        %v546 = vrot.slane %v246, 2
        %v547 = vsel %vm494, %v545, %v546
        %v548 = vrot.slane %v247, 2
        %v549 = vsel %vm494, %v546, %v548
        %v550 = vrot.slane %v248, 2
        %v551 = vrot.slane %v249, 2
        %v552 = vsel %vm494, %v550, %v551
        %v553 = vrot.slane %v250, 2
        %v554 = vsel %vm494, %v551, %v553
        %v555 = vrot.slane %v251, 2
        %v556 = vrot.slane %v252, 2
        %v557 = vsel %vm494, %v555, %v556
        %v558 = vrot.slane %v253, 2
        %v559 = vsel %vm494, %v556, %v558
        %v560 = vrot.slane %v254, 2
        %v561 = vrot.slane %v255, 2
        %v562 = vsel %vm494, %v560, %v561
        %v563 = vrot.slane %v256, 2
        %v564 = vsel %vm494, %v561, %v563
        %v565 = vrot.slane %v257, 2
        %v566 = vrot.slane %v258, 2
        %v567 = vsel %vm494, %v565, %v566
        %v568 = vrot.slane %v259, 2
        %v569 = vsel %vm494, %v566, %v568
        %v570 = vrot.slane %v260, 2
        %v571 = vrot.slane %v261, 2
        %v572 = vsel %vm494, %v570, %v571
        %v573 = vrot.slane %v262, 2
        %v574 = vsel %vm494, %v571, %v573
        %575 = vrot.lane.b32.xlu0 %v497, 8
        %v576 = vpop.permute.xlu0 %575
        %577 = vrot.lane.b32.xlu0 %v499, 8
        %v578 = vpop.permute.xlu0 %577
        %579 = vrot.lane.b32.xlu0 %v502, 8
        %v580 = vpop.permute.xlu0 %579
        %581 = vrot.lane.b32.xlu0 %v504, 8
        %v582 = vpop.permute.xlu0 %581
        %583 = vrot.lane.b32.xlu0 %v507, 8
        %v584 = vpop.permute.xlu0 %583
        %585 = vrot.lane.b32.xlu0 %v509, 8
        %v586 = vpop.permute.xlu0 %585
        %587 = vrot.lane.b32.xlu0 %v512, 8
        %v588 = vpop.permute.xlu0 %587
        %589 = vrot.lane.b32.xlu0 %v514, 8
        %v590 = vpop.permute.xlu0 %589
        %591 = vrot.lane.b32.xlu0 %v517, 8
        %v592 = vpop.permute.xlu0 %591
        %593 = vrot.lane.b32.xlu0 %v519, 8
        %v594 = vpop.permute.xlu0 %593
        %595 = vrot.lane.b32.xlu0 %v522, 8
        %v596 = vpop.permute.xlu0 %595
        %597 = vrot.lane.b32.xlu0 %v524, 8
        %v598 = vpop.permute.xlu0 %597
        %599 = vrot.lane.b32.xlu0 %v527, 8
        %v600 = vpop.permute.xlu0 %599
        %601 = vrot.lane.b32.xlu0 %v529, 8
        %v602 = vpop.permute.xlu0 %601
        %603 = vrot.lane.b32.xlu0 %v532, 8
        %v604 = vpop.permute.xlu0 %603
        %605 = vrot.lane.b32.xlu0 %v534, 8
        %v606 = vpop.permute.xlu0 %605
        %607 = vrot.lane.b32.xlu0 %v537, 8
        %v608 = vpop.permute.xlu0 %607
        %609 = vrot.lane.b32.xlu0 %v539, 8
        %v610 = vpop.permute.xlu0 %609
        %611 = vrot.lane.b32.xlu0 %v542, 8
        %v612 = vpop.permute.xlu0 %611
        %613 = vrot.lane.b32.xlu0 %v544, 8
        %v614 = vpop.permute.xlu0 %613
        %615 = vrot.lane.b32.xlu0 %v547, 8
        %v616 = vpop.permute.xlu0 %615
        %617 = vrot.lane.b32.xlu0 %v549, 8
        %v618 = vpop.permute.xlu0 %617
        %619 = vrot.lane.b32.xlu0 %v552, 8
        %v620 = vpop.permute.xlu0 %619
        %621 = vrot.lane.b32.xlu0 %v554, 8
        %v622 = vpop.permute.xlu0 %621
        %623 = vrot.lane.b32.xlu0 %v557, 8
        %v624 = vpop.permute.xlu0 %623
        %625 = vrot.lane.b32.xlu0 %v559, 8
        %v626 = vpop.permute.xlu0 %625
        %627 = vrot.lane.b32.xlu0 %v562, 8
        %v628 = vpop.permute.xlu0 %627
        %629 = vrot.lane.b32.xlu0 %v564, 8
        %v630 = vpop.permute.xlu0 %629
        %631 = vrot.lane.b32.xlu0 %v567, 8
        %v632 = vpop.permute.xlu0 %631
        %633 = vrot.lane.b32.xlu0 %v569, 8
        %v634 = vpop.permute.xlu0 %633
        %635 = vrot.lane.b32.xlu0 %v572, 8
        %v636 = vpop.permute.xlu0 %635
        %637 = vrot.lane.b32.xlu0 %v574, 8
        %v638 = vpop.permute.xlu0 %637
        %673 = vrot.lane.b32.xlu0 %v218, 12
        %v674 = vpop.permute.xlu0 %673
        %675 = vrot.lane.b32.xlu0 %v219, 12
        %v676 = vpop.permute.xlu0 %675
        %677 = vrot.lane.b32.xlu0 %v221, 12
        %v678 = vpop.permute.xlu0 %677
        %679 = vrot.lane.b32.xlu0 %v222, 12
        %v680 = vpop.permute.xlu0 %679
        %681 = vrot.lane.b32.xlu0 %v224, 12
        %v682 = vpop.permute.xlu0 %681
        %683 = vrot.lane.b32.xlu0 %v225, 12
        %v684 = vpop.permute.xlu0 %683
        %685 = vrot.lane.b32.xlu0 %v227, 12
        %v686 = vpop.permute.xlu0 %685
        %687 = vrot.lane.b32.xlu0 %v228, 12
        %v688 = vpop.permute.xlu0 %687
        %689 = vrot.lane.b32.xlu0 %v230, 12
        %v690 = vpop.permute.xlu0 %689
        %691 = vrot.lane.b32.xlu0 %v231, 12
        %v692 = vpop.permute.xlu0 %691
        %693 = vrot.lane.b32.xlu0 %v233, 12
        %v694 = vpop.permute.xlu0 %693
        %695 = vrot.lane.b32.xlu0 %v234, 12
        %v696 = vpop.permute.xlu0 %695
        %697 = vrot.lane.b32.xlu0 %v236, 12
        %v698 = vpop.permute.xlu0 %697
        %699 = vrot.lane.b32.xlu0 %v237, 12
        %v700 = vpop.permute.xlu0 %699
        %701 = vrot.lane.b32.xlu0 %v239, 12
        %v702 = vpop.permute.xlu0 %701
        %703 = vrot.lane.b32.xlu0 %v240, 12
        %v704 = vpop.permute.xlu0 %703
        %705 = vrot.lane.b32.xlu0 %v242, 12
        %v706 = vpop.permute.xlu0 %705
        %707 = vrot.lane.b32.xlu0 %v243, 12
        %v708 = vpop.permute.xlu0 %707
        %709 = vrot.lane.b32.xlu0 %v245, 12
        %v710 = vpop.permute.xlu0 %709
        %711 = vrot.lane.b32.xlu0 %v246, 12
        %v712 = vpop.permute.xlu0 %711
        %713 = vrot.lane.b32.xlu0 %v248, 12
        %v714 = vpop.permute.xlu0 %713
        %715 = vrot.lane.b32.xlu0 %v249, 12
        %v716 = vpop.permute.xlu0 %715
        %717 = vrot.lane.b32.xlu0 %v251, 12
        %v718 = vpop.permute.xlu0 %717
        %719 = vrot.lane.b32.xlu0 %v252, 12
        %v720 = vpop.permute.xlu0 %719
        %721 = vrot.lane.b32.xlu0 %v254, 12
        %v722 = vpop.permute.xlu0 %721
        %723 = vrot.lane.b32.xlu0 %v255, 12
        %v724 = vpop.permute.xlu0 %723
        %725 = vrot.lane.b32.xlu0 %v257, 12
        %v726 = vpop.permute.xlu0 %725
        %727 = vrot.lane.b32.xlu0 %v258, 12
        %v728 = vpop.permute.xlu0 %727
        %729 = vrot.lane.b32.xlu0 %v260, 12
        %v730 = vpop.permute.xlu0 %729
        %731 = vrot.lane.b32.xlu0 %v261, 12
        %v732 = vpop.permute.xlu0 %731
        %733 = vrot.lane.b32.xlu0 %v263, 12
        %v734 = vpop.permute.xlu0 %733
        %735 = vrot.lane.b32.xlu0 %v264, 12
        %v736 = vpop.permute.xlu0 %735
        %v770 = vrot.slane %v263, 1
        %v771 = vrot.slane %v264, 1
        %v772 = vsel %vm317, %v770, %v771
        %v773 = vrot.slane %v265, 1
        %v774 = vsel %vm317, %v771, %v773
        %775 = vrot.lane.b32.xlu0 %v325, 16
        %v776 = vpop.permute.xlu0 %775
        %777 = vrot.lane.b32.xlu0 %v327, 16
        %v778 = vpop.permute.xlu0 %777
        %779 = vrot.lane.b32.xlu0 %v330, 16
        %v780 = vpop.permute.xlu0 %779
        %781 = vrot.lane.b32.xlu0 %v332, 16
        %v782 = vpop.permute.xlu0 %781
        %783 = vrot.lane.b32.xlu0 %v335, 16
        %v784 = vpop.permute.xlu0 %783
        %785 = vrot.lane.b32.xlu0 %v337, 16
        %v786 = vpop.permute.xlu0 %785
        %787 = vrot.lane.b32.xlu0 %v340, 16
        %v788 = vpop.permute.xlu0 %787
        %789 = vrot.lane.b32.xlu0 %v342, 16
        %v790 = vpop.permute.xlu0 %789
        %791 = vrot.lane.b32.xlu0 %v345, 16
        %v792 = vpop.permute.xlu0 %791
        %793 = vrot.lane.b32.xlu0 %v347, 16
        %v794 = vpop.permute.xlu0 %793
        %795 = vrot.lane.b32.xlu0 %v350, 16
        %v796 = vpop.permute.xlu0 %795
        %797 = vrot.lane.b32.xlu0 %v352, 16
        %v798 = vpop.permute.xlu0 %797
        %799 = vrot.lane.b32.xlu0 %v355, 16
        %v800 = vpop.permute.xlu0 %799
        %801 = vrot.lane.b32.xlu0 %v357, 16
        %v802 = vpop.permute.xlu0 %801
        %803 = vrot.lane.b32.xlu0 %v360, 16
        %v804 = vpop.permute.xlu0 %803
        %805 = vrot.lane.b32.xlu0 %v362, 16
        %v806 = vpop.permute.xlu0 %805
        %807 = vrot.lane.b32.xlu0 %v365, 16
        %v808 = vpop.permute.xlu0 %807
        %809 = vrot.lane.b32.xlu0 %v367, 16
        %v810 = vpop.permute.xlu0 %809
        %811 = vrot.lane.b32.xlu0 %v370, 16
        %v812 = vpop.permute.xlu0 %811
        %813 = vrot.lane.b32.xlu0 %v372, 16
        %v814 = vpop.permute.xlu0 %813
        %815 = vrot.lane.b32.xlu0 %v375, 16
        %v816 = vpop.permute.xlu0 %815
        %817 = vrot.lane.b32.xlu0 %v377, 16
        %v818 = vpop.permute.xlu0 %817
        %819 = vrot.lane.b32.xlu0 %v380, 16
        %v820 = vpop.permute.xlu0 %819
        %821 = vrot.lane.b32.xlu0 %v382, 16
        %v822 = vpop.permute.xlu0 %821
        %823 = vrot.lane.b32.xlu0 %v385, 16
        %v824 = vpop.permute.xlu0 %823
        %825 = vrot.lane.b32.xlu0 %v387, 16
        %v826 = vpop.permute.xlu0 %825
        %827 = vrot.lane.b32.xlu0 %v390, 16
        %v828 = vpop.permute.xlu0 %827
        %829 = vrot.lane.b32.xlu0 %v392, 16
        %v830 = vpop.permute.xlu0 %829
        %831 = vrot.lane.b32.xlu0 %v395, 16
        %v832 = vpop.permute.xlu0 %831
        %833 = vrot.lane.b32.xlu0 %v397, 16
        %v834 = vpop.permute.xlu0 %833
        %835 = vrot.lane.b32.xlu0 %v772, 16
        %v836 = vpop.permute.xlu0 %835
        %837 = vrot.lane.b32.xlu0 %v774, 16
        %v838 = vpop.permute.xlu0 %837
        %v871 = vrot.slane %v263, 2
        %v872 = vrot.slane %v264, 2
        %v873 = vsel %vm494, %v871, %v872
        %v874 = vrot.slane %v265, 2
        %v875 = vsel %vm494, %v872, %v874
        %876 = vrot.lane.b32.xlu0 %v502, 20
        %v877 = vpop.permute.xlu0 %876
        %878 = vrot.lane.b32.xlu0 %v504, 20
        %v879 = vpop.permute.xlu0 %878
        %880 = vrot.lane.b32.xlu0 %v507, 20
        %v881 = vpop.permute.xlu0 %880
        %882 = vrot.lane.b32.xlu0 %v509, 20
        %v883 = vpop.permute.xlu0 %882
        %884 = vrot.lane.b32.xlu0 %v512, 20
        %v885 = vpop.permute.xlu0 %884
        %886 = vrot.lane.b32.xlu0 %v514, 20
        %v887 = vpop.permute.xlu0 %886
        %888 = vrot.lane.b32.xlu0 %v517, 20
        %v889 = vpop.permute.xlu0 %888
        %890 = vrot.lane.b32.xlu0 %v519, 20
        %v891 = vpop.permute.xlu0 %890
        %892 = vrot.lane.b32.xlu0 %v522, 20
        %v893 = vpop.permute.xlu0 %892
        %894 = vrot.lane.b32.xlu0 %v524, 20
        %v895 = vpop.permute.xlu0 %894
        %896 = vrot.lane.b32.xlu0 %v527, 20
        %v897 = vpop.permute.xlu0 %896
        %898 = vrot.lane.b32.xlu0 %v529, 20
        %v899 = vpop.permute.xlu0 %898
        %900 = vrot.lane.b32.xlu0 %v532, 20
        %v901 = vpop.permute.xlu0 %900
        %902 = vrot.lane.b32.xlu0 %v534, 20
        %v903 = vpop.permute.xlu0 %902
        %904 = vrot.lane.b32.xlu0 %v537, 20
        %v905 = vpop.permute.xlu0 %904
        %906 = vrot.lane.b32.xlu0 %v539, 20
        %v907 = vpop.permute.xlu0 %906
        %908 = vrot.lane.b32.xlu0 %v542, 20
        %v909 = vpop.permute.xlu0 %908
        %910 = vrot.lane.b32.xlu0 %v544, 20
        %v911 = vpop.permute.xlu0 %910
        %912 = vrot.lane.b32.xlu0 %v547, 20
        %v913 = vpop.permute.xlu0 %912
        %914 = vrot.lane.b32.xlu0 %v549, 20
        %v915 = vpop.permute.xlu0 %914
        %916 = vrot.lane.b32.xlu0 %v552, 20
        %v917 = vpop.permute.xlu0 %916
        %918 = vrot.lane.b32.xlu0 %v554, 20
        %v919 = vpop.permute.xlu0 %918
        %920 = vrot.lane.b32.xlu0 %v557, 20
        %v921 = vpop.permute.xlu0 %920
        %922 = vrot.lane.b32.xlu0 %v559, 20
        %v923 = vpop.permute.xlu0 %922
        %924 = vrot.lane.b32.xlu0 %v562, 20
        %v925 = vpop.permute.xlu0 %924
        %926 = vrot.lane.b32.xlu0 %v564, 20
        %v927 = vpop.permute.xlu0 %926
        %928 = vrot.lane.b32.xlu0 %v567, 20
        %v929 = vpop.permute.xlu0 %928
        %930 = vrot.lane.b32.xlu0 %v569, 20
        %v931 = vpop.permute.xlu0 %930
        %932 = vrot.lane.b32.xlu0 %v572, 20
        %v933 = vpop.permute.xlu0 %932
        %934 = vrot.lane.b32.xlu0 %v574, 20
        %v935 = vpop.permute.xlu0 %934
        %936 = vrot.lane.b32.xlu0 %v873, 20
        %v937 = vpop.permute.xlu0 %936
        %938 = vrot.lane.b32.xlu0 %v875, 20
        %v939 = vpop.permute.xlu0 %938
        %974 = vrot.lane.b32.xlu0 %v221, 24
        %v975 = vpop.permute.xlu0 %974
        %976 = vrot.lane.b32.xlu0 %v222, 24
        %v977 = vpop.permute.xlu0 %976
        %978 = vrot.lane.b32.xlu0 %v224, 24
        %v979 = vpop.permute.xlu0 %978
        %980 = vrot.lane.b32.xlu0 %v225, 24
        %v981 = vpop.permute.xlu0 %980
        %982 = vrot.lane.b32.xlu0 %v227, 24
        %v983 = vpop.permute.xlu0 %982
        %984 = vrot.lane.b32.xlu0 %v228, 24
        %v985 = vpop.permute.xlu0 %984
        %986 = vrot.lane.b32.xlu0 %v230, 24
        %v987 = vpop.permute.xlu0 %986
        %988 = vrot.lane.b32.xlu0 %v231, 24
        %v989 = vpop.permute.xlu0 %988
        %990 = vrot.lane.b32.xlu0 %v233, 24
        %v991 = vpop.permute.xlu0 %990
        %992 = vrot.lane.b32.xlu0 %v234, 24
        %v993 = vpop.permute.xlu0 %992
        %994 = vrot.lane.b32.xlu0 %v236, 24
        %v995 = vpop.permute.xlu0 %994
        %996 = vrot.lane.b32.xlu0 %v237, 24
        %v997 = vpop.permute.xlu0 %996
        %998 = vrot.lane.b32.xlu0 %v239, 24
        %v999 = vpop.permute.xlu0 %998
        %1000 = vrot.lane.b32.xlu0 %v240, 24
        %v1001 = vpop.permute.xlu0 %1000
        %1002 = vrot.lane.b32.xlu0 %v242, 24
        %v1003 = vpop.permute.xlu0 %1002
        %1004 = vrot.lane.b32.xlu0 %v243, 24
        %v1005 = vpop.permute.xlu0 %1004
        %1006 = vrot.lane.b32.xlu0 %v245, 24
        %v1007 = vpop.permute.xlu0 %1006
        %1008 = vrot.lane.b32.xlu0 %v246, 24
        %v1009 = vpop.permute.xlu0 %1008
        %1010 = vrot.lane.b32.xlu0 %v248, 24
        %v1011 = vpop.permute.xlu0 %1010
        %1012 = vrot.lane.b32.xlu0 %v249, 24
        %v1013 = vpop.permute.xlu0 %1012
        %1014 = vrot.lane.b32.xlu0 %v251, 24
        %v1015 = vpop.permute.xlu0 %1014
        %1016 = vrot.lane.b32.xlu0 %v252, 24
        %v1017 = vpop.permute.xlu0 %1016
        %1018 = vrot.lane.b32.xlu0 %v254, 24
        %v1019 = vpop.permute.xlu0 %1018
        %1020 = vrot.lane.b32.xlu0 %v255, 24
        %v1021 = vpop.permute.xlu0 %1020
        %1022 = vrot.lane.b32.xlu0 %v257, 24
        %v1023 = vpop.permute.xlu0 %1022
        %1024 = vrot.lane.b32.xlu0 %v258, 24
        %v1025 = vpop.permute.xlu0 %1024
        %1026 = vrot.lane.b32.xlu0 %v260, 24
        %v1027 = vpop.permute.xlu0 %1026
        %1028 = vrot.lane.b32.xlu0 %v261, 24
        %v1029 = vpop.permute.xlu0 %1028
        %1030 = vrot.lane.b32.xlu0 %v263, 24
        %v1031 = vpop.permute.xlu0 %1030
        %1032 = vrot.lane.b32.xlu0 %v264, 24
        %v1033 = vpop.permute.xlu0 %1032
        %1034 = vrot.lane.b32.xlu0 %v266, 24
        %v1035 = vpop.permute.xlu0 %1034
        %1036 = vrot.lane.b32.xlu0 %v267, 24
        %v1037 = vpop.permute.xlu0 %1036
        %v1071 = vrot.slane %v266, 1
        %v1072 = vrot.slane %v267, 1
        %v1073 = vsel %vm317, %v1071, %v1072
        %v1074 = vrot.slane %v268, 1
        %v1075 = vsel %vm317, %v1072, %v1074
        %1076 = vrot.lane.b32.xlu0 %v330, 28
        %v1077 = vpop.permute.xlu0 %1076
        %1078 = vrot.lane.b32.xlu0 %v332, 28
        %v1079 = vpop.permute.xlu0 %1078
        %1080 = vrot.lane.b32.xlu0 %v335, 28
        %v1081 = vpop.permute.xlu0 %1080
        %1082 = vrot.lane.b32.xlu0 %v337, 28
        %v1083 = vpop.permute.xlu0 %1082
        %1084 = vrot.lane.b32.xlu0 %v340, 28
        %v1085 = vpop.permute.xlu0 %1084
        %1086 = vrot.lane.b32.xlu0 %v342, 28
        %v1087 = vpop.permute.xlu0 %1086
        %1088 = vrot.lane.b32.xlu0 %v345, 28
        %v1089 = vpop.permute.xlu0 %1088
        %1090 = vrot.lane.b32.xlu0 %v347, 28
        %v1091 = vpop.permute.xlu0 %1090
        %1092 = vrot.lane.b32.xlu0 %v350, 28
        %v1093 = vpop.permute.xlu0 %1092
        %1094 = vrot.lane.b32.xlu0 %v352, 28
        %v1095 = vpop.permute.xlu0 %1094
        %1096 = vrot.lane.b32.xlu0 %v355, 28
        %v1097 = vpop.permute.xlu0 %1096
        %1098 = vrot.lane.b32.xlu0 %v357, 28
        %v1099 = vpop.permute.xlu0 %1098
        %1100 = vrot.lane.b32.xlu0 %v360, 28
        %v1101 = vpop.permute.xlu0 %1100
        %1102 = vrot.lane.b32.xlu0 %v362, 28
        %v1103 = vpop.permute.xlu0 %1102
        %1104 = vrot.lane.b32.xlu0 %v365, 28
        %v1105 = vpop.permute.xlu0 %1104
        %1106 = vrot.lane.b32.xlu0 %v367, 28
        %v1107 = vpop.permute.xlu0 %1106
        %1108 = vrot.lane.b32.xlu0 %v370, 28
        %v1109 = vpop.permute.xlu0 %1108
        %1110 = vrot.lane.b32.xlu0 %v372, 28
        %v1111 = vpop.permute.xlu0 %1110
        %1112 = vrot.lane.b32.xlu0 %v375, 28
        %v1113 = vpop.permute.xlu0 %1112
        %1114 = vrot.lane.b32.xlu0 %v377, 28
        %v1115 = vpop.permute.xlu0 %1114
        %1116 = vrot.lane.b32.xlu0 %v380, 28
        %v1117 = vpop.permute.xlu0 %1116
        %1118 = vrot.lane.b32.xlu0 %v382, 28
        %v1119 = vpop.permute.xlu0 %1118
        %1120 = vrot.lane.b32.xlu0 %v385, 28
        %v1121 = vpop.permute.xlu0 %1120
        %1122 = vrot.lane.b32.xlu0 %v387, 28
        %v1123 = vpop.permute.xlu0 %1122
        %1124 = vrot.lane.b32.xlu0 %v390, 28
        %v1125 = vpop.permute.xlu0 %1124
        %1126 = vrot.lane.b32.xlu0 %v392, 28
        %v1127 = vpop.permute.xlu0 %1126
        %1128 = vrot.lane.b32.xlu0 %v395, 28
        %v1129 = vpop.permute.xlu0 %1128
        %1130 = vrot.lane.b32.xlu0 %v397, 28
        %v1131 = vpop.permute.xlu0 %1130
        %1132 = vrot.lane.b32.xlu0 %v772, 28
        %v1133 = vpop.permute.xlu0 %1132
        %1134 = vrot.lane.b32.xlu0 %v774, 28
        %v1135 = vpop.permute.xlu0 %1134
        %1136 = vrot.lane.b32.xlu0 %v1073, 28
        %v1137 = vpop.permute.xlu0 %1136
        %1138 = vrot.lane.b32.xlu0 %v1075, 28
        %v1139 = vpop.permute.xlu0 %1138
        %v1172 = vrot.slane %v266, 2
        %v1173 = vrot.slane %v267, 2
        %v1174 = vsel %vm494, %v1172, %v1173
        %v1175 = vrot.slane %v268, 2
        %v1176 = vsel %vm494, %v1173, %v1175
        %1177 = vrot.lane.b32.xlu0 %v507, 32
        %v1178 = vpop.permute.xlu0 %1177
        %1179 = vrot.lane.b32.xlu0 %v509, 32
        %v1180 = vpop.permute.xlu0 %1179
        %1181 = vrot.lane.b32.xlu0 %v512, 32
        %v1182 = vpop.permute.xlu0 %1181
        %1183 = vrot.lane.b32.xlu0 %v514, 32
        %v1184 = vpop.permute.xlu0 %1183
        %1185 = vrot.lane.b32.xlu0 %v517, 32
        %v1186 = vpop.permute.xlu0 %1185
        %1187 = vrot.lane.b32.xlu0 %v519, 32
        %v1188 = vpop.permute.xlu0 %1187
        %1189 = vrot.lane.b32.xlu0 %v522, 32
        %v1190 = vpop.permute.xlu0 %1189
        %1191 = vrot.lane.b32.xlu0 %v524, 32
        %v1192 = vpop.permute.xlu0 %1191
        %1193 = vrot.lane.b32.xlu0 %v527, 32
        %v1194 = vpop.permute.xlu0 %1193
        %1195 = vrot.lane.b32.xlu0 %v529, 32
        %v1196 = vpop.permute.xlu0 %1195
        %1197 = vrot.lane.b32.xlu0 %v532, 32
        %v1198 = vpop.permute.xlu0 %1197
        %1199 = vrot.lane.b32.xlu0 %v534, 32
        %v1200 = vpop.permute.xlu0 %1199
        %1201 = vrot.lane.b32.xlu0 %v537, 32
        %v1202 = vpop.permute.xlu0 %1201
        %1203 = vrot.lane.b32.xlu0 %v539, 32
        %v1204 = vpop.permute.xlu0 %1203
        %1205 = vrot.lane.b32.xlu0 %v542, 32
        %v1206 = vpop.permute.xlu0 %1205
        %1207 = vrot.lane.b32.xlu0 %v544, 32
        %v1208 = vpop.permute.xlu0 %1207
        %1209 = vrot.lane.b32.xlu0 %v547, 32
        %v1210 = vpop.permute.xlu0 %1209
        %1211 = vrot.lane.b32.xlu0 %v549, 32
        %v1212 = vpop.permute.xlu0 %1211
        %1213 = vrot.lane.b32.xlu0 %v552, 32
        %v1214 = vpop.permute.xlu0 %1213
        %1215 = vrot.lane.b32.xlu0 %v554, 32
        %v1216 = vpop.permute.xlu0 %1215
        %1217 = vrot.lane.b32.xlu0 %v557, 32
        %v1218 = vpop.permute.xlu0 %1217
        %1219 = vrot.lane.b32.xlu0 %v559, 32
        %v1220 = vpop.permute.xlu0 %1219
        %1221 = vrot.lane.b32.xlu0 %v562, 32
        %v1222 = vpop.permute.xlu0 %1221
        %1223 = vrot.lane.b32.xlu0 %v564, 32
        %v1224 = vpop.permute.xlu0 %1223
        %1225 = vrot.lane.b32.xlu0 %v567, 32
        %v1226 = vpop.permute.xlu0 %1225
        %1227 = vrot.lane.b32.xlu0 %v569, 32
        %v1228 = vpop.permute.xlu0 %1227
        %1229 = vrot.lane.b32.xlu0 %v572, 32
        %v1230 = vpop.permute.xlu0 %1229
        %1231 = vrot.lane.b32.xlu0 %v574, 32
        %v1232 = vpop.permute.xlu0 %1231
        %1233 = vrot.lane.b32.xlu0 %v873, 32
        %v1234 = vpop.permute.xlu0 %1233
        %1235 = vrot.lane.b32.xlu0 %v875, 32
        %v1236 = vpop.permute.xlu0 %1235
        %1237 = vrot.lane.b32.xlu0 %v1174, 32
        %v1238 = vpop.permute.xlu0 %1237
        %1239 = vrot.lane.b32.xlu0 %v1176, 32
        %v1240 = vpop.permute.xlu0 %1239
        %vm1273 = vcmask 31744
        %v1274 = vsel %vm1273, %v215, %v399
        %v1275 = vsel %vm1273, %v216, %v401
        %v1276 = vsel %vm1273, %v218, %v403
        %v1277 = vsel %vm1273, %v219, %v405
        %v1278 = vsel %vm1273, %v221, %v407
        %v1279 = vsel %vm1273, %v222, %v409
        %v1280 = vsel %vm1273, %v224, %v411
        %v1281 = vsel %vm1273, %v225, %v413
        %v1282 = vsel %vm1273, %v227, %v415
        %v1283 = vsel %vm1273, %v228, %v417
        %v1284 = vsel %vm1273, %v230, %v419
        %v1285 = vsel %vm1273, %v231, %v421
        %v1286 = vsel %vm1273, %v233, %v423
        %v1287 = vsel %vm1273, %v234, %v425
        %v1288 = vsel %vm1273, %v236, %v427
        %v1289 = vsel %vm1273, %v237, %v429
        %v1290 = vsel %vm1273, %v239, %v431
        %v1291 = vsel %vm1273, %v240, %v433
        %v1292 = vsel %vm1273, %v242, %v435
        %v1293 = vsel %vm1273, %v243, %v437
        %v1294 = vsel %vm1273, %v245, %v439
        %v1295 = vsel %vm1273, %v246, %v441
        %v1296 = vsel %vm1273, %v248, %v443
        %v1297 = vsel %vm1273, %v249, %v445
        %v1298 = vsel %vm1273, %v251, %v447
        %v1299 = vsel %vm1273, %v252, %v449
        %v1300 = vsel %vm1273, %v254, %v451
        %v1301 = vsel %vm1273, %v255, %v453
        %v1302 = vsel %vm1273, %v257, %v455
        %v1303 = vsel %vm1273, %v258, %v457
        %v1304 = vsel %vm1273, %v260, %v459
        %v1305 = vsel %vm1273, %v261, %v461
        %vm1306 = vcmask 64512
        %v1307 = vsel %vm1306, %v1274, %v576
        %v1308 = vsel %vm1306, %v1275, %v578
        %v1309 = vsel %vm1306, %v1276, %v580
        %v1310 = vsel %vm1306, %v1277, %v582
        %v1311 = vsel %vm1306, %v1278, %v584
        %v1312 = vsel %vm1306, %v1279, %v586
        %v1313 = vsel %vm1306, %v1280, %v588
        %v1314 = vsel %vm1306, %v1281, %v590
        %v1315 = vsel %vm1306, %v1282, %v592
        %v1316 = vsel %vm1306, %v1283, %v594
        %v1317 = vsel %vm1306, %v1284, %v596
        %v1318 = vsel %vm1306, %v1285, %v598
        %v1319 = vsel %vm1306, %v1286, %v600
        %v1320 = vsel %vm1306, %v1287, %v602
        %v1321 = vsel %vm1306, %v1288, %v604
        %v1322 = vsel %vm1306, %v1289, %v606
        %v1323 = vsel %vm1306, %v1290, %v608
        %v1324 = vsel %vm1306, %v1291, %v610
        %v1325 = vsel %vm1306, %v1292, %v612
        %v1326 = vsel %vm1306, %v1293, %v614
        %v1327 = vsel %vm1306, %v1294, %v616
        %v1328 = vsel %vm1306, %v1295, %v618
        %v1329 = vsel %vm1306, %v1296, %v620
        %v1330 = vsel %vm1306, %v1297, %v622
        %v1331 = vsel %vm1306, %v1298, %v624
        %v1332 = vsel %vm1306, %v1299, %v626
        %v1333 = vsel %vm1306, %v1300, %v628
        %v1334 = vsel %vm1306, %v1301, %v630
        %v1335 = vsel %vm1306, %v1302, %v632
        %v1336 = vsel %vm1306, %v1303, %v634
        %v1337 = vsel %vm1306, %v1304, %v636
        %v1338 = vsel %vm1306, %v1305, %v638
        %vm1339 = vcmask 97280
        %v1340 = vsel %vm1339, %v1307, %v674
        %v1341 = vsel %vm1339, %v1308, %v676
        %v1342 = vsel %vm1339, %v1309, %v678
        %v1343 = vsel %vm1339, %v1310, %v680
        %v1344 = vsel %vm1339, %v1311, %v682
        %v1345 = vsel %vm1339, %v1312, %v684
        %v1346 = vsel %vm1339, %v1313, %v686
        %v1347 = vsel %vm1339, %v1314, %v688
        %v1348 = vsel %vm1339, %v1315, %v690
        %v1349 = vsel %vm1339, %v1316, %v692
        %v1350 = vsel %vm1339, %v1317, %v694
        %v1351 = vsel %vm1339, %v1318, %v696
        %v1352 = vsel %vm1339, %v1319, %v698
        %v1353 = vsel %vm1339, %v1320, %v700
        %v1354 = vsel %vm1339, %v1321, %v702
        %v1355 = vsel %vm1339, %v1322, %v704
        %v1356 = vsel %vm1339, %v1323, %v706
        %v1357 = vsel %vm1339, %v1324, %v708
        %v1358 = vsel %vm1339, %v1325, %v710
        %v1359 = vsel %vm1339, %v1326, %v712
        %v1360 = vsel %vm1339, %v1327, %v714
        %v1361 = vsel %vm1339, %v1328, %v716
        %v1362 = vsel %vm1339, %v1329, %v718
        %v1363 = vsel %vm1339, %v1330, %v720
        %v1364 = vsel %vm1339, %v1331, %v722
        %v1365 = vsel %vm1339, %v1332, %v724
        %v1366 = vsel %vm1339, %v1333, %v726
        %v1367 = vsel %vm1339, %v1334, %v728
        %v1368 = vsel %vm1339, %v1335, %v730
        %v1369 = vsel %vm1339, %v1336, %v732
        %v1370 = vsel %vm1339, %v1337, %v734
        %v1371 = vsel %vm1339, %v1338, %v736
        %vm1372 = vcmask 130048
        %v1373 = vsel %vm1372, %v1340, %v776
        %v1374 = vsel %vm1372, %v1341, %v778
        %v1375 = vsel %vm1372, %v1342, %v780
        %v1376 = vsel %vm1372, %v1343, %v782
        %v1377 = vsel %vm1372, %v1344, %v784
        %v1378 = vsel %vm1372, %v1345, %v786
        %v1379 = vsel %vm1372, %v1346, %v788
        %v1380 = vsel %vm1372, %v1347, %v790
        %v1381 = vsel %vm1372, %v1348, %v792
        %v1382 = vsel %vm1372, %v1349, %v794
        %v1383 = vsel %vm1372, %v1350, %v796
        %v1384 = vsel %vm1372, %v1351, %v798
        %v1385 = vsel %vm1372, %v1352, %v800
        %v1386 = vsel %vm1372, %v1353, %v802
        %v1387 = vsel %vm1372, %v1354, %v804
        %v1388 = vsel %vm1372, %v1355, %v806
        %v1389 = vsel %vm1372, %v1356, %v808
        %v1390 = vsel %vm1372, %v1357, %v810
        %v1391 = vsel %vm1372, %v1358, %v812
        %v1392 = vsel %vm1372, %v1359, %v814
        %v1393 = vsel %vm1372, %v1360, %v816
        %v1394 = vsel %vm1372, %v1361, %v818
        %v1395 = vsel %vm1372, %v1362, %v820
        %v1396 = vsel %vm1372, %v1363, %v822
        %v1397 = vsel %vm1372, %v1364, %v824
        %v1398 = vsel %vm1372, %v1365, %v826
        %v1399 = vsel %vm1372, %v1366, %v828
        %v1400 = vsel %vm1372, %v1367, %v830
        %v1401 = vsel %vm1372, %v1368, %v832
        %v1402 = vsel %vm1372, %v1369, %v834
        %v1403 = vsel %vm1372, %v1370, %v836
        %v1404 = vsel %vm1372, %v1371, %v838
        %vm1405 = vcmask 162816
        %v1406 = vsel %vm1405, %v1373, %v877
        %v1407 = vsel %vm1405, %v1374, %v879
        %v1408 = vsel %vm1405, %v1375, %v881
        %v1409 = vsel %vm1405, %v1376, %v883
        %v1410 = vsel %vm1405, %v1377, %v885
        %v1411 = vsel %vm1405, %v1378, %v887
        %v1412 = vsel %vm1405, %v1379, %v889
        %v1413 = vsel %vm1405, %v1380, %v891
        %v1414 = vsel %vm1405, %v1381, %v893
        %v1415 = vsel %vm1405, %v1382, %v895
        %v1416 = vsel %vm1405, %v1383, %v897
        %v1417 = vsel %vm1405, %v1384, %v899
        %v1418 = vsel %vm1405, %v1385, %v901
        %v1419 = vsel %vm1405, %v1386, %v903
        %v1420 = vsel %vm1405, %v1387, %v905
        %v1421 = vsel %vm1405, %v1388, %v907
        %v1422 = vsel %vm1405, %v1389, %v909
        %v1423 = vsel %vm1405, %v1390, %v911
        %v1424 = vsel %vm1405, %v1391, %v913
        %v1425 = vsel %vm1405, %v1392, %v915
        %v1426 = vsel %vm1405, %v1393, %v917
        %v1427 = vsel %vm1405, %v1394, %v919
        %v1428 = vsel %vm1405, %v1395, %v921
        %v1429 = vsel %vm1405, %v1396, %v923
        %v1430 = vsel %vm1405, %v1397, %v925
        %v1431 = vsel %vm1405, %v1398, %v927
        %v1432 = vsel %vm1405, %v1399, %v929
        %v1433 = vsel %vm1405, %v1400, %v931
        %v1434 = vsel %vm1405, %v1401, %v933
        %v1435 = vsel %vm1405, %v1402, %v935
        %v1436 = vsel %vm1405, %v1403, %v937
        %v1437 = vsel %vm1405, %v1404, %v939
        %vm1438 = vcmask 195584
        %v1439 = vsel %vm1438, %v1406, %v975
        %v1440 = vsel %vm1438, %v1407, %v977
        %v1441 = vsel %vm1438, %v1408, %v979
        %v1442 = vsel %vm1438, %v1409, %v981
        %v1443 = vsel %vm1438, %v1410, %v983
        %v1444 = vsel %vm1438, %v1411, %v985
        %v1445 = vsel %vm1438, %v1412, %v987
        %v1446 = vsel %vm1438, %v1413, %v989
        %v1447 = vsel %vm1438, %v1414, %v991
        %v1448 = vsel %vm1438, %v1415, %v993
        %v1449 = vsel %vm1438, %v1416, %v995
        %v1450 = vsel %vm1438, %v1417, %v997
        %v1451 = vsel %vm1438, %v1418, %v999
        %v1452 = vsel %vm1438, %v1419, %v1001
        %v1453 = vsel %vm1438, %v1420, %v1003
        %v1454 = vsel %vm1438, %v1421, %v1005
        %v1455 = vsel %vm1438, %v1422, %v1007
        %v1456 = vsel %vm1438, %v1423, %v1009
        %v1457 = vsel %vm1438, %v1424, %v1011
        %v1458 = vsel %vm1438, %v1425, %v1013
        %v1459 = vsel %vm1438, %v1426, %v1015
        %v1460 = vsel %vm1438, %v1427, %v1017
        %v1461 = vsel %vm1438, %v1428, %v1019
        %v1462 = vsel %vm1438, %v1429, %v1021
        %v1463 = vsel %vm1438, %v1430, %v1023
        %v1464 = vsel %vm1438, %v1431, %v1025
        %v1465 = vsel %vm1438, %v1432, %v1027
        %v1466 = vsel %vm1438, %v1433, %v1029
        %v1467 = vsel %vm1438, %v1434, %v1031
        %v1468 = vsel %vm1438, %v1435, %v1033
        %v1469 = vsel %vm1438, %v1436, %v1035
        %v1470 = vsel %vm1438, %v1437, %v1037
        %vm1471 = vcmask 228352
        %v1472 = vsel %vm1471, %v1439, %v1077
        %v1473 = vsel %vm1471, %v1440, %v1079
        %v1474 = vsel %vm1471, %v1441, %v1081
        %v1475 = vsel %vm1471, %v1442, %v1083
        %v1476 = vsel %vm1471, %v1443, %v1085
        %v1477 = vsel %vm1471, %v1444, %v1087
        %v1478 = vsel %vm1471, %v1445, %v1089
        %v1479 = vsel %vm1471, %v1446, %v1091
        %v1480 = vsel %vm1471, %v1447, %v1093
        %v1481 = vsel %vm1471, %v1448, %v1095
        %v1482 = vsel %vm1471, %v1449, %v1097
        %v1483 = vsel %vm1471, %v1450, %v1099
        %v1484 = vsel %vm1471, %v1451, %v1101
        %v1485 = vsel %vm1471, %v1452, %v1103
        %v1486 = vsel %vm1471, %v1453, %v1105
        %v1487 = vsel %vm1471, %v1454, %v1107
        %v1488 = vsel %vm1471, %v1455, %v1109
        %v1489 = vsel %vm1471, %v1456, %v1111
        %v1490 = vsel %vm1471, %v1457, %v1113
        %v1491 = vsel %vm1471, %v1458, %v1115
        %v1492 = vsel %vm1471, %v1459, %v1117
        %v1493 = vsel %vm1471, %v1460, %v1119
        %v1494 = vsel %vm1471, %v1461, %v1121
        %v1495 = vsel %vm1471, %v1462, %v1123
        %v1496 = vsel %vm1471, %v1463, %v1125
        %v1497 = vsel %vm1471, %v1464, %v1127
        %v1498 = vsel %vm1471, %v1465, %v1129
        %v1499 = vsel %vm1471, %v1466, %v1131
        %v1500 = vsel %vm1471, %v1467, %v1133
        %v1501 = vsel %vm1471, %v1468, %v1135
        %v1502 = vsel %vm1471, %v1469, %v1137
        %v1503 = vsel %vm1471, %v1470, %v1139
        %vm1504 = vcmask 261120
        %v1505 = vsel %vm1504, %v1472, %v1178
        %v1506 = vsel %vm1504, %v1473, %v1180
        %v1507 = vsel %vm1504, %v1474, %v1182
        %v1508 = vsel %vm1504, %v1475, %v1184
        %v1509 = vsel %vm1504, %v1476, %v1186
        %v1510 = vsel %vm1504, %v1477, %v1188
        %v1511 = vsel %vm1504, %v1478, %v1190
        %v1512 = vsel %vm1504, %v1479, %v1192
        %v1513 = vsel %vm1504, %v1480, %v1194
        %v1514 = vsel %vm1504, %v1481, %v1196
        %v1515 = vsel %vm1504, %v1482, %v1198
        %v1516 = vsel %vm1504, %v1483, %v1200
        %v1517 = vsel %vm1504, %v1484, %v1202
        %v1518 = vsel %vm1504, %v1485, %v1204
        %v1519 = vsel %vm1504, %v1486, %v1206
        %v1520 = vsel %vm1504, %v1487, %v1208
        %v1521 = vsel %vm1504, %v1488, %v1210
        %v1522 = vsel %vm1504, %v1489, %v1212
        %v1523 = vsel %vm1504, %v1490, %v1214
        %v1524 = vsel %vm1504, %v1491, %v1216
        %v1525 = vsel %vm1504, %v1492, %v1218
        %v1526 = vsel %vm1504, %v1493, %v1220
        %v1527 = vsel %vm1504, %v1494, %v1222
        %v1528 = vsel %vm1504, %v1495, %v1224
        %v1529 = vsel %vm1504, %v1496, %v1226
        %v1530 = vsel %vm1504, %v1497, %v1228
        %v1531 = vsel %vm1504, %v1498, %v1230
        %v1532 = vsel %vm1504, %v1499, %v1232
        %v1533 = vsel %vm1504, %v1500, %v1234
        %v1534 = vsel %vm1504, %v1501, %v1236
        %v1535 = vsel %vm1504, %v1502, %v1238
        %v1536 = vsel %vm1504, %v1503, %v1240
        %v1537 = vld [vmem:[#allocation5] sm:$0xff]
        %v1538 = vld [vmem:[#allocation5 + $0x8] sm:$0xff]
        %v1539 = vld [vmem:[#allocation5 + $0x10] sm:$0xff]
        %v1540 = vld [vmem:[#allocation5 + $0x18] sm:$0xff]
        %v1541 = vld [vmem:[#allocation5 + $0x20] sm:$0xf]
        %vm1542 = vcmask 293888
        %v1544 = vsel %vm1542, %v1505, 0
        %v1547 = vsel %vm1542, %v1506, 0
        %v1550 = vsel %vm1542, %v1507, 0
        %v1553 = vsel %vm1542, %v1508, 0
        %v1556 = vsel %vm1542, %v1509, 0
        %v1559 = vsel %vm1542, %v1510, 0
        %v1562 = vsel %vm1542, %v1511, 0
        %v1565 = vsel %vm1542, %v1512, 0
        %v1568 = vsel %vm1542, %v1513, 0
        %v1571 = vsel %vm1542, %v1514, 0
        %v1574 = vsel %vm1542, %v1515, 0
        %v1577 = vsel %vm1542, %v1516, 0
        %v1580 = vsel %vm1542, %v1517, 0
        %v1583 = vsel %vm1542, %v1518, 0
        %v1586 = vsel %vm1542, %v1519, 0
        %v1589 = vsel %vm1542, %v1520, 0
        %v1592 = vsel %vm1542, %v1521, 0
        %v1595 = vsel %vm1542, %v1522, 0
        %v1598 = vsel %vm1542, %v1523, 0
        %v1601 = vsel %vm1542, %v1524, 0
        %v1604 = vsel %vm1542, %v1525, 0
        %v1607 = vsel %vm1542, %v1526, 0
        %v1610 = vsel %vm1542, %v1527, 0
        %v1613 = vsel %vm1542, %v1528, 0
        %v1616 = vsel %vm1542, %v1529, 0
        %v1619 = vsel %vm1542, %v1530, 0
        %v1622 = vsel %vm1542, %v1531, 0
        %v1625 = vsel %vm1542, %v1532, 0
        %v1628 = vsel %vm1542, %v1533, 0
        %v1631 = vsel %vm1542, %v1534, 0
        %v1634 = vsel %vm1542, %v1535, 0
        %v1637 = vsel %vm1542, %v1536, 0
        %vm1639 = vcmask 1043456
        %v1641 = vsel %vm1639, %v1541, 0
        %1643 = vmatprep.subr.mxu0 0.0
        %1644 = vmatpush1.msra.mxu0 %v1537
        %1645 = vmatprep.subr.mxu0 0.0
        %1646 = vmatpush1.msra.mxu0 %v1538
        %1647 = vmatprep.subr.mxu0 0.0
        %1648 = vmatpush1.msra.mxu0 %v1539
        %1649 = vmatprep.subr.mxu0 0.0
        %1650 = vmatpush1.msra.mxu0 %v1540
        %1651 = vmatprep.subr.mxu0 0.0
        %1652 = vmatpush1.msra.mxu0 %v1641
        %1653 = vmatprep.subr.mxu0 0.0
        %1654 = vmatpush1.msra.mxu0 0.0
        %1655 = vmatprep.subr.mxu0 0.0
        %1656 = vmatpush1.msra.mxu0 0.0
        %1657 = vmatprep.subr.mxu0 0.0
        %1658 = vmatpush1.msra.mxu0 0.0
        %1659 = vmatprep.subr.mxu0 0.0
        %1660 = vmatpush1.msra.mxu0 0.0
        %1661 = vmatprep.subr.mxu0 0.0
        %1662 = vmatpush1.msra.mxu0 0.0
        %1663 = vmatprep.subr.mxu0 0.0
        %1664 = vmatpush1.msra.mxu0 0.0
        %1665 = vmatprep.subr.mxu0 0.0
        %1666 = vmatpush1.msra.mxu0 0.0
        %1667 = vmatprep.subr.mxu0 0.0
        %1668 = vmatpush1.msra.mxu0 0.0
        %1669 = vmatprep.subr.mxu0 0.0
        %1670 = vmatpush1.msra.mxu0 0.0
        %1671 = vmatprep.subr.mxu0 0.0
        %1672 = vmatpush1.msra.mxu0 0.0
        %1673 = vmatprep.subr.mxu0 0.0
        %1674 = vmatpush1.msra.mxu0 0.0
        %1675 = vmatprep.subr.mxu0 0.0
        %1676 = vmatpush1.msra.mxu0 0.0
        %1677 = vmatprep.subr.mxu0 0.0
        %1678 = vmatpush1.msra.mxu0 0.0
        %1679 = vmatprep.subr.mxu0 0.0
        %1680 = vmatpush1.msra.mxu0 0.0
        %1681 = vmatprep.subr.mxu0 0.0
        %1682 = vmatpush1.msra.mxu0 0.0
        %1683 = vmatprep.subr.mxu0 0.0
        %1684 = vmatpush1.msra.mxu0 0.0
        %1685 = vmatprep.subr.mxu0 0.0
        %1686 = vmatpush1.msra.mxu0 0.0
        %1687 = vmatprep.subr.mxu0 0.0
        %1688 = vmatpush1.msra.mxu0 0.0
        %1689 = vmatprep.subr.mxu0 0.0
        %1690 = vmatpush1.msra.mxu0 0.0
        %1691 = vmatprep.subr.mxu0 0.0
        %1692 = vmatpush1.msra.mxu0 0.0
        %1693 = vmatprep.subr.mxu0 0.0
        %1694 = vmatpush1.msra.mxu0 0.0
        %1695 = vmatprep.subr.mxu0 0.0
        %1696 = vmatpush1.msra.mxu0 0.0
        %1697 = vmatprep.subr.mxu0 0.0
        %1698 = vmatpush1.msra.mxu0 0.0
        %1699 = vmatprep.subr.mxu0 0.0
        %1700 = vmatpush1.msra.mxu0 0.0
        %1701 = vmatprep.subr.mxu0 0.0
        %1702 = vmatpush1.msra.mxu0 0.0
        %1703 = vmatprep.subr.mxu0 0.0
        %1704 = vmatpush1.msra.mxu0 0.0
        %1705 = vmatprep.subr.mxu0 0.0
        %1706 = vmatpush1.msra.mxu0 0.0
        %1707 = vmatprep.mubr.f32.mxu0 0.0
        %1708 = vmatmul.mubr.f32.gmra.mrb[0].mxu0 %v1544
        %v1709 = vpop.f32.mrb[0].mxu0
        %v1710 = vadd.f32 0.0, %v1709
        %v1711 = vpop.f32.mrb[0].mxu0
        %1712 = vmatprep.mubr.f32.mxu0 0.0
        %1713 = vmatmul.mubr.f32.gmra.mrb[0].mxu0 %v1547
        %v1714 = vpop.f32.mrb[0].mxu0
        %v1715 = vadd.f32 0.0, %v1714
        %v1716 = vpop.f32.mrb[0].mxu0
        %1717 = vmatprep.mubr.f32.mxu0 0.0
        %1718 = vmatmul.mubr.f32.gmra.mrb[0].mxu0 %v1550
        %v1719 = vpop.f32.mrb[0].mxu0
        %v1720 = vadd.f32 0.0, %v1719
        %v1721 = vpop.f32.mrb[0].mxu0
        %1722 = vmatprep.mubr.f32.mxu0 0.0
        %1723 = vmatmul.mubr.f32.gmra.mrb[0].mxu0 %v1553
        %v1724 = vpop.f32.mrb[0].mxu0
        %v1725 = vadd.f32 0.0, %v1724
        %v1726 = vpop.f32.mrb[0].mxu0
        %1727 = vmatprep.mubr.f32.mxu0 0.0
        %1728 = vmatmul.mubr.f32.gmra.mrb[0].mxu0 %v1556
        %v1729 = vpop.f32.mrb[0].mxu0
        %v1730 = vadd.f32 0.0, %v1729
        %v1731 = vpop.f32.mrb[0].mxu0
        %1732 = vmatprep.mubr.f32.mxu0 0.0
        %1733 = vmatmul.mubr.f32.gmra.mrb[0].mxu0 %v1559
        %v1734 = vpop.f32.mrb[0].mxu0
        %v1735 = vadd.f32 0.0, %v1734
        %v1736 = vpop.f32.mrb[0].mxu0
        %1737 = vmatprep.mubr.f32.mxu0 0.0
        %1738 = vmatmul.mubr.f32.gmra.mrb[0].mxu0 %v1562
        %v1739 = vpop.f32.mrb[0].mxu0
        %v1740 = vadd.f32 0.0, %v1739
        %v1741 = vpop.f32.mrb[0].mxu0
        %1742 = vmatprep.mubr.f32.mxu0 0.0
        %1743 = vmatmul.mubr.f32.gmra.mrb[0].mxu0 %v1565
        %v1744 = vpop.f32.mrb[0].mxu0
        %v1745 = vadd.f32 0.0, %v1744
        %v1746 = vpop.f32.mrb[0].mxu0
        %1747 = vmatprep.mubr.f32.mxu0 0.0
        %1748 = vmatmul.mubr.f32.gmra.mrb[0].mxu0 %v1568
        %v1749 = vpop.f32.mrb[0].mxu0
        %v1750 = vadd.f32 0.0, %v1749
        %v1751 = vpop.f32.mrb[0].mxu0
        %1752 = vmatprep.mubr.f32.mxu0 0.0
        %1753 = vmatmul.mubr.f32.gmra.mrb[0].mxu0 %v1571
        %v1754 = vpop.f32.mrb[0].mxu0
        %v1755 = vadd.f32 0.0, %v1754
        %v1756 = vpop.f32.mrb[0].mxu0
        %1757 = vmatprep.mubr.f32.mxu0 0.0
        %1758 = vmatmul.mubr.f32.gmra.mrb[0].mxu0 %v1574
        %v1759 = vpop.f32.mrb[0].mxu0
        %v1760 = vadd.f32 0.0, %v1759
        %v1761 = vpop.f32.mrb[0].mxu0
        %1762 = vmatprep.mubr.f32.mxu0 0.0
        %1763 = vmatmul.mubr.f32.gmra.mrb[0].mxu0 %v1577
        %v1764 = vpop.f32.mrb[0].mxu0
        %v1765 = vadd.f32 0.0, %v1764
        %v1766 = vpop.f32.mrb[0].mxu0
        %1767 = vmatprep.mubr.f32.mxu0 0.0
        %1768 = vmatmul.mubr.f32.gmra.mrb[0].mxu0 %v1580
        %v1769 = vpop.f32.mrb[0].mxu0
        %v1770 = vadd.f32 0.0, %v1769
        %v1771 = vpop.f32.mrb[0].mxu0
        %1772 = vmatprep.mubr.f32.mxu0 0.0
        %1773 = vmatmul.mubr.f32.gmra.mrb[0].mxu0 %v1583
        %v1774 = vpop.f32.mrb[0].mxu0
        %v1775 = vadd.f32 0.0, %v1774
        %v1776 = vpop.f32.mrb[0].mxu0
        %1777 = vmatprep.mubr.f32.mxu0 0.0
        %1778 = vmatmul.mubr.f32.gmra.mrb[0].mxu0 %v1586
        %v1779 = vpop.f32.mrb[0].mxu0
        %v1780 = vadd.f32 0.0, %v1779
        %v1781 = vpop.f32.mrb[0].mxu0
        %1782 = vmatprep.mubr.f32.mxu0 0.0
        %1783 = vmatmul.mubr.f32.gmra.mrb[0].mxu0 %v1589
        %v1784 = vpop.f32.mrb[0].mxu0
        %v1785 = vadd.f32 0.0, %v1784
        %v1786 = vpop.f32.mrb[0].mxu0
        %1787 = vmatprep.mubr.f32.mxu0 0.0
        %1788 = vmatmul.mubr.f32.gmra.mrb[0].mxu0 %v1592
        %v1789 = vpop.f32.mrb[0].mxu0
        %v1790 = vadd.f32 0.0, %v1789
        %v1791 = vpop.f32.mrb[0].mxu0
        %1792 = vmatprep.mubr.f32.mxu0 0.0
        %1793 = vmatmul.mubr.f32.gmra.mrb[0].mxu0 %v1595
        %v1794 = vpop.f32.mrb[0].mxu0
        %v1795 = vadd.f32 0.0, %v1794
        %v1796 = vpop.f32.mrb[0].mxu0
        %1797 = vmatprep.mubr.f32.mxu0 0.0
        %1798 = vmatmul.mubr.f32.gmra.mrb[0].mxu0 %v1598
        %v1799 = vpop.f32.mrb[0].mxu0
        %v1800 = vadd.f32 0.0, %v1799
        %v1801 = vpop.f32.mrb[0].mxu0
        %1802 = vmatprep.mubr.f32.mxu0 0.0
        %1803 = vmatmul.mubr.f32.gmra.mrb[0].mxu0 %v1601
        %v1804 = vpop.f32.mrb[0].mxu0
        %v1805 = vadd.f32 0.0, %v1804
        %v1806 = vpop.f32.mrb[0].mxu0
        %1807 = vmatprep.mubr.f32.mxu0 0.0
        %1808 = vmatmul.mubr.f32.gmra.mrb[0].mxu0 %v1604
        %v1809 = vpop.f32.mrb[0].mxu0
        %v1810 = vadd.f32 0.0, %v1809
        %v1811 = vpop.f32.mrb[0].mxu0
        %1812 = vmatprep.mubr.f32.mxu0 0.0
        %1813 = vmatmul.mubr.f32.gmra.mrb[0].mxu0 %v1607
        %v1814 = vpop.f32.mrb[0].mxu0
        %v1815 = vadd.f32 0.0, %v1814
        %v1816 = vpop.f32.mrb[0].mxu0
        %1817 = vmatprep.mubr.f32.mxu0 0.0
        %1818 = vmatmul.mubr.f32.gmra.mrb[0].mxu0 %v1610
        %v1819 = vpop.f32.mrb[0].mxu0
        %v1820 = vadd.f32 0.0, %v1819
        %v1821 = vpop.f32.mrb[0].mxu0
        %1822 = vmatprep.mubr.f32.mxu0 0.0
        %1823 = vmatmul.mubr.f32.gmra.mrb[0].mxu0 %v1613
        %v1824 = vpop.f32.mrb[0].mxu0
        %v1825 = vadd.f32 0.0, %v1824
        %v1826 = vpop.f32.mrb[0].mxu0
        %1827 = vmatprep.mubr.f32.mxu0 0.0
        %1828 = vmatmul.mubr.f32.gmra.mrb[0].mxu0 %v1616
        %v1829 = vpop.f32.mrb[0].mxu0
        %v1830 = vadd.f32 0.0, %v1829
        %v1831 = vpop.f32.mrb[0].mxu0
        %1832 = vmatprep.mubr.f32.mxu0 0.0
        %1833 = vmatmul.mubr.f32.gmra.mrb[0].mxu0 %v1619
        %v1834 = vpop.f32.mrb[0].mxu0
        %v1835 = vadd.f32 0.0, %v1834
        %v1836 = vpop.f32.mrb[0].mxu0
        %1837 = vmatprep.mubr.f32.mxu0 0.0
        %1838 = vmatmul.mubr.f32.gmra.mrb[0].mxu0 %v1622
        %v1839 = vpop.f32.mrb[0].mxu0
        %v1840 = vadd.f32 0.0, %v1839
        %v1841 = vpop.f32.mrb[0].mxu0
        %1842 = vmatprep.mubr.f32.mxu0 0.0
        %1843 = vmatmul.mubr.f32.gmra.mrb[0].mxu0 %v1625
        %v1844 = vpop.f32.mrb[0].mxu0
        %v1845 = vadd.f32 0.0, %v1844
        %v1846 = vpop.f32.mrb[0].mxu0
        %1847 = vmatprep.mubr.f32.mxu0 0.0
        %1848 = vmatmul.mubr.f32.gmra.mrb[0].mxu0 %v1628
        %v1849 = vpop.f32.mrb[0].mxu0
        %v1850 = vadd.f32 0.0, %v1849
        %v1851 = vpop.f32.mrb[0].mxu0
        %1852 = vmatprep.mubr.f32.mxu0 0.0
        %1853 = vmatmul.mubr.f32.gmra.mrb[0].mxu0 %v1631
        %v1854 = vpop.f32.mrb[0].mxu0
        %v1855 = vadd.f32 0.0, %v1854
        %v1856 = vpop.f32.mrb[0].mxu0
        %1857 = vmatprep.mubr.f32.mxu0 0.0
        %1858 = vmatmul.mubr.f32.gmra.mrb[0].mxu0 %v1634
        %v1859 = vpop.f32.mrb[0].mxu0
        %v1860 = vadd.f32 0.0, %v1859
        %v1861 = vpop.f32.mrb[0].mxu0
        %1862 = vmatprep.mubr.f32.mxu0 0.0
        %1863 = vmatmul.mubr.f32.gmra.mrb[0].mxu0 %v1637
        %v1864 = vpop.f32.mrb[0].mxu0
        %v1865 = vadd.f32 0.0, %v1864
        %v1866 = vpop.f32.mrb[0].mxu0
        %1867 = vdwg.mxu0
        %v1868 = vadd.f32 %v1710, %v1715
        %v1869 = vadd.f32 %v1868, %v1720
        %v1870 = vadd.f32 %v1869, %v1725
        %v1871 = vadd.f32 %v1870, %v1730
        %v1872 = vadd.f32 %v1871, %v1735
        %v1873 = vadd.f32 %v1872, %v1740
        %v1874 = vadd.f32 %v1873, %v1745
        %v1875 = vadd.f32 %v1874, %v1750
        %v1876 = vadd.f32 %v1875, %v1755
        %v1877 = vadd.f32 %v1876, %v1760
        %v1878 = vadd.f32 %v1877, %v1765
        %v1879 = vadd.f32 %v1878, %v1770
        %v1880 = vadd.f32 %v1879, %v1775
        %v1881 = vadd.f32 %v1880, %v1780
        %v1882 = vadd.f32 %v1881, %v1785
        %v1883 = vadd.f32 %v1882, %v1790
        %v1884 = vadd.f32 %v1883, %v1795
        %v1885 = vadd.f32 %v1884, %v1800
        %v1886 = vadd.f32 %v1885, %v1805
        %v1887 = vadd.f32 %v1886, %v1810
        %v1888 = vadd.f32 %v1887, %v1815
        %v1889 = vadd.f32 %v1888, %v1820
        %v1890 = vadd.f32 %v1889, %v1825
        %v1891 = vadd.f32 %v1890, %v1830
        %v1892 = vadd.f32 %v1891, %v1835
        %v1893 = vadd.f32 %v1892, %v1840
        %v1894 = vadd.f32 %v1893, %v1845
        %v1895 = vadd.f32 %v1894, %v1850
        %v1896 = vadd.f32 %v1895, %v1855
        %v1897 = vadd.f32 %v1896, %v1860
        %v1898 = vadd.f32 %v1897, %v1865
        %v1899 = vrot.slane %v1898, 4
        %v1900 = vadd.f32 %v1898, %v1899
        %v1901 = vrot.slane %v1900, 2
        %v1902 = vadd.f32 %v1900, %v1901
        %v1903 = vrot.slane %v1902, 1
        %v1904 = vadd.f32 %v1902, %v1903
        %1905 = vst [vmem:[%s214] sm:$0x1] %v1904
        %v1906 = vmul.f32 %v1710, %v1710
        %v1907 = vmul.f32 %v1715, %v1715
        %v1908 = vmul.f32 %v1720, %v1720
        %v1909 = vmul.f32 %v1725, %v1725
        %v1910 = vmul.f32 %v1730, %v1730
        %v1911 = vmul.f32 %v1735, %v1735
        %v1912 = vmul.f32 %v1740, %v1740
        %v1913 = vmul.f32 %v1745, %v1745
        %v1914 = vmul.f32 %v1750, %v1750
        %v1915 = vmul.f32 %v1755, %v1755
        %v1916 = vmul.f32 %v1760, %v1760
        %v1917 = vmul.f32 %v1765, %v1765
        %v1918 = vmul.f32 %v1770, %v1770
        %v1919 = vmul.f32 %v1775, %v1775
        %v1920 = vmul.f32 %v1780, %v1780
        %v1921 = vmul.f32 %v1785, %v1785
        %v1922 = vmul.f32 %v1790, %v1790
        %v1923 = vmul.f32 %v1795, %v1795
        %v1924 = vmul.f32 %v1800, %v1800
        %v1925 = vmul.f32 %v1805, %v1805
        %v1926 = vmul.f32 %v1810, %v1810
        %v1927 = vmul.f32 %v1815, %v1815
        %v1928 = vmul.f32 %v1820, %v1820
        %v1929 = vmul.f32 %v1825, %v1825
        %v1930 = vmul.f32 %v1830, %v1830
        %v1931 = vmul.f32 %v1835, %v1835
        %v1932 = vmul.f32 %v1840, %v1840
        %v1933 = vmul.f32 %v1845, %v1845
        %v1934 = vmul.f32 %v1850, %v1850
        %v1935 = vmul.f32 %v1855, %v1855
        %v1936 = vmul.f32 %v1860, %v1860
        %v1937 = vmul.f32 %v1865, %v1865
        %v1938 = vadd.f32 %v1906, %v1907
        %v1939 = vadd.f32 %v1938, %v1908
        %v1940 = vadd.f32 %v1939, %v1909
        %v1941 = vadd.f32 %v1940, %v1910
        %v1942 = vadd.f32 %v1941, %v1911
        %v1943 = vadd.f32 %v1942, %v1912
        %v1944 = vadd.f32 %v1943, %v1913
        %v1945 = vadd.f32 %v1944, %v1914
        %v1946 = vadd.f32 %v1945, %v1915
        %v1947 = vadd.f32 %v1946, %v1916
        %v1948 = vadd.f32 %v1947, %v1917
        %v1949 = vadd.f32 %v1948, %v1918
        %v1950 = vadd.f32 %v1949, %v1919
        %v1951 = vadd.f32 %v1950, %v1920
        %v1952 = vadd.f32 %v1951, %v1921
        %v1953 = vadd.f32 %v1952, %v1922
        %v1954 = vadd.f32 %v1953, %v1923
        %v1955 = vadd.f32 %v1954, %v1924
        %v1956 = vadd.f32 %v1955, %v1925
        %v1957 = vadd.f32 %v1956, %v1926
        %v1958 = vadd.f32 %v1957, %v1927
        %v1959 = vadd.f32 %v1958, %v1928
        %v1960 = vadd.f32 %v1959, %v1929
        %v1961 = vadd.f32 %v1960, %v1930
        %v1962 = vadd.f32 %v1961, %v1931
        %v1963 = vadd.f32 %v1962, %v1932
        %v1964 = vadd.f32 %v1963, %v1933
        %v1965 = vadd.f32 %v1964, %v1934
        %v1966 = vadd.f32 %v1965, %v1935
        %v1967 = vadd.f32 %v1966, %v1936
        %v1968 = vadd.f32 %v1967, %v1937
        %v1969 = vrot.slane %v1968, 4
        %v1970 = vadd.f32 %v1968, %v1969
        %v1971 = vrot.slane %v1970, 2
        %v1972 = vadd.f32 %v1970, %v1971
        %v1973 = vrot.slane %v1972, 1
        %v1974 = vadd.f32 %v1972, %v1973
        %1975 = vst [vmem:[%s214 + $0x1] sm:$0x1] %v1974
        %1976 = vst [vmem:[%s207] sm:$0xff] %v1710
        %1977 = vst [vmem:[%s207 + $0x8] sm:$0xff] %v1715
        %1978 = vst [vmem:[%s207 + $0x10] sm:$0xff] %v1720
        %1979 = vst [vmem:[%s207 + $0x18] sm:$0xff] %v1725
        %1980 = vst [vmem:[%s207 + $0x20] sm:$0xff] %v1730
        %1981 = vst [vmem:[%s207 + $0x28] sm:$0xff] %v1735
        %1982 = vst [vmem:[%s207 + $0x30] sm:$0xff] %v1740
        %1983 = vst [vmem:[%s207 + $0x38] sm:$0xff] %v1745
        %1984 = vst [vmem:[%s207 + $0x40] sm:$0xff] %v1750
        %1985 = vst [vmem:[%s207 + $0x48] sm:$0xff] %v1755
        %1986 = vst [vmem:[%s207 + $0x50] sm:$0xff] %v1760
        %1987 = vst [vmem:[%s207 + $0x58] sm:$0xff] %v1765
        %1988 = vst [vmem:[%s207 + $0x60] sm:$0xff] %v1770
        %1989 = vst [vmem:[%s207 + $0x68] sm:$0xff] %v1775
        %1990 = vst [vmem:[%s207 + $0x70] sm:$0xff] %v1780
        %1991 = vst [vmem:[%s207 + $0x78] sm:$0xff] %v1785
        %1992 = vst [vmem:[%s207 + $0x80] sm:$0xff] %v1790
        %1993 = vst [vmem:[%s207 + $0x88] sm:$0xff] %v1795
        %1994 = vst [vmem:[%s207 + $0x90] sm:$0xff] %v1800
        %1995 = vst [vmem:[%s207 + $0x98] sm:$0xff] %v1805
        %1996 = vst [vmem:[%s207 + $0xa0] sm:$0xff] %v1810
        %1997 = vst [vmem:[%s207 + $0xa8] sm:$0xff] %v1815
        %1998 = vst [vmem:[%s207 + $0xb0] sm:$0xff] %v1820
        %1999 = vst [vmem:[%s207 + $0xb8] sm:$0xff] %v1825
        %2000 = vst [vmem:[%s207 + $0xc0] sm:$0xff] %v1830
        %2001 = vst [vmem:[%s207 + $0xc8] sm:$0xff] %v1835
        %2002 = vst [vmem:[%s207 + $0xd0] sm:$0xff] %v1840
        %2003 = vst [vmem:[%s207 + $0xd8] sm:$0xff] %v1845
        %2004 = vst [vmem:[%s207 + $0xe0] sm:$0xff] %v1850
        %2005 = vst [vmem:[%s207 + $0xe8] sm:$0xff] %v1855
        %2006 = vst [vmem:[%s207 + $0xf0] sm:$0xff] %v1860
        %2007 = vst [vmem:[%s207 + $0xf8] sm:$0xff] %v1865
        %s2008 = sand.u32 %s80, 1
        %s2009 = scalar_lea.sflag [#allocation4], %s2008
        %s2010 = sand.u32 %s80, 1
        %s2011 = smul.addr %s2010, 256
        %s2012 = scalar_lea.vmem [#allocation7], %s2011
        %s2013 = sand.u32 %s106, 1
        %s2014 = scalar_lea.sflag [#allocation9], %s2013
        %s2015 = sand.u32 %s106, 1
        %s2016 = smul.addr %s2015, 8
        %s2017 = scalar_lea.vmem [#allocation8], %s2016
        // Predicated region
        $region37: #{resblock_forward_pallas.4} parent=27 // pred_check
          %p2018 = pneg %p90
        $region38: #{resblock_forward_pallas.4} parent=27 // pred_check_branch
          %2020 = sbr.rel (%p2018) target = $region40
        $region39: #{resblock_forward_pallas.4} parent=27 // pred_region
          %s2022 = ssub.s32 4096, 4096
          %2023 = vsyncadd %s2009, %s2022
          %s2024 = smul.addr %s25, 32
          %s2025 = smul.addr %s2024, 128
          %s2026 = scalar_lea.hbm %s2, %s2025
          %s2027 = sshll.u32 %s2012, 4
          %s2028 = int_to_ptr.vmem [resolvable:$true] %s2027
          %2033 = dma.vmem_to_hbm [thread:$0]  %s2028, 4096, %s2026, %s2009, 128, 128, 8
        $region40: #{resblock_forward_pallas.4} parent=27 // pred_fallthru
          _
        // Predicated region
        $region41: #{resblock_forward_pallas.4} parent=27 // pred_check
          %p2034 = pneg %p116
        $region42: #{resblock_forward_pallas.4} parent=27 // pred_check_branch
          %2036 = sbr.rel (%p2034) target = $region44
        $region43: #{resblock_forward_pallas.4} parent=27 // pred_region
          %s2038 = ssub.s32 128, 128
          %2039 = vsyncadd %s2014, %s2038
          %s2040 = smul.addr %s25, 128
          %s2041 = scalar_lea.hbm %s3, %s2040
          %s2043 = sshll.u32 %s2017, 4
          %s2044 = int_to_ptr.vmem [resolvable:$true] %s2043
          %2046 = dma.vmem_to_hbm [thread:$0]  %s2044, 128, %s2041, %s2014
        $region44: #{resblock_forward_pallas.4} parent=27 // pred_fallthru
          _
      $region28: #{resblock_forward_pallas.4} parent=5 // pred_fallthru
        _
      %p2047 = scmp.le.s32.totalorder 2, %s20
      // Predicated region
      $region45: #{resblock_forward_pallas.4} parent=5 // pred_check
        %p2048 = pneg %p2047
      $region46: #{resblock_forward_pallas.4} parent=5 // pred_check_branch
        %2050 = sbr.rel (%p2048) target = $region48
      $region47: #{resblock_forward_pallas.4} parent=5 // pred_region
        %s2051 = ssub.s32 %s20, 2
        // Predicated region
        $region49: #{resblock_forward_pallas.4} parent=47 // pred_check
          %p2052 = pneg %p96
        $region50: #{resblock_forward_pallas.4} parent=47 // pred_check_branch
          %2054 = sbr.rel (%p2052) target = $region52
        $region51: #{resblock_forward_pallas.4} parent=47 // pred_region
          %s2055 = sand.u32 %s81, 1
          %s2056 = scalar_lea.sflag [#allocation4], %s2055
          %s2057 = sand.u32 %s81, 1
          %s2058 = smul.addr %s2057, 256
          %s2059 = scalar_lea.vmem [#allocation7], %s2058
          %2060 = dma.done %s2056, 4096
        $region52: #{resblock_forward_pallas.4} parent=47 // pred_fallthru
          _
        // Predicated region
        $region53: #{resblock_forward_pallas.4} parent=47 // pred_check
          %p2061 = pneg %p122
        $region54: #{resblock_forward_pallas.4} parent=47 // pred_check_branch
          %2063 = sbr.rel (%p2061) target = $region56
        $region55: #{resblock_forward_pallas.4} parent=47 // pred_region
          %s2064 = sand.u32 %s107, 1
          %s2065 = scalar_lea.sflag [#allocation9], %s2064
          %s2066 = sand.u32 %s107, 1
          %s2067 = smul.addr %s2066, 8
          %s2068 = scalar_lea.vmem [#allocation8], %s2067
          %2069 = dma.done %s2065, 128
        $region56: #{resblock_forward_pallas.4} parent=47 // pred_fallthru
          _
      $region48: #{resblock_forward_pallas.4} parent=5 // pred_fallthru
        _
    $region6: #{resblock_forward_pallas.4} parent=1 // loop_footer
      %s24 = sadd.s32 1, %s20
    $region7: #{resblock_forward_pallas.4} parent=1 // loop_footer_branch
      %19 = sbr.rel target = $region3
    $region8: #{resblock_forward_pallas.4} parent=1 // loop_exit
      _
    %2070 = vsyncpa [#allocation3], 1
    %s2071 = scalar_lea.sflag [#allocation3], 1
    %2072 = vsyncpa %s2071, 1
    %2073 = vsyncpa [#allocation6], 1
    %2074 = vsyncpa [#allocation4], 1
    %s2075 = scalar_lea.sflag [#allocation4], 1
    %2076 = vsyncpa %s2075, 1
    %2077 = vsyncpa [#allocation9], 1
    %s2078 = scalar_lea.sflag [#allocation9], 1
    %2079 = vsyncpa %s2078, 1

</llo_original>
